<compile_context>
chip_gen: v6e
topology: v6e:2x2x1
jax: 0.10.0
libtpu: 0.0.40
codegen_flags: <defaults>
</compile_context>

<pallas_src>
import functools

import jax
import jax.numpy as jnp
import numpy as np
from jax.experimental import pallas as pl
from jax.experimental.pallas import tpu as pltpu

EPS = 1e-6


# --------------------------------------------------------------------------
# Fused kernel: for each block d:
#   LN1 -> qkv -> per-head, sample-batched softmax attention (+q residual
#   pooling) -> proj -> residual -> LN2 -> fc1 -> GELU -> fc2 -> residual.
# The whole (bs*N, C) activation slab lives in registers/VMEM across blocks.
# --------------------------------------------------------------------------
def _smvit_stack_kernel(x_ref, vec_ref, wqkv_ref, wproj_ref, wfc1_ref,
                        wfc2_ref, o_ref, *, num_heads, n):
    m, c = x_ref.shape
    bs = m // n                                   # samples in this grid step
    depth = wqkv_ref.shape[0]
    hidden = wfc1_ref.shape[-1]
    hd = c // num_heads
    bf16 = jnp.bfloat16

    x = x_ref[...]                                # (m, c) fp32

    def layer_norm(v, g, b):
        mu = jnp.mean(v, axis=-1, keepdims=True)
        var = jnp.mean(v * v, axis=-1, keepdims=True) - mu * mu
        return (v - mu) * jax.lax.rsqrt(var + EPS) * g + b

    for d in range(depth):
        # packed per-block vector params: rows = [g1, b1, g2, b2,
        #                                         bqkv, bproj, bfc1, bfc2]
        vp = vec_ref[d]                           # (8, VECW) fp32
        g1, b1, g2, b2 = vp[0, :c], vp[1, :c], vp[2, :c], vp[3, :c]
        bqkv, bproj = vp[4, :3 * c], vp[5, :c]
        bfc1, bfc2 = vp[6, :hidden], vp[7, :c]

        # --- attention branch ---
        y = layer_norm(x, g1, b1)
        qkv = jnp.dot(y.astype(bf16), wqkv_ref[d],
                      preferred_element_type=jnp.float32) + bqkv   # (m, 3c)

        # split samples back out (leading-dim reshape, layout preserving:
        # n % 8 == 0 and the last dim is unchanged)
        qkv3 = qkv.reshape(bs, n, 3 * c)

        head_outs = []
        for h in range(num_heads):
            q = qkv3[:, :, h * hd:(h + 1) * hd]                    # (bs,n,hd)
            k = qkv3[:, :, c + h * hd:c + (h + 1) * hd]            # pre-scaled
            v = qkv3[:, :, 2 * c + h * hd:2 * c + (h + 1) * hd]
            # sample-batched q @ k^T (flash-kernel style, no transposes)
            s = jnp.einsum('bqd,bkd->bqk', q.astype(bf16), k.astype(bf16),
                           preferred_element_type=jnp.float32)     # (bs,n,n)
            s = s - jnp.max(s, axis=-1, keepdims=True)
            p = jnp.exp(s)
            p = p * pl.reciprocal(jnp.sum(p, axis=-1, keepdims=True),
                                  approx=True)
            # residual_pooling adds the (unscaled) q
            oh = jnp.einsum('bqk,bkd->bqd', p.astype(bf16), v.astype(bf16),
                            preferred_element_type=jnp.float32) + q
            head_outs.append(oh.astype(bf16))

        # head-concat in registers (no VMEM scratch / masked stores); the
        # proj matmul reads its bf16 operand directly.
        attn = jnp.concatenate(head_outs, axis=-1).reshape(m, c)   # (m,c) bf16

        a = jnp.dot(attn, wproj_ref[d],
                    preferred_element_type=jnp.float32) + bproj
        x1 = x + a

        # --- MLP branch ---
        y2 = layer_norm(x1, g2, b2)
        h1 = jnp.dot(y2.astype(bf16), wfc1_ref[d],
                     preferred_element_type=jnp.float32) + bfc1
        # tanh GELU -> EUP slot (deviation from exact-erf nn.GELU < 1e-4 here)
        h1 = jax.nn.gelu(h1, approximate=True)
        h2 = jnp.dot(h1.astype(bf16), wfc2_ref[d],
                     preferred_element_type=jnp.float32) + bfc2
        x = x1 + h2

    o_ref[...] = x


# --------------------------------------------------------------------------
# SMViT forward: one pallas_call for the whole block stack
# (hw unchanged: all strides == 1 for this config).
# On v7x the batch is split over a 2-step "parallel" grid axis (2 TCs/chip);
# on single-TC v5e/v6e we keep a single grid step.
# --------------------------------------------------------------------------
def smvit_forward(work_inputs, bcthw, packed_params, num_heads):
    _, _, _, H, W = bcthw
    hw = [H, W]
    vec, wqkv, wproj, wfc1, wfc2 = packed_params

    bt, n, c = work_inputs.shape
    m = bt * n
    x2 = work_inputs.reshape(m, c)

    num_blocks = 1
    try:
        kind = jax.devices()[0].device_kind.lower()
        if "v7" in kind and bt % 2 == 0:
            num_blocks = 2          # feed both v7x TensorCores
    except Exception:
        num_blocks = 1
    mb = (bt // num_blocks) * n

    kernel = functools.partial(_smvit_stack_kernel, num_heads=num_heads, n=n)

    def _full(arr):
        nd = arr.ndim
        return pl.BlockSpec(arr.shape, lambda i, _nd=nd: (0,) * _nd)

    out = pl.pallas_call(
        kernel,
        out_shape=jax.ShapeDtypeStruct((m, c), work_inputs.dtype),
        grid_spec=pltpu.PrefetchScalarGridSpec(
            num_scalar_prefetch=0,
            grid=(num_blocks,),
            in_specs=[pl.BlockSpec((mb, c), lambda i: (i, 0)),
                      _full(vec), _full(wqkv), _full(wproj),
                      _full(wfc1), _full(wfc2)],
            out_specs=pl.BlockSpec((mb, c), lambda i: (i, 0)),
        ),
        compiler_params=pltpu.CompilerParams(
            dimension_semantics=("parallel",)),
    )(x2, vec, wqkv, wproj, wfc1, wfc2)
    return out.reshape(bt, n, c), hw


# --------------------------------------------------------------------------
# Deterministic parameter init (mirrors SMViT._init_weights):
#   Linear.weight ~ trunc_normal(std=0.02), Linear.bias = 0.02,
#   LayerNorm.weight = 1.0, LayerNorm.bias = 0.02.
# Weights are stored pre-transposed to (in, out): y = x @ W + b.
# --------------------------------------------------------------------------
def init_block_params(key, dim, mlp_ratio):
    hidden = int(dim * mlp_ratio)
    k = jax.random.split(key, 4)

    def tn(kk, shape):
        # trunc_normal_(std=0.02, a=-2, b=2): clip is vacuous at std=0.02.
        return jax.random.normal(kk, shape, jnp.float32) * 0.02

    return {
        "ln1_g": jnp.ones((dim,), jnp.float32),
        "ln1_b": jnp.full((dim,), 0.02, jnp.float32),
        "wqkv":  tn(k[0], (dim, 3 * dim)),
        "bqkv":  jnp.full((3 * dim,), 0.02, jnp.float32),
        "wproj": tn(k[1], (dim, dim)),
        "bproj": jnp.full((dim,), 0.02, jnp.float32),
        "ln2_g": jnp.ones((dim,), jnp.float32),
        "ln2_b": jnp.full((dim,), 0.02, jnp.float32),
        "wfc1":  tn(k[2], (dim, hidden)),
        "bfc1":  jnp.full((hidden,), 0.02, jnp.float32),
        "wfc2":  tn(k[3], (hidden, dim)),
        "bfc2":  jnp.full((dim,), 0.02, jnp.float32),
    }


# --------------------------------------------------------------------------
# One-time packing of per-block params into 5 stacked slabs:
#   vec   (depth, 8, 128) fp32 : [g1, b1, g2, b2, bqkv, bproj, bfc1, bfc2]
#   wqkv  (depth, C, 3C)  bf16 : K columns pre-scaled by 1/sqrt(hd)
#   wproj (depth, C, C)   bf16
#   wfc1  (depth, C, H)   bf16
#   wfc2  (depth, H, C)   bf16
# --------------------------------------------------------------------------
def pack_block_params(blocks_params, dim, hidden, num_heads):
    depth = len(blocks_params)
    hd = dim // num_heads
    scale = hd ** -0.5
    vecw = -(-max(3 * dim, hidden, dim) // 128) * 128

    vec = np.zeros((depth, 8, vecw), np.float32)
    wqkv = np.zeros((depth, dim, 3 * dim), np.float32)
    wproj = np.zeros((depth, dim, dim), np.float32)
    wfc1 = np.zeros((depth, dim, hidden), np.float32)
    wfc2 = np.zeros((depth, hidden, dim), np.float32)

    for d, p in enumerate(blocks_params):
        wq = np.asarray(p["wqkv"], np.float32).copy()
        bq = np.asarray(p["bqkv"], np.float32).reshape(-1).copy()
        # Fold the softmax scale into K (not Q), so the residual-pooling
        # "+ q" stays unscaled exactly as in the reference module.
        wq[:, dim:2 * dim] *= scale
        bq[dim:2 * dim] *= scale

        vec[d, 0, :dim] = np.asarray(p["ln1_g"]).reshape(-1)
        vec[d, 1, :dim] = np.asarray(p["ln1_b"]).reshape(-1)
        vec[d, 2, :dim] = np.asarray(p["ln2_g"]).reshape(-1)
        vec[d, 3, :dim] = np.asarray(p["ln2_b"]).reshape(-1)
        vec[d, 4, :3 * dim] = bq
        vec[d, 5, :dim] = np.asarray(p["bproj"]).reshape(-1)
        vec[d, 6, :hidden] = np.asarray(p["bfc1"]).reshape(-1)
        vec[d, 7, :dim] = np.asarray(p["bfc2"]).reshape(-1)

        wqkv[d] = wq
        wproj[d] = np.asarray(p["wproj"], np.float32)
        wfc1[d] = np.asarray(p["wfc1"], np.float32)
        wfc2[d] = np.asarray(p["wfc2"], np.float32)

    to_bf16 = lambda a: jnp.asarray(a).astype(jnp.bfloat16)
    return (jnp.asarray(vec), to_bf16(wqkv), to_bf16(wproj),
            to_bf16(wfc1), to_bf16(wfc2))


# --------------------------------------------------------------------------
# Pure-JAX fp32 reference (same module math, exact-erf GELU) for sanity.
# --------------------------------------------------------------------------
def _ref_block(x, p, num_heads):
    def ln(v, g, b):
        mu = jnp.mean(v, axis=-1, keepdims=True)
        var = jnp.mean((v - mu) ** 2, axis=-1, keepdims=True)
        return (v - mu) / jnp.sqrt(var + EPS) * g + b

    bt, n, c = x.shape
    hd = c // num_heads
    y = ln(x, p["ln1_g"], p["ln1_b"])
    qkv = y @ p["wqkv"] + p["bqkv"]
    qkv = qkv.reshape(bt, n, 3, num_heads, hd).transpose(2, 0, 3, 1, 4)
    q, k, v = qkv[0], qkv[1], qkv[2]
    attn = jax.nn.softmax((q * hd ** -0.5) @ jnp.swapaxes(k, -2, -1), axis=-1)
    o = attn @ v + q                                   # residual_pooling
    o = jnp.transpose(o, (0, 2, 1, 3)).reshape(bt, n, c)
    o = o @ p["wproj"] + p["bproj"]
    x1 = x + o
    y2 = ln(x1, p["ln2_g"], p["ln2_b"])
    h = jax.nn.gelu(y2 @ p["wfc1"] + p["bfc1"], approximate=False)
    return x1 + h @ p["wfc2"] + p["bfc2"]


if __name__ == "__main__":
    # Small shapes: B=2 frames, C=32 embed dim, H=W=8 -> N=64 tokens.
    B, T, H, W = 2, 1, 8, 8
    EMBED_DIM, NUM_HEADS, MLP_RATIO, DEPTH_SPATIAL = 32, 2, 4.0, 2
    HIDDEN = int(EMBED_DIM * MLP_RATIO)
    bcthw = (B, EMBED_DIM, T, H, W)

    root = jax.random.PRNGKey(0)
    kx, kp = jax.random.split(root)
    x = jax.random.normal(kx, (B * T, H * W, EMBED_DIM), jnp.float32)

    block_keys = jax.random.split(kp, DEPTH_SPATIAL)
    blocks = [init_block_params(block_keys[i], EMBED_DIM, MLP_RATIO)
              for i in range(DEPTH_SPATIAL)]
    packed = pack_block_params(blocks, EMBED_DIM, HIDDEN, NUM_HEADS)

    out, hw = smvit_forward(x, bcthw, packed, NUM_HEADS)
    out = jax.block_until_ready(out)

    # sanity check vs pure-JAX fp32 reference (kernel uses bf16 MXU operands
    # with fp32 accumulation and tanh GELU, so tolerance is relaxed)
    ref = x
    for p in blocks:
        ref = _ref_block(ref, p, NUM_HEADS)
    np.testing.assert_allclose(np.asarray(out), np.asarray(ref),
                               rtol=1e-2, atol=1e-2)
    assert hw == [H, W]

    print("KERNEL_OK")
</pallas_src>

<mosaic_0001>
module attributes {stable_mosaic.version = 11 : i64} {
  func.func @_smvit_stack_kernel(%arg0: i32, %arg1: memref<128x32xf32, #tpu.memory_space<vmem>>, %arg2: memref<2x8x128xf32, #tpu.memory_space<vmem>>, %arg3: memref<2x32x96xbf16, #tpu.memory_space<vmem>>, %arg4: memref<2x32x32xbf16, #tpu.memory_space<vmem>>, %arg5: memref<2x32x128xbf16, #tpu.memory_space<vmem>>, %arg6: memref<2x128x32xbf16, #tpu.memory_space<vmem>>, %arg7: memref<128x32xf32, #tpu.memory_space<vmem>>) attributes {dimension_semantics = [#tpu.dimension_semantics<parallel>], iteration_bounds = array<i64: 1>, scalar_prefetch = 0 : i64, scratch_operands = 0 : i64, tpu.core_type = #tpu.core_type<tc>, window_params = [{transform_indices = @transform_0, window_bounds = array<i64: 128, 32>}, {pipeline_mode = #tpu.pipeline_mode<synchronous>, transform_indices = @transform_1, window_bounds = array<i64: 2, 8, 128>}, {pipeline_mode = #tpu.pipeline_mode<synchronous>, transform_indices = @transform_2, window_bounds = array<i64: 2, 32, 96>}, {pipeline_mode = #tpu.pipeline_mode<synchronous>, transform_indices = @transform_3, window_bounds = array<i64: 2, 32, 32>}, {pipeline_mode = #tpu.pipeline_mode<synchronous>, transform_indices = @transform_4, window_bounds = array<i64: 2, 32, 128>}, {pipeline_mode = #tpu.pipeline_mode<synchronous>, transform_indices = @transform_5, window_bounds = array<i64: 2, 128, 32>}, {transform_indices = @transform_6, window_bounds = array<i64: 128, 32>}]} {
    %c0 = arith.constant 0 : index
    %c0_0 = arith.constant 0 : index
    %0 = vector.load %arg1[%c0, %c0_0] : memref<128x32xf32, #tpu.memory_space<vmem>>, vector<128x32xf32>
    %c0_1 = arith.constant 0 : index
    %c0_2 = arith.constant 0 : index
    %c0_3 = arith.constant 0 : index
    %1 = vector.load %arg2[%c0_1, %c0_2, %c0_3] : memref<2x8x128xf32, #tpu.memory_space<vmem>>, vector<1x8x128xf32>
    %2 = vector.shape_cast %1 : vector<1x8x128xf32> to vector<8x128xf32>
    %3 = vector.extract_strided_slice %2 {offsets = [0, 0], sizes = [1, 32], strides = [1, 1]} : vector<8x128xf32> to vector<1x32xf32>
    %4 = vector.shape_cast %3 : vector<1x32xf32> to vector<32xf32>
    %5 = vector.extract_strided_slice %2 {offsets = [1, 0], sizes = [1, 32], strides = [1, 1]} : vector<8x128xf32> to vector<1x32xf32>
    %6 = vector.shape_cast %5 : vector<1x32xf32> to vector<32xf32>
    %7 = vector.extract_strided_slice %2 {offsets = [2, 0], sizes = [1, 32], strides = [1, 1]} : vector<8x128xf32> to vector<1x32xf32>
    %8 = vector.shape_cast %7 : vector<1x32xf32> to vector<32xf32>
    %9 = vector.extract_strided_slice %2 {offsets = [3, 0], sizes = [1, 32], strides = [1, 1]} : vector<8x128xf32> to vector<1x32xf32>
    %10 = vector.shape_cast %9 : vector<1x32xf32> to vector<32xf32>
    %11 = vector.extract_strided_slice %2 {offsets = [4, 0], sizes = [1, 96], strides = [1, 1]} : vector<8x128xf32> to vector<1x96xf32>
    %12 = vector.shape_cast %11 : vector<1x96xf32> to vector<96xf32>
    %13 = vector.extract_strided_slice %2 {offsets = [5, 0], sizes = [1, 32], strides = [1, 1]} : vector<8x128xf32> to vector<1x32xf32>
    %14 = vector.shape_cast %13 : vector<1x32xf32> to vector<32xf32>
    %15 = vector.extract_strided_slice %2 {offsets = [6, 0], sizes = [1, 128], strides = [1, 1]} : vector<8x128xf32> to vector<1x128xf32>
    %16 = vector.shape_cast %15 : vector<1x128xf32> to vector<128xf32>
    %17 = vector.extract_strided_slice %2 {offsets = [7, 0], sizes = [1, 32], strides = [1, 1]} : vector<8x128xf32> to vector<1x32xf32>
    %18 = vector.shape_cast %17 : vector<1x32xf32> to vector<32xf32>
    %cst = arith.constant dense<0.000000e+00> : vector<128xf32>
    %19 = vector.multi_reduction <add>, %0, %cst [1] : vector<128x32xf32> to vector<128xf32>
    %20 = vector.shape_cast %19 : vector<128xf32> to vector<128x1xf32>
    %cst_4 = arith.constant 3.200000e+01 : f32
    %21 = vector.broadcast %cst_4 : f32 to vector<128x1xf32>
    %22 = arith.divf %20, %21 : vector<128x1xf32>
    %23 = arith.mulf %0, %0 : vector<128x32xf32>
    %cst_5 = arith.constant dense<0.000000e+00> : vector<128xf32>
    %24 = vector.multi_reduction <add>, %23, %cst_5 [1] : vector<128x32xf32> to vector<128xf32>
    %25 = vector.shape_cast %24 : vector<128xf32> to vector<128x1xf32>
    %cst_6 = arith.constant 3.200000e+01 : f32
    %26 = vector.broadcast %cst_6 : f32 to vector<128x1xf32>
    %27 = arith.divf %25, %26 : vector<128x1xf32>
    %28 = arith.mulf %22, %22 : vector<128x1xf32>
    %29 = arith.subf %27, %28 : vector<128x1xf32>
    %30 = vector.broadcast %22 : vector<128x1xf32> to vector<128x32xf32>
    %31 = arith.subf %0, %30 : vector<128x32xf32>
    %cst_7 = arith.constant 9.99999997E-7 : f32
    %32 = vector.broadcast %cst_7 : f32 to vector<128x1xf32>
    %33 = arith.addf %29, %32 : vector<128x1xf32>
    %34 = math.rsqrt %33 : vector<128x1xf32>
    %35 = vector.broadcast %34 : vector<128x1xf32> to vector<128x32xf32>
    %36 = arith.mulf %31, %35 : vector<128x32xf32>
    %37 = vector.shape_cast %4 : vector<32xf32> to vector<1x32xf32>
    %38 = vector.broadcast %37 : vector<1x32xf32> to vector<128x32xf32>
    %39 = arith.mulf %36, %38 : vector<128x32xf32>
    %40 = vector.shape_cast %6 : vector<32xf32> to vector<1x32xf32>
    %41 = vector.broadcast %40 : vector<1x32xf32> to vector<128x32xf32>
    %42 = arith.addf %39, %41 : vector<128x32xf32>
    %43 = arith.truncf %42 : vector<128x32xf32> to vector<128x32xbf16>
    %c0_8 = arith.constant 0 : index
    %c0_9 = arith.constant 0 : index
    %c0_10 = arith.constant 0 : index
    %44 = vector.load %arg3[%c0_8, %c0_9, %c0_10] : memref<2x32x96xbf16, #tpu.memory_space<vmem>>, vector<1x32x96xbf16>
    %45 = vector.shape_cast %44 : vector<1x32x96xbf16> to vector<32x96xbf16>
    %cst_11 = arith.constant dense<0.000000e+00> : vector<128x96xf32>
    %46 = tpu.matmul %43, %45, %cst_11 {dimension_numbers = #tpu.dot_dimension_numbers<[1], [0], [0], [1], [0, 0, 1, 1], [], []>} : vector<128x32xbf16>, vector<32x96xbf16>, vector<128x96xf32> -> vector<128x96xf32>
    %47 = vector.shape_cast %12 : vector<96xf32> to vector<1x96xf32>
    %48 = vector.broadcast %47 : vector<1x96xf32> to vector<128x96xf32>
    %49 = arith.addf %46, %48 : vector<128x96xf32>
    %50 = vector.shape_cast %49 : vector<128x96xf32> to vector<2x64x96xf32>
    %51 = vector.extract_strided_slice %50 {offsets = [0, 0, 0], sizes = [2, 64, 16], strides = [1, 1, 1]} : vector<2x64x96xf32> to vector<2x64x16xf32>
    %52 = vector.extract_strided_slice %50 {offsets = [0, 0, 32], sizes = [2, 64, 16], strides = [1, 1, 1]} : vector<2x64x96xf32> to vector<2x64x16xf32>
    %53 = vector.extract_strided_slice %50 {offsets = [0, 0, 64], sizes = [2, 64, 16], strides = [1, 1, 1]} : vector<2x64x96xf32> to vector<2x64x16xf32>
    %54 = arith.truncf %51 : vector<2x64x16xf32> to vector<2x64x16xbf16>
    %55 = arith.truncf %52 : vector<2x64x16xf32> to vector<2x64x16xbf16>
    "tpu.trace_start"() <{level = 10 : i32, message = "bqd,bkd->bqk"}> : () -> ()
    %cst_12 = arith.constant dense<0.000000e+00> : vector<2x64x64xf32>
    %56 = tpu.matmul %54, %55, %cst_12 {dimension_numbers = #tpu.dot_dimension_numbers<[2], [2], [1], [1], [0, 0, 0, 1, 1, 1], [0], [0]>} : vector<2x64x16xbf16>, vector<2x64x16xbf16>, vector<2x64x64xf32> -> vector<2x64x64xf32>
    "tpu.trace_stop"() : () -> ()
    %cst_13 = arith.constant dense<0xFF800000> : vector<2x64xf32>
    %57 = vector.multi_reduction <maximumf>, %56, %cst_13 [2] : vector<2x64x64xf32> to vector<2x64xf32>
    %58 = vector.shape_cast %57 : vector<2x64xf32> to vector<2x64x1xf32>
    %59 = vector.broadcast %58 : vector<2x64x1xf32> to vector<2x64x64xf32>
    %60 = arith.subf %56, %59 : vector<2x64x64xf32>
    %61 = math.exp %60 : vector<2x64x64xf32>
    %cst_14 = arith.constant dense<0.000000e+00> : vector<2x64xf32>
    %62 = vector.multi_reduction <add>, %61, %cst_14 [2] : vector<2x64x64xf32> to vector<2x64xf32>
    %63 = vector.shape_cast %62 : vector<2x64xf32> to vector<2x64x1xf32>
    %64 = tpu.reciprocal %63 {approx = true} : vector<2x64x1xf32> -> vector<2x64x1xf32>
    %65 = vector.broadcast %64 : vector<2x64x1xf32> to vector<2x64x64xf32>
    %66 = arith.mulf %61, %65 : vector<2x64x64xf32>
    %67 = arith.truncf %66 : vector<2x64x64xf32> to vector<2x64x64xbf16>
    %68 = arith.truncf %53 : vector<2x64x16xf32> to vector<2x64x16xbf16>
    "tpu.trace_start"() <{level = 10 : i32, message = "bqk,bkd->bqd"}> : () -> ()
    %cst_15 = arith.constant dense<0.000000e+00> : vector<2x64x16xf32>
    %69 = tpu.matmul %67, %68, %cst_15 {dimension_numbers = #tpu.dot_dimension_numbers<[2], [1], [1], [2], [0, 0, 0, 1, 1, 2], [0], [0]>} : vector<2x64x64xbf16>, vector<2x64x16xbf16>, vector<2x64x16xf32> -> vector<2x64x16xf32>
    "tpu.trace_stop"() : () -> ()
    %70 = arith.addf %69, %51 : vector<2x64x16xf32>
    %71 = arith.truncf %70 : vector<2x64x16xf32> to vector<2x64x16xbf16>
    %72 = vector.extract_strided_slice %50 {offsets = [0, 0, 16], sizes = [2, 64, 16], strides = [1, 1, 1]} : vector<2x64x96xf32> to vector<2x64x16xf32>
    %73 = vector.extract_strided_slice %50 {offsets = [0, 0, 48], sizes = [2, 64, 16], strides = [1, 1, 1]} : vector<2x64x96xf32> to vector<2x64x16xf32>
    %74 = vector.extract_strided_slice %50 {offsets = [0, 0, 80], sizes = [2, 64, 16], strides = [1, 1, 1]} : vector<2x64x96xf32> to vector<2x64x16xf32>
    %75 = arith.truncf %72 : vector<2x64x16xf32> to vector<2x64x16xbf16>
    %76 = arith.truncf %73 : vector<2x64x16xf32> to vector<2x64x16xbf16>
    "tpu.trace_start"() <{level = 10 : i32, message = "bqd,bkd->bqk"}> : () -> ()
    %cst_16 = arith.constant dense<0.000000e+00> : vector<2x64x64xf32>
    %77 = tpu.matmul %75, %76, %cst_16 {dimension_numbers = #tpu.dot_dimension_numbers<[2], [2], [1], [1], [0, 0, 0, 1, 1, 1], [0], [0]>} : vector<2x64x16xbf16>, vector<2x64x16xbf16>, vector<2x64x64xf32> -> vector<2x64x64xf32>
    "tpu.trace_stop"() : () -> ()
    %cst_17 = arith.constant dense<0xFF800000> : vector<2x64xf32>
    %78 = vector.multi_reduction <maximumf>, %77, %cst_17 [2] : vector<2x64x64xf32> to vector<2x64xf32>
    %79 = vector.shape_cast %78 : vector<2x64xf32> to vector<2x64x1xf32>
    %80 = vector.broadcast %79 : vector<2x64x1xf32> to vector<2x64x64xf32>
    %81 = arith.subf %77, %80 : vector<2x64x64xf32>
    %82 = math.exp %81 : vector<2x64x64xf32>
    %cst_18 = arith.constant dense<0.000000e+00> : vector<2x64xf32>
    %83 = vector.multi_reduction <add>, %82, %cst_18 [2] : vector<2x64x64xf32> to vector<2x64xf32>
    %84 = vector.shape_cast %83 : vector<2x64xf32> to vector<2x64x1xf32>
    %85 = tpu.reciprocal %84 {approx = true} : vector<2x64x1xf32> -> vector<2x64x1xf32>
    %86 = vector.broadcast %85 : vector<2x64x1xf32> to vector<2x64x64xf32>
    %87 = arith.mulf %82, %86 : vector<2x64x64xf32>
    %88 = arith.truncf %87 : vector<2x64x64xf32> to vector<2x64x64xbf16>
    %89 = arith.truncf %74 : vector<2x64x16xf32> to vector<2x64x16xbf16>
    "tpu.trace_start"() <{level = 10 : i32, message = "bqk,bkd->bqd"}> : () -> ()
    %cst_19 = arith.constant dense<0.000000e+00> : vector<2x64x16xf32>
    %90 = tpu.matmul %88, %89, %cst_19 {dimension_numbers = #tpu.dot_dimension_numbers<[2], [1], [1], [2], [0, 0, 0, 1, 1, 2], [0], [0]>} : vector<2x64x64xbf16>, vector<2x64x16xbf16>, vector<2x64x16xf32> -> vector<2x64x16xf32>
    "tpu.trace_stop"() : () -> ()
    %91 = arith.addf %90, %72 : vector<2x64x16xf32>
    %92 = arith.truncf %91 : vector<2x64x16xf32> to vector<2x64x16xbf16>
    %93 = tpu.concatenate %71, %92 in 2 : vector<2x64x16xbf16>, vector<2x64x16xbf16> -> vector<2x64x32xbf16>
    %94 = vector.shape_cast %93 : vector<2x64x32xbf16> to vector<128x32xbf16>
    %c0_20 = arith.constant 0 : index
    %c0_21 = arith.constant 0 : index
    %c0_22 = arith.constant 0 : index
    %95 = vector.load %arg4[%c0_20, %c0_21, %c0_22] : memref<2x32x32xbf16, #tpu.memory_space<vmem>>, vector<1x32x32xbf16>
    %96 = vector.shape_cast %95 : vector<1x32x32xbf16> to vector<32x32xbf16>
    %cst_23 = arith.constant dense<0.000000e+00> : vector<128x32xf32>
    %97 = tpu.matmul %94, %96, %cst_23 {dimension_numbers = #tpu.dot_dimension_numbers<[1], [0], [0], [1], [0, 0, 1, 1], [], []>} : vector<128x32xbf16>, vector<32x32xbf16>, vector<128x32xf32> -> vector<128x32xf32>
    %98 = vector.shape_cast %14 : vector<32xf32> to vector<1x32xf32>
    %99 = vector.broadcast %98 : vector<1x32xf32> to vector<128x32xf32>
    %100 = arith.addf %97, %99 : vector<128x32xf32>
    %101 = arith.addf %0, %100 : vector<128x32xf32>
    %cst_24 = arith.constant dense<0.000000e+00> : vector<128xf32>
    %102 = vector.multi_reduction <add>, %101, %cst_24 [1] : vector<128x32xf32> to vector<128xf32>
    %103 = vector.shape_cast %102 : vector<128xf32> to vector<128x1xf32>
    %cst_25 = arith.constant 3.200000e+01 : f32
    %104 = vector.broadcast %cst_25 : f32 to vector<128x1xf32>
    %105 = arith.divf %103, %104 : vector<128x1xf32>
    %106 = arith.mulf %101, %101 : vector<128x32xf32>
    %cst_26 = arith.constant dense<0.000000e+00> : vector<128xf32>
    %107 = vector.multi_reduction <add>, %106, %cst_26 [1] : vector<128x32xf32> to vector<128xf32>
    %108 = vector.shape_cast %107 : vector<128xf32> to vector<128x1xf32>
    %cst_27 = arith.constant 3.200000e+01 : f32
    %109 = vector.broadcast %cst_27 : f32 to vector<128x1xf32>
    %110 = arith.divf %108, %109 : vector<128x1xf32>
    %111 = arith.mulf %105, %105 : vector<128x1xf32>
    %112 = arith.subf %110, %111 : vector<128x1xf32>
    %113 = vector.broadcast %105 : vector<128x1xf32> to vector<128x32xf32>
    %114 = arith.subf %101, %113 : vector<128x32xf32>
    %cst_28 = arith.constant 9.99999997E-7 : f32
    %115 = vector.broadcast %cst_28 : f32 to vector<128x1xf32>
    %116 = arith.addf %112, %115 : vector<128x1xf32>
    %117 = math.rsqrt %116 : vector<128x1xf32>
    %118 = vector.broadcast %117 : vector<128x1xf32> to vector<128x32xf32>
    %119 = arith.mulf %114, %118 : vector<128x32xf32>
    %120 = vector.shape_cast %8 : vector<32xf32> to vector<1x32xf32>
    %121 = vector.broadcast %120 : vector<1x32xf32> to vector<128x32xf32>
    %122 = arith.mulf %119, %121 : vector<128x32xf32>
    %123 = vector.shape_cast %10 : vector<32xf32> to vector<1x32xf32>
    %124 = vector.broadcast %123 : vector<1x32xf32> to vector<128x32xf32>
    %125 = arith.addf %122, %124 : vector<128x32xf32>
    %126 = arith.truncf %125 : vector<128x32xf32> to vector<128x32xbf16>
    %c0_29 = arith.constant 0 : index
    %c0_30 = arith.constant 0 : index
    %c0_31 = arith.constant 0 : index
    %127 = vector.load %arg5[%c0_29, %c0_30, %c0_31] : memref<2x32x128xbf16, #tpu.memory_space<vmem>>, vector<1x32x128xbf16>
    %128 = vector.shape_cast %127 : vector<1x32x128xbf16> to vector<32x128xbf16>
    %cst_32 = arith.constant dense<0.000000e+00> : vector<128x128xf32>
    %129 = tpu.matmul %126, %128, %cst_32 {dimension_numbers = #tpu.dot_dimension_numbers<[1], [0], [0], [1], [0, 0, 1, 1], [], []>} : vector<128x32xbf16>, vector<32x128xbf16>, vector<128x128xf32> -> vector<128x128xf32>
    %130 = vector.shape_cast %16 : vector<128xf32> to vector<1x128xf32>
    %131 = vector.broadcast %130 : vector<1x128xf32> to vector<128x128xf32>
    %132 = arith.addf %129, %131 : vector<128x128xf32>
    %133 = arith.mulf %132, %132 : vector<128x128xf32>
    %134 = arith.mulf %132, %133 : vector<128x128xf32>
    %cst_33 = arith.constant 4.471500e-02 : f32
    %135 = vector.broadcast %cst_33 : f32 to vector<128x128xf32>
    %136 = arith.mulf %135, %134 : vector<128x128xf32>
    %137 = arith.addf %132, %136 : vector<128x128xf32>
    %cst_34 = arith.constant 0.797884583 : f32
    %138 = vector.broadcast %cst_34 : f32 to vector<128x128xf32>
    %139 = arith.mulf %138, %137 : vector<128x128xf32>
    %140 = math.tanh %139 : vector<128x128xf32>
    %cst_35 = arith.constant 1.000000e+00 : f32
    %141 = vector.broadcast %cst_35 : f32 to vector<128x128xf32>
    %142 = arith.addf %141, %140 : vector<128x128xf32>
    %cst_36 = arith.constant 5.000000e-01 : f32
    %143 = vector.broadcast %cst_36 : f32 to vector<128x128xf32>
    %144 = arith.mulf %143, %142 : vector<128x128xf32>
    %145 = arith.mulf %132, %144 : vector<128x128xf32>
    %146 = arith.truncf %145 : vector<128x128xf32> to vector<128x128xbf16>
    %c0_37 = arith.constant 0 : index
    %c0_38 = arith.constant 0 : index
    %c0_39 = arith.constant 0 : index
    %147 = vector.load %arg6[%c0_37, %c0_38, %c0_39] : memref<2x128x32xbf16, #tpu.memory_space<vmem>>, vector<1x128x32xbf16>
    %148 = vector.shape_cast %147 : vector<1x128x32xbf16> to vector<128x32xbf16>
    %cst_40 = arith.constant dense<0.000000e+00> : vector<128x32xf32>
    %149 = tpu.matmul %146, %148, %cst_40 {dimension_numbers = #tpu.dot_dimension_numbers<[1], [0], [0], [1], [0, 0, 1, 1], [], []>} : vector<128x128xbf16>, vector<128x32xbf16>, vector<128x32xf32> -> vector<128x32xf32>
    %150 = vector.shape_cast %18 : vector<32xf32> to vector<1x32xf32>
    %151 = vector.broadcast %150 : vector<1x32xf32> to vector<128x32xf32>
    %152 = arith.addf %149, %151 : vector<128x32xf32>
    %153 = arith.addf %101, %152 : vector<128x32xf32>
    %c1 = arith.constant 1 : index
    %c0_41 = arith.constant 0 : index
    %c0_42 = arith.constant 0 : index
    %154 = vector.load %arg2[%c1, %c0_41, %c0_42] : memref<2x8x128xf32, #tpu.memory_space<vmem>>, vector<1x8x128xf32>
    %155 = vector.shape_cast %154 : vector<1x8x128xf32> to vector<8x128xf32>
    %156 = vector.extract_strided_slice %155 {offsets = [0, 0], sizes = [1, 32], strides = [1, 1]} : vector<8x128xf32> to vector<1x32xf32>
    %157 = vector.shape_cast %156 : vector<1x32xf32> to vector<32xf32>
    %158 = vector.extract_strided_slice %155 {offsets = [1, 0], sizes = [1, 32], strides = [1, 1]} : vector<8x128xf32> to vector<1x32xf32>
    %159 = vector.shape_cast %158 : vector<1x32xf32> to vector<32xf32>
    %160 = vector.extract_strided_slice %155 {offsets = [2, 0], sizes = [1, 32], strides = [1, 1]} : vector<8x128xf32> to vector<1x32xf32>
    %161 = vector.shape_cast %160 : vector<1x32xf32> to vector<32xf32>
    %162 = vector.extract_strided_slice %155 {offsets = [3, 0], sizes = [1, 32], strides = [1, 1]} : vector<8x128xf32> to vector<1x32xf32>
    %163 = vector.shape_cast %162 : vector<1x32xf32> to vector<32xf32>
    %164 = vector.extract_strided_slice %155 {offsets = [4, 0], sizes = [1, 96], strides = [1, 1]} : vector<8x128xf32> to vector<1x96xf32>
    %165 = vector.shape_cast %164 : vector<1x96xf32> to vector<96xf32>
    %166 = vector.extract_strided_slice %155 {offsets = [5, 0], sizes = [1, 32], strides = [1, 1]} : vector<8x128xf32> to vector<1x32xf32>
    %167 = vector.shape_cast %166 : vector<1x32xf32> to vector<32xf32>
    %168 = vector.extract_strided_slice %155 {offsets = [6, 0], sizes = [1, 128], strides = [1, 1]} : vector<8x128xf32> to vector<1x128xf32>
    %169 = vector.shape_cast %168 : vector<1x128xf32> to vector<128xf32>
    %170 = vector.extract_strided_slice %155 {offsets = [7, 0], sizes = [1, 32], strides = [1, 1]} : vector<8x128xf32> to vector<1x32xf32>
    %171 = vector.shape_cast %170 : vector<1x32xf32> to vector<32xf32>
    %cst_43 = arith.constant dense<0.000000e+00> : vector<128xf32>
    %172 = vector.multi_reduction <add>, %153, %cst_43 [1] : vector<128x32xf32> to vector<128xf32>
    %173 = vector.shape_cast %172 : vector<128xf32> to vector<128x1xf32>
    %cst_44 = arith.constant 3.200000e+01 : f32
    %174 = vector.broadcast %cst_44 : f32 to vector<128x1xf32>
    %175 = arith.divf %173, %174 : vector<128x1xf32>
    %176 = arith.mulf %153, %153 : vector<128x32xf32>
    %cst_45 = arith.constant dense<0.000000e+00> : vector<128xf32>
    %177 = vector.multi_reduction <add>, %176, %cst_45 [1] : vector<128x32xf32> to vector<128xf32>
    %178 = vector.shape_cast %177 : vector<128xf32> to vector<128x1xf32>
    %cst_46 = arith.constant 3.200000e+01 : f32
    %179 = vector.broadcast %cst_46 : f32 to vector<128x1xf32>
    %180 = arith.divf %178, %179 : vector<128x1xf32>
    %181 = arith.mulf %175, %175 : vector<128x1xf32>
    %182 = arith.subf %180, %181 : vector<128x1xf32>
    %183 = vector.broadcast %175 : vector<128x1xf32> to vector<128x32xf32>
    %184 = arith.subf %153, %183 : vector<128x32xf32>
    %cst_47 = arith.constant 9.99999997E-7 : f32
    %185 = vector.broadcast %cst_47 : f32 to vector<128x1xf32>
    %186 = arith.addf %182, %185 : vector<128x1xf32>
    %187 = math.rsqrt %186 : vector<128x1xf32>
    %188 = vector.broadcast %187 : vector<128x1xf32> to vector<128x32xf32>
    %189 = arith.mulf %184, %188 : vector<128x32xf32>
    %190 = vector.shape_cast %157 : vector<32xf32> to vector<1x32xf32>
    %191 = vector.broadcast %190 : vector<1x32xf32> to vector<128x32xf32>
    %192 = arith.mulf %189, %191 : vector<128x32xf32>
    %193 = vector.shape_cast %159 : vector<32xf32> to vector<1x32xf32>
    %194 = vector.broadcast %193 : vector<1x32xf32> to vector<128x32xf32>
    %195 = arith.addf %192, %194 : vector<128x32xf32>
    %196 = arith.truncf %195 : vector<128x32xf32> to vector<128x32xbf16>
    %c1_48 = arith.constant 1 : index
    %c0_49 = arith.constant 0 : index
    %c0_50 = arith.constant 0 : index
    %197 = vector.load %arg3[%c1_48, %c0_49, %c0_50] : memref<2x32x96xbf16, #tpu.memory_space<vmem>>, vector<1x32x96xbf16>
    %198 = vector.shape_cast %197 : vector<1x32x96xbf16> to vector<32x96xbf16>
    %cst_51 = arith.constant dense<0.000000e+00> : vector<128x96xf32>
    %199 = tpu.matmul %196, %198, %cst_51 {dimension_numbers = #tpu.dot_dimension_numbers<[1], [0], [0], [1], [0, 0, 1, 1], [], []>} : vector<128x32xbf16>, vector<32x96xbf16>, vector<128x96xf32> -> vector<128x96xf32>
    %200 = vector.shape_cast %165 : vector<96xf32> to vector<1x96xf32>
    %201 = vector.broadcast %200 : vector<1x96xf32> to vector<128x96xf32>
    %202 = arith.addf %199, %201 : vector<128x96xf32>
    %203 = vector.shape_cast %202 : vector<128x96xf32> to vector<2x64x96xf32>
    %204 = vector.extract_strided_slice %203 {offsets = [0, 0, 0], sizes = [2, 64, 16], strides = [1, 1, 1]} : vector<2x64x96xf32> to vector<2x64x16xf32>
    %205 = vector.extract_strided_slice %203 {offsets = [0, 0, 32], sizes = [2, 64, 16], strides = [1, 1, 1]} : vector<2x64x96xf32> to vector<2x64x16xf32>
    %206 = vector.extract_strided_slice %203 {offsets = [0, 0, 64], sizes = [2, 64, 16], strides = [1, 1, 1]} : vector<2x64x96xf32> to vector<2x64x16xf32>
    %207 = arith.truncf %204 : vector<2x64x16xf32> to vector<2x64x16xbf16>
    %208 = arith.truncf %205 : vector<2x64x16xf32> to vector<2x64x16xbf16>
    "tpu.trace_start"() <{level = 10 : i32, message = "bqd,bkd->bqk"}> : () -> ()
    %cst_52 = arith.constant dense<0.000000e+00> : vector<2x64x64xf32>
    %209 = tpu.matmul %207, %208, %cst_52 {dimension_numbers = #tpu.dot_dimension_numbers<[2], [2], [1], [1], [0, 0, 0, 1, 1, 1], [0], [0]>} : vector<2x64x16xbf16>, vector<2x64x16xbf16>, vector<2x64x64xf32> -> vector<2x64x64xf32>
    "tpu.trace_stop"() : () -> ()
    %cst_53 = arith.constant dense<0xFF800000> : vector<2x64xf32>
    %210 = vector.multi_reduction <maximumf>, %209, %cst_53 [2] : vector<2x64x64xf32> to vector<2x64xf32>
    %211 = vector.shape_cast %210 : vector<2x64xf32> to vector<2x64x1xf32>
    %212 = vector.broadcast %211 : vector<2x64x1xf32> to vector<2x64x64xf32>
    %213 = arith.subf %209, %212 : vector<2x64x64xf32>
    %214 = math.exp %213 : vector<2x64x64xf32>
    %cst_54 = arith.constant dense<0.000000e+00> : vector<2x64xf32>
    %215 = vector.multi_reduction <add>, %214, %cst_54 [2] : vector<2x64x64xf32> to vector<2x64xf32>
    %216 = vector.shape_cast %215 : vector<2x64xf32> to vector<2x64x1xf32>
    %217 = tpu.reciprocal %216 {approx = true} : vector<2x64x1xf32> -> vector<2x64x1xf32>
    %218 = vector.broadcast %217 : vector<2x64x1xf32> to vector<2x64x64xf32>
    %219 = arith.mulf %214, %218 : vector<2x64x64xf32>
    %220 = arith.truncf %219 : vector<2x64x64xf32> to vector<2x64x64xbf16>
    %221 = arith.truncf %206 : vector<2x64x16xf32> to vector<2x64x16xbf16>
    "tpu.trace_start"() <{level = 10 : i32, message = "bqk,bkd->bqd"}> : () -> ()
    %cst_55 = arith.constant dense<0.000000e+00> : vector<2x64x16xf32>
    %222 = tpu.matmul %220, %221, %cst_55 {dimension_numbers = #tpu.dot_dimension_numbers<[2], [1], [1], [2], [0, 0, 0, 1, 1, 2], [0], [0]>} : vector<2x64x64xbf16>, vector<2x64x16xbf16>, vector<2x64x16xf32> -> vector<2x64x16xf32>
    "tpu.trace_stop"() : () -> ()
    %223 = arith.addf %222, %204 : vector<2x64x16xf32>
    %224 = arith.truncf %223 : vector<2x64x16xf32> to vector<2x64x16xbf16>
    %225 = vector.extract_strided_slice %203 {offsets = [0, 0, 16], sizes = [2, 64, 16], strides = [1, 1, 1]} : vector<2x64x96xf32> to vector<2x64x16xf32>
    %226 = vector.extract_strided_slice %203 {offsets = [0, 0, 48], sizes = [2, 64, 16], strides = [1, 1, 1]} : vector<2x64x96xf32> to vector<2x64x16xf32>
    %227 = vector.extract_strided_slice %203 {offsets = [0, 0, 80], sizes = [2, 64, 16], strides = [1, 1, 1]} : vector<2x64x96xf32> to vector<2x64x16xf32>
    %228 = arith.truncf %225 : vector<2x64x16xf32> to vector<2x64x16xbf16>
    %229 = arith.truncf %226 : vector<2x64x16xf32> to vector<2x64x16xbf16>
    "tpu.trace_start"() <{level = 10 : i32, message = "bqd,bkd->bqk"}> : () -> ()
    %cst_56 = arith.constant dense<0.000000e+00> : vector<2x64x64xf32>
    %230 = tpu.matmul %228, %229, %cst_56 {dimension_numbers = #tpu.dot_dimension_numbers<[2], [2], [1], [1], [0, 0, 0, 1, 1, 1], [0], [0]>} : vector<2x64x16xbf16>, vector<2x64x16xbf16>, vector<2x64x64xf32> -> vector<2x64x64xf32>
    "tpu.trace_stop"() : () -> ()
    %cst_57 = arith.constant dense<0xFF800000> : vector<2x64xf32>
    %231 = vector.multi_reduction <maximumf>, %230, %cst_57 [2] : vector<2x64x64xf32> to vector<2x64xf32>
    %232 = vector.shape_cast %231 : vector<2x64xf32> to vector<2x64x1xf32>
    %233 = vector.broadcast %232 : vector<2x64x1xf32> to vector<2x64x64xf32>
    %234 = arith.subf %230, %233 : vector<2x64x64xf32>
    %235 = math.exp %234 : vector<2x64x64xf32>
    %cst_58 = arith.constant dense<0.000000e+00> : vector<2x64xf32>
    %236 = vector.multi_reduction <add>, %235, %cst_58 [2] : vector<2x64x64xf32> to vector<2x64xf32>
    %237 = vector.shape_cast %236 : vector<2x64xf32> to vector<2x64x1xf32>
    %238 = tpu.reciprocal %237 {approx = true} : vector<2x64x1xf32> -> vector<2x64x1xf32>
    %239 = vector.broadcast %238 : vector<2x64x1xf32> to vector<2x64x64xf32>
    %240 = arith.mulf %235, %239 : vector<2x64x64xf32>
    %241 = arith.truncf %240 : vector<2x64x64xf32> to vector<2x64x64xbf16>
    %242 = arith.truncf %227 : vector<2x64x16xf32> to vector<2x64x16xbf16>
    "tpu.trace_start"() <{level = 10 : i32, message = "bqk,bkd->bqd"}> : () -> ()
    %cst_59 = arith.constant dense<0.000000e+00> : vector<2x64x16xf32>
    %243 = tpu.matmul %241, %242, %cst_59 {dimension_numbers = #tpu.dot_dimension_numbers<[2], [1], [1], [2], [0, 0, 0, 1, 1, 2], [0], [0]>} : vector<2x64x64xbf16>, vector<2x64x16xbf16>, vector<2x64x16xf32> -> vector<2x64x16xf32>
    "tpu.trace_stop"() : () -> ()
    %244 = arith.addf %243, %225 : vector<2x64x16xf32>
    %245 = arith.truncf %244 : vector<2x64x16xf32> to vector<2x64x16xbf16>
    %246 = tpu.concatenate %224, %245 in 2 : vector<2x64x16xbf16>, vector<2x64x16xbf16> -> vector<2x64x32xbf16>
    %247 = vector.shape_cast %246 : vector<2x64x32xbf16> to vector<128x32xbf16>
    %c1_60 = arith.constant 1 : index
    %c0_61 = arith.constant 0 : index
    %c0_62 = arith.constant 0 : index
    %248 = vector.load %arg4[%c1_60, %c0_61, %c0_62] : memref<2x32x32xbf16, #tpu.memory_space<vmem>>, vector<1x32x32xbf16>
    %249 = vector.shape_cast %248 : vector<1x32x32xbf16> to vector<32x32xbf16>
    %cst_63 = arith.constant dense<0.000000e+00> : vector<128x32xf32>
    %250 = tpu.matmul %247, %249, %cst_63 {dimension_numbers = #tpu.dot_dimension_numbers<[1], [0], [0], [1], [0, 0, 1, 1], [], []>} : vector<128x32xbf16>, vector<32x32xbf16>, vector<128x32xf32> -> vector<128x32xf32>
    %251 = vector.shape_cast %167 : vector<32xf32> to vector<1x32xf32>
    %252 = vector.broadcast %251 : vector<1x32xf32> to vector<128x32xf32>
    %253 = arith.addf %250, %252 : vector<128x32xf32>
    %254 = arith.addf %153, %253 : vector<128x32xf32>
    %cst_64 = arith.constant dense<0.000000e+00> : vector<128xf32>
    %255 = vector.multi_reduction <add>, %254, %cst_64 [1] : vector<128x32xf32> to vector<128xf32>
    %256 = vector.shape_cast %255 : vector<128xf32> to vector<128x1xf32>
    %cst_65 = arith.constant 3.200000e+01 : f32
    %257 = vector.broadcast %cst_65 : f32 to vector<128x1xf32>
    %258 = arith.divf %256, %257 : vector<128x1xf32>
    %259 = arith.mulf %254, %254 : vector<128x32xf32>
    %cst_66 = arith.constant dense<0.000000e+00> : vector<128xf32>
    %260 = vector.multi_reduction <add>, %259, %cst_66 [1] : vector<128x32xf32> to vector<128xf32>
    %261 = vector.shape_cast %260 : vector<128xf32> to vector<128x1xf32>
    %cst_67 = arith.constant 3.200000e+01 : f32
    %262 = vector.broadcast %cst_67 : f32 to vector<128x1xf32>
    %263 = arith.divf %261, %262 : vector<128x1xf32>
    %264 = arith.mulf %258, %258 : vector<128x1xf32>
    %265 = arith.subf %263, %264 : vector<128x1xf32>
    %266 = vector.broadcast %258 : vector<128x1xf32> to vector<128x32xf32>
    %267 = arith.subf %254, %266 : vector<128x32xf32>
    %cst_68 = arith.constant 9.99999997E-7 : f32
    %268 = vector.broadcast %cst_68 : f32 to vector<128x1xf32>
    %269 = arith.addf %265, %268 : vector<128x1xf32>
    %270 = math.rsqrt %269 : vector<128x1xf32>
    %271 = vector.broadcast %270 : vector<128x1xf32> to vector<128x32xf32>
    %272 = arith.mulf %267, %271 : vector<128x32xf32>
    %273 = vector.shape_cast %161 : vector<32xf32> to vector<1x32xf32>
    %274 = vector.broadcast %273 : vector<1x32xf32> to vector<128x32xf32>
    %275 = arith.mulf %272, %274 : vector<128x32xf32>
    %276 = vector.shape_cast %163 : vector<32xf32> to vector<1x32xf32>
    %277 = vector.broadcast %276 : vector<1x32xf32> to vector<128x32xf32>
    %278 = arith.addf %275, %277 : vector<128x32xf32>
    %279 = arith.truncf %278 : vector<128x32xf32> to vector<128x32xbf16>
    %c1_69 = arith.constant 1 : index
    %c0_70 = arith.constant 0 : index
    %c0_71 = arith.constant 0 : index
    %280 = vector.load %arg5[%c1_69, %c0_70, %c0_71] : memref<2x32x128xbf16, #tpu.memory_space<vmem>>, vector<1x32x128xbf16>
    %281 = vector.shape_cast %280 : vector<1x32x128xbf16> to vector<32x128xbf16>
    %cst_72 = arith.constant dense<0.000000e+00> : vector<128x128xf32>
    %282 = tpu.matmul %279, %281, %cst_72 {dimension_numbers = #tpu.dot_dimension_numbers<[1], [0], [0], [1], [0, 0, 1, 1], [], []>} : vector<128x32xbf16>, vector<32x128xbf16>, vector<128x128xf32> -> vector<128x128xf32>
    %283 = vector.shape_cast %169 : vector<128xf32> to vector<1x128xf32>
    %284 = vector.broadcast %283 : vector<1x128xf32> to vector<128x128xf32>
    %285 = arith.addf %282, %284 : vector<128x128xf32>
    %286 = arith.mulf %285, %285 : vector<128x128xf32>
    %287 = arith.mulf %285, %286 : vector<128x128xf32>
    %cst_73 = arith.constant 4.471500e-02 : f32
    %288 = vector.broadcast %cst_73 : f32 to vector<128x128xf32>
    %289 = arith.mulf %288, %287 : vector<128x128xf32>
    %290 = arith.addf %285, %289 : vector<128x128xf32>
    %cst_74 = arith.constant 0.797884583 : f32
    %291 = vector.broadcast %cst_74 : f32 to vector<128x128xf32>
    %292 = arith.mulf %291, %290 : vector<128x128xf32>
    %293 = math.tanh %292 : vector<128x128xf32>
    %cst_75 = arith.constant 1.000000e+00 : f32
    %294 = vector.broadcast %cst_75 : f32 to vector<128x128xf32>
    %295 = arith.addf %294, %293 : vector<128x128xf32>
    %cst_76 = arith.constant 5.000000e-01 : f32
    %296 = vector.broadcast %cst_76 : f32 to vector<128x128xf32>
    %297 = arith.mulf %296, %295 : vector<128x128xf32>
    %298 = arith.mulf %285, %297 : vector<128x128xf32>
    %299 = arith.truncf %298 : vector<128x128xf32> to vector<128x128xbf16>
    %c1_77 = arith.constant 1 : index
    %c0_78 = arith.constant 0 : index
    %c0_79 = arith.constant 0 : index
    %300 = vector.load %arg6[%c1_77, %c0_78, %c0_79] : memref<2x128x32xbf16, #tpu.memory_space<vmem>>, vector<1x128x32xbf16>
    %301 = vector.shape_cast %300 : vector<1x128x32xbf16> to vector<128x32xbf16>
    %cst_80 = arith.constant dense<0.000000e+00> : vector<128x32xf32>
    %302 = tpu.matmul %299, %301, %cst_80 {dimension_numbers = #tpu.dot_dimension_numbers<[1], [0], [0], [1], [0, 0, 1, 1], [], []>} : vector<128x128xbf16>, vector<128x32xbf16>, vector<128x32xf32> -> vector<128x32xf32>
    %303 = vector.shape_cast %171 : vector<32xf32> to vector<1x32xf32>
    %304 = vector.broadcast %303 : vector<1x32xf32> to vector<128x32xf32>
    %305 = arith.addf %302, %304 : vector<128x32xf32>
    %306 = arith.addf %254, %305 : vector<128x32xf32>
    %c0_81 = arith.constant 0 : index
    %c0_82 = arith.constant 0 : index
    %307 = vector.load %arg7[%c0_81, %c0_82] : memref<128x32xf32, #tpu.memory_space<vmem>>, vector<128x32xf32>
    tpu.vector_store %arg7[%c0_81, %c0_82], %306 {strides = array<i32>} : memref<128x32xf32, #tpu.memory_space<vmem>>, vector<128x32xf32>,
    return
  }
  func.func @transform_0(%arg0: i32) -> (i32, i32) {
    %c0_i32 = arith.constant 0 : i32
    %c0_i32_0 = arith.constant 0 : i32
    return %arg0, %c0_i32 : i32, i32
  }
  func.func @transform_1(%arg0: i32) -> (i32, i32, i32) {
    %c0_i32 = arith.constant 0 : i32
    %c0_i32_0 = arith.constant 0 : i32
    %c0_i32_1 = arith.constant 0 : i32
    %c0_i32_2 = arith.constant 0 : i32
    return %c0_i32, %c0_i32_0, %c0_i32_1 : i32, i32, i32
  }
  func.func @transform_2(%arg0: i32) -> (i32, i32, i32) {
    %c0_i32 = arith.constant 0 : i32
    %c0_i32_0 = arith.constant 0 : i32
    %c0_i32_1 = arith.constant 0 : i32
    %c0_i32_2 = arith.constant 0 : i32
    return %c0_i32, %c0_i32_0, %c0_i32_1 : i32, i32, i32
  }
  func.func @transform_3(%arg0: i32) -> (i32, i32, i32) {
    %c0_i32 = arith.constant 0 : i32
    %c0_i32_0 = arith.constant 0 : i32
    %c0_i32_1 = arith.constant 0 : i32
    %c0_i32_2 = arith.constant 0 : i32
    return %c0_i32, %c0_i32_0, %c0_i32_1 : i32, i32, i32
  }
  func.func @transform_4(%arg0: i32) -> (i32, i32, i32) {
    %c0_i32 = arith.constant 0 : i32
    %c0_i32_0 = arith.constant 0 : i32
    %c0_i32_1 = arith.constant 0 : i32
    %c0_i32_2 = arith.constant 0 : i32
    return %c0_i32, %c0_i32_0, %c0_i32_1 : i32, i32, i32
  }
  func.func @transform_5(%arg0: i32) -> (i32, i32, i32) {
    %c0_i32 = arith.constant 0 : i32
    %c0_i32_0 = arith.constant 0 : i32
    %c0_i32_1 = arith.constant 0 : i32
    %c0_i32_2 = arith.constant 0 : i32
    return %c0_i32, %c0_i32_0, %c0_i32_1 : i32, i32, i32
  }
  func.func @transform_6(%arg0: i32) -> (i32, i32) {
    %c0_i32 = arith.constant 0 : i32
    %c0_i32_0 = arith.constant 0 : i32
    return %arg0, %c0_i32 : i32, i32
  }
}

</mosaic_0001>

<llo_original>
// kernel: tpu_custom_call.1
$region0: #{tpu_custom_call.1}
  #allocation0 [shape = 'u32[]', space=smem, size = 0x4, offset = 0x4, fixed_abs, tag = 'smem constant byte address 0x4 - core index']
  #allocation1 [shape = 'u32[144,128]{1,0:T(1,128)}', space=vmem, size = 0x12000, scoped, tag = 'internal scratch']
  %s0 = inlined_call_operand.vmem [shape: f32[128,32], index: 0, kind: input, shape index: {}]
  %s1 = inlined_call_operand.vmem [shape: f32[2,8,128], index: 1, kind: input, shape index: {}]
  %s2 = inlined_call_operand.vmem [shape: bf16[2,32,96], index: 2, kind: input, shape index: {}]
  %s3 = inlined_call_operand.vmem [shape: bf16[2,32,32], index: 3, kind: input, shape index: {}]
  %s4 = inlined_call_operand.vmem [shape: bf16[2,32,128], index: 4, kind: input, shape index: {}]
  %s5 = inlined_call_operand.vmem [shape: bf16[2,128,32], index: 5, kind: input, shape index: {}]
  %s6 = inlined_call_operand.vmem [shape: f32[128,32], index: 6, kind: output, shape index: {}]
  %s7 = sld [smem:[#allocation0]]
  $region34: #{tpu_custom_call.1} parent=0
    _
  %s9 = ssub.s32 1, %s7
  %s10 = scalar_select 0, %s9, %s7
  // Predicated region
  $region2: #{tpu_custom_call.1} parent=0 // pred_check
    _
  $region3: #{tpu_custom_call.1} parent=0 // pred_check_branch
    %12 = sbr.rel (0) target = $region5
  $region4: #{tpu_custom_call.1} parent=0 // pred_region
    _
  $region5: #{tpu_custom_call.1} parent=0 // pred_fallthru
    _
  // Predicated region
  $region6: #{tpu_custom_call.1} parent=0 // pred_check
    _
  $region7: #{tpu_custom_call.1} parent=0 // pred_check_branch
    %14 = sbr.rel (0) target = $region9
  $region8: #{tpu_custom_call.1} parent=0 // pred_region
    _
  $region9: #{tpu_custom_call.1} parent=0 // pred_fallthru
    _
  // Predicated region
  $region10: #{tpu_custom_call.1} parent=0 // pred_check
    _
  $region11: #{tpu_custom_call.1} parent=0 // pred_check_branch
    %16 = sbr.rel (0) target = $region13
  $region12: #{tpu_custom_call.1} parent=0 // pred_region
    _
  $region13: #{tpu_custom_call.1} parent=0 // pred_fallthru
    _
  // Predicated region
  $region14: #{tpu_custom_call.1} parent=0 // pred_check
    _
  $region15: #{tpu_custom_call.1} parent=0 // pred_check_branch
    %18 = sbr.rel (0) target = $region17
  $region16: #{tpu_custom_call.1} parent=0 // pred_region
    _
  $region17: #{tpu_custom_call.1} parent=0 // pred_fallthru
    _
  // Predicated region
  $region18: #{tpu_custom_call.1} parent=0 // pred_check
    _
  $region19: #{tpu_custom_call.1} parent=0 // pred_check_branch
    %20 = sbr.rel (0) target = $region21
  $region20: #{tpu_custom_call.1} parent=0 // pred_region
    _
  $region21: #{tpu_custom_call.1} parent=0 // pred_fallthru
    _
  // Predicated region
  $region22: #{tpu_custom_call.1} parent=0 // pred_check
    _
  $region23: #{tpu_custom_call.1} parent=0 // pred_check_branch
    %22 = sbr.rel (0) target = $region25
  $region24: #{tpu_custom_call.1} parent=0 // pred_region
    _
  $region25: #{tpu_custom_call.1} parent=0 // pred_fallthru
    _
  %v24 = vld [vmem:[%s0] sm:$0xff]
  %v25 = vld [vmem:[%s0 + $0x8] sm:$0xff]
  %v26 = vld [vmem:[%s0 + $0x10] sm:$0xff]
  %v27 = vld [vmem:[%s0 + $0x18] sm:$0xff]
  %v28 = vld [vmem:[%s0 + $0x20] sm:$0xff]
  %v29 = vld [vmem:[%s0 + $0x28] sm:$0xff]
  %v30 = vld [vmem:[%s0 + $0x30] sm:$0xff]
  %v31 = vld [vmem:[%s0 + $0x38] sm:$0xff]
  %v32 = vld [vmem:[%s0 + $0x40] sm:$0xff]
  %v33 = vld [vmem:[%s0 + $0x48] sm:$0xff]
  %v34 = vld [vmem:[%s0 + $0x50] sm:$0xff]
  %v35 = vld [vmem:[%s0 + $0x58] sm:$0xff]
  %v36 = vld [vmem:[%s0 + $0x60] sm:$0xff]
  %v37 = vld [vmem:[%s0 + $0x68] sm:$0xff]
  %v38 = vld [vmem:[%s0 + $0x70] sm:$0xff]
  %v39 = vld [vmem:[%s0 + $0x78] sm:$0xff]
  %v40 = vld [vmem:[%s1] sm:$0xff]
  %vm41 = vcmask 261120
  %v42 = vsel %vm41, %v24, 0.0
  %43 = vadd.xlane.f32.xlu0 %v42
  %v44 = vpop.xlane.xlu0 %43
  %v45 = vsel %vm41, %v25, 0.0
  %46 = vadd.xlane.f32.xlu0 %v45
  %v47 = vpop.xlane.xlu0 %46
  %v48 = vsel %vm41, %v26, 0.0
  %49 = vadd.xlane.f32.xlu0 %v48
  %v50 = vpop.xlane.xlu0 %49
  %v51 = vsel %vm41, %v27, 0.0
  %52 = vadd.xlane.f32.xlu0 %v51
  %v53 = vpop.xlane.xlu0 %52
  %v54 = vsel %vm41, %v28, 0.0
  %55 = vadd.xlane.f32.xlu0 %v54
  %v56 = vpop.xlane.xlu0 %55
  %v57 = vsel %vm41, %v29, 0.0
  %58 = vadd.xlane.f32.xlu0 %v57
  %v59 = vpop.xlane.xlu0 %58
  %v60 = vsel %vm41, %v30, 0.0
  %61 = vadd.xlane.f32.xlu0 %v60
  %v62 = vpop.xlane.xlu0 %61
  %v63 = vsel %vm41, %v31, 0.0
  %64 = vadd.xlane.f32.xlu0 %v63
  %v65 = vpop.xlane.xlu0 %64
  %v66 = vsel %vm41, %v32, 0.0
  %67 = vadd.xlane.f32.xlu0 %v66
  %v68 = vpop.xlane.xlu0 %67
  %v69 = vsel %vm41, %v33, 0.0
  %70 = vadd.xlane.f32.xlu0 %v69
  %v71 = vpop.xlane.xlu0 %70
  %v72 = vsel %vm41, %v34, 0.0
  %73 = vadd.xlane.f32.xlu0 %v72
  %v74 = vpop.xlane.xlu0 %73
  %v75 = vsel %vm41, %v35, 0.0
  %76 = vadd.xlane.f32.xlu0 %v75
  %v77 = vpop.xlane.xlu0 %76
  %v78 = vsel %vm41, %v36, 0.0
  %79 = vadd.xlane.f32.xlu0 %v78
  %v80 = vpop.xlane.xlu0 %79
  %v81 = vsel %vm41, %v37, 0.0
  %82 = vadd.xlane.f32.xlu0 %v81
  %v83 = vpop.xlane.xlu0 %82
  %v84 = vsel %vm41, %v38, 0.0
  %85 = vadd.xlane.f32.xlu0 %v84
  %v86 = vpop.xlane.xlu0 %85
  %v87 = vsel %vm41, %v39, 0.0
  %88 = vadd.xlane.f32.xlu0 %v87
  %v89 = vpop.xlane.xlu0 %88
  %v90 = vrcp.pop 32.0
  %v91 = vmul.f32 %v44, %v90
  %v92 = vmul.f32 %v47, %v90
  %v93 = vmul.f32 %v50, %v90
  %v94 = vmul.f32 %v53, %v90
  %v95 = vmul.f32 %v56, %v90
  %v96 = vmul.f32 %v59, %v90
  %v97 = vmul.f32 %v62, %v90
  %v98 = vmul.f32 %v65, %v90
  %v99 = vmul.f32 %v68, %v90
  %v100 = vmul.f32 %v71, %v90
  %v101 = vmul.f32 %v74, %v90
  %v102 = vmul.f32 %v77, %v90
  %v103 = vmul.f32 %v80, %v90
  %v104 = vmul.f32 %v83, %v90
  %v105 = vmul.f32 %v86, %v90
  %v106 = vmul.f32 %v89, %v90
  %v107 = vmul.f32 %v24, %v24
  %v108 = vmul.f32 %v25, %v25
  %v109 = vmul.f32 %v26, %v26
  %v110 = vmul.f32 %v27, %v27
  %v111 = vmul.f32 %v28, %v28
  %v112 = vmul.f32 %v29, %v29
  %v113 = vmul.f32 %v30, %v30
  %v114 = vmul.f32 %v31, %v31
  %v115 = vmul.f32 %v32, %v32
  %v116 = vmul.f32 %v33, %v33
  %v117 = vmul.f32 %v34, %v34
  %v118 = vmul.f32 %v35, %v35
  %v119 = vmul.f32 %v36, %v36
  %v120 = vmul.f32 %v37, %v37
  %v121 = vmul.f32 %v38, %v38
  %v122 = vmul.f32 %v39, %v39
  %v123 = vsel %vm41, %v107, 0.0
  %124 = vadd.xlane.f32.xlu0 %v123
  %v125 = vpop.xlane.xlu0 %124
  %v126 = vsel %vm41, %v108, 0.0
  %127 = vadd.xlane.f32.xlu0 %v126
  %v128 = vpop.xlane.xlu0 %127
  %v129 = vsel %vm41, %v109, 0.0
  %130 = vadd.xlane.f32.xlu0 %v129
  %v131 = vpop.xlane.xlu0 %130
  %v132 = vsel %vm41, %v110, 0.0
  %133 = vadd.xlane.f32.xlu0 %v132
  %v134 = vpop.xlane.xlu0 %133
  %v135 = vsel %vm41, %v111, 0.0
  %136 = vadd.xlane.f32.xlu0 %v135
  %v137 = vpop.xlane.xlu0 %136
  %v138 = vsel %vm41, %v112, 0.0
  %139 = vadd.xlane.f32.xlu0 %v138
  %v140 = vpop.xlane.xlu0 %139
  %v141 = vsel %vm41, %v113, 0.0
  %142 = vadd.xlane.f32.xlu0 %v141
  %v143 = vpop.xlane.xlu0 %142
  %v144 = vsel %vm41, %v114, 0.0
  %145 = vadd.xlane.f32.xlu0 %v144
  %v146 = vpop.xlane.xlu0 %145
  %v147 = vsel %vm41, %v115, 0.0
  %148 = vadd.xlane.f32.xlu0 %v147
  %v149 = vpop.xlane.xlu0 %148
  %v150 = vsel %vm41, %v116, 0.0
  %151 = vadd.xlane.f32.xlu0 %v150
  %v152 = vpop.xlane.xlu0 %151
  %v153 = vsel %vm41, %v117, 0.0
  %154 = vadd.xlane.f32.xlu0 %v153
  %v155 = vpop.xlane.xlu0 %154
  %v156 = vsel %vm41, %v118, 0.0
  %157 = vadd.xlane.f32.xlu0 %v156
  %v158 = vpop.xlane.xlu0 %157
  %v159 = vsel %vm41, %v119, 0.0
  %160 = vadd.xlane.f32.xlu0 %v159
  %v161 = vpop.xlane.xlu0 %160
  %v162 = vsel %vm41, %v120, 0.0
  %163 = vadd.xlane.f32.xlu0 %v162
  %v164 = vpop.xlane.xlu0 %163
  %v165 = vsel %vm41, %v121, 0.0
  %166 = vadd.xlane.f32.xlu0 %v165
  %v167 = vpop.xlane.xlu0 %166
  %v168 = vsel %vm41, %v122, 0.0
  %169 = vadd.xlane.f32.xlu0 %v168
  %v170 = vpop.xlane.xlu0 %169
  %v171 = vmul.f32 %v125, %v90
  %v172 = vmul.f32 %v128, %v90
  %v173 = vmul.f32 %v131, %v90
  %v174 = vmul.f32 %v134, %v90
  %v175 = vmul.f32 %v137, %v90
  %v176 = vmul.f32 %v140, %v90
  %v177 = vmul.f32 %v143, %v90
  %v178 = vmul.f32 %v146, %v90
  %v179 = vmul.f32 %v149, %v90
  %v180 = vmul.f32 %v152, %v90
  %v181 = vmul.f32 %v155, %v90
  %v182 = vmul.f32 %v158, %v90
  %v183 = vmul.f32 %v161, %v90
  %v184 = vmul.f32 %v164, %v90
  %v185 = vmul.f32 %v167, %v90
  %v186 = vmul.f32 %v170, %v90
  %v187 = vmul.f32 %v91, %v91
  %v188 = vmul.f32 %v92, %v92
  %v189 = vmul.f32 %v93, %v93
  %v190 = vmul.f32 %v94, %v94
  %v191 = vmul.f32 %v95, %v95
  %v192 = vmul.f32 %v96, %v96
  %v193 = vmul.f32 %v97, %v97
  %v194 = vmul.f32 %v98, %v98
  %v195 = vmul.f32 %v99, %v99
  %v196 = vmul.f32 %v100, %v100
  %v197 = vmul.f32 %v101, %v101
  %v198 = vmul.f32 %v102, %v102
  %v199 = vmul.f32 %v103, %v103
  %v200 = vmul.f32 %v104, %v104
  %v201 = vmul.f32 %v105, %v105
  %v202 = vmul.f32 %v106, %v106
  %v203 = vsub.f32 %v171, %v187
  %v204 = vsub.f32 %v172, %v188
  %v205 = vsub.f32 %v173, %v189
  %v206 = vsub.f32 %v174, %v190
  %v207 = vsub.f32 %v175, %v191
  %v208 = vsub.f32 %v176, %v192
  %v209 = vsub.f32 %v177, %v193
  %v210 = vsub.f32 %v178, %v194
  %v211 = vsub.f32 %v179, %v195
  %v212 = vsub.f32 %v180, %v196
  %v213 = vsub.f32 %v181, %v197
  %v214 = vsub.f32 %v182, %v198
  %v215 = vsub.f32 %v183, %v199
  %v216 = vsub.f32 %v184, %v200
  %v217 = vsub.f32 %v185, %v201
  %v218 = vsub.f32 %v186, %v202
  %v219 = vsub.f32 %v24, %v91
  %v220 = vsub.f32 %v25, %v92
  %v221 = vsub.f32 %v26, %v93
  %v222 = vsub.f32 %v27, %v94
  %v223 = vsub.f32 %v28, %v95
  %v224 = vsub.f32 %v29, %v96
  %v225 = vsub.f32 %v30, %v97
  %v226 = vsub.f32 %v31, %v98
  %v227 = vsub.f32 %v32, %v99
  %v228 = vsub.f32 %v33, %v100
  %v229 = vsub.f32 %v34, %v101
  %v230 = vsub.f32 %v35, %v102
  %v231 = vsub.f32 %v36, %v103
  %v232 = vsub.f32 %v37, %v104
  %v233 = vsub.f32 %v38, %v105
  %v234 = vsub.f32 %v39, %v106
  %v235 = vadd.f32 %v203, 1e-06
  %v236 = vadd.f32 %v204, 1e-06
  %v237 = vadd.f32 %v205, 1e-06
  %v238 = vadd.f32 %v206, 1e-06
  %v239 = vadd.f32 %v207, 1e-06
  %v240 = vadd.f32 %v208, 1e-06
  %v241 = vadd.f32 %v209, 1e-06
  %v242 = vadd.f32 %v210, 1e-06
  %v243 = vadd.f32 %v211, 1e-06
  %v244 = vadd.f32 %v212, 1e-06
  %v245 = vadd.f32 %v213, 1e-06
  %v246 = vadd.f32 %v214, 1e-06
  %v247 = vadd.f32 %v215, 1e-06
  %v248 = vadd.f32 %v216, 1e-06
  %v249 = vadd.f32 %v217, 1e-06
  %v250 = vadd.f32 %v218, 1e-06
  %v251 = vrsqrt.pop %v235
  %v252 = vrsqrt.pop %v236
  %v253 = vrsqrt.pop %v237
  %v254 = vrsqrt.pop %v238
  %v255 = vrsqrt.pop %v239
  %v256 = vrsqrt.pop %v240
  %v257 = vrsqrt.pop %v241
  %v258 = vrsqrt.pop %v242
  %v259 = vrsqrt.pop %v243
  %v260 = vrsqrt.pop %v244
  %v261 = vrsqrt.pop %v245
  %v262 = vrsqrt.pop %v246
  %v263 = vrsqrt.pop %v247
  %v264 = vrsqrt.pop %v248
  %v265 = vrsqrt.pop %v249
  %v266 = vrsqrt.pop %v250
  %v267 = vmul.f32 %v219, %v251
  %v268 = vmul.f32 %v220, %v252
  %v269 = vmul.f32 %v221, %v253
  %v270 = vmul.f32 %v222, %v254
  %v271 = vmul.f32 %v223, %v255
  %v272 = vmul.f32 %v224, %v256
  %v273 = vmul.f32 %v225, %v257
  %v274 = vmul.f32 %v226, %v258
  %v275 = vmul.f32 %v227, %v259
  %v276 = vmul.f32 %v228, %v260
  %v277 = vmul.f32 %v229, %v261
  %v278 = vmul.f32 %v230, %v262
  %v279 = vmul.f32 %v231, %v263
  %v280 = vmul.f32 %v232, %v264
  %v281 = vmul.f32 %v233, %v265
  %v282 = vmul.f32 %v234, %v266
  %v283 = vlaneseq
  %v284 = vshrl.u32 %v283, 7
  %v285 = vsub.s32 0, %v284
  %v286 = vrot.slane %v40, %v285
  %v287 = vmul.f32 %v267, %v286
  %v288 = vmul.f32 %v268, %v286
  %v289 = vmul.f32 %v269, %v286
  %v290 = vmul.f32 %v270, %v286
  %v291 = vmul.f32 %v271, %v286
  %v292 = vmul.f32 %v272, %v286
  %v293 = vmul.f32 %v273, %v286
  %v294 = vmul.f32 %v274, %v286
  %v295 = vmul.f32 %v275, %v286
  %v296 = vmul.f32 %v276, %v286
  %v297 = vmul.f32 %v277, %v286
  %v298 = vmul.f32 %v278, %v286
  %v299 = vmul.f32 %v279, %v286
  %v300 = vmul.f32 %v280, %v286
  %v301 = vmul.f32 %v281, %v286
  %v302 = vmul.f32 %v282, %v286
  %v303 = vlaneseq
  %v304 = vshrl.u32 %v303, 7
  %v305 = vsub.s32 1, %v304
  %v306 = vrot.slane %v40, %v305
  %v307 = vadd.f32 %v287, %v306
  %v308 = vadd.f32 %v288, %v306
  %v309 = vadd.f32 %v289, %v306
  %v310 = vadd.f32 %v290, %v306
  %v311 = vadd.f32 %v291, %v306
  %v312 = vadd.f32 %v292, %v306
  %v313 = vadd.f32 %v293, %v306
  %v314 = vadd.f32 %v294, %v306
  %v315 = vadd.f32 %v295, %v306
  %v316 = vadd.f32 %v296, %v306
  %v317 = vadd.f32 %v297, %v306
  %v318 = vadd.f32 %v298, %v306
  %v319 = vadd.f32 %v299, %v306
  %v320 = vadd.f32 %v300, %v306
  %v321 = vadd.f32 %v301, %v306
  %v322 = vadd.f32 %v302, %v306
  %v323 = vpack.c.bf16 %v308, %v307
  %v324 = vpack.c.bf16 %v310, %v309
  %v325 = vpack.c.bf16 %v312, %v311
  %v326 = vpack.c.bf16 %v314, %v313
  %v327 = vpack.c.bf16 %v316, %v315
  %v328 = vpack.c.bf16 %v318, %v317
  %v329 = vpack.c.bf16 %v320, %v319
  %v330 = vpack.c.bf16 %v322, %v321
  %v331 = vld [vmem:[%s2] sm:$0xf]
  %v332 = vld [vmem:[%s2 + $0x4] sm:$0xf]
  %v333 = vld [vmem:[%s2 + $0x8] sm:$0xf]
  %v334 = vld [vmem:[%s2 + $0xc] sm:$0xf]
  %v335 = vlaneseq
  %v336 = vshrl.u32 %v335, 7
  %v337 = vsub.s32 4, %v336
  %v338 = vrot.slane %v40, %v337
  %v343 = vunpack.c.l.b16 %v331
  %v344 = vunpack.c.l.b16 %v332
  %v345 = vunpack.c.l.b16 %v333
  %v346 = vunpack.c.l.b16 %v334
  %v347 = vpack.c.b16 %v344, %v343
  %v348 = vpack.c.b16 %v346, %v345
  %v352 = vsel %vm41, %v323, 0
  %v355 = vsel %vm41, %v324, 0
  %v358 = vsel %vm41, %v325, 0
  %v361 = vsel %vm41, %v326, 0
  %v364 = vsel %vm41, %v327, 0
  %v367 = vsel %vm41, %v328, 0
  %v370 = vsel %vm41, %v329, 0
  %v373 = vsel %vm41, %v330, 0
  %375 = vmatprep.subr.bf16.mxu0 0
  %376 = vmatpush1.bf16.msra.mxu0 0
  %377 = vmatprep.subr.bf16.mxu0 0
  %378 = vmatpush1.bf16.msra.mxu0 0
  %379 = vmatprep.subr.bf16.mxu0 0
  %380 = vmatpush1.bf16.msra.mxu0 0
  %381 = vmatprep.subr.bf16.mxu0 0
  %382 = vmatpush1.bf16.msra.mxu0 0
  %383 = vmatprep.subr.bf16.mxu0 0
  %384 = vmatpush1.bf16.msra.mxu0 0
  %385 = vmatprep.subr.bf16.mxu0 0
  %386 = vmatpush1.bf16.msra.mxu0 0
  %387 = vmatprep.subr.bf16.mxu0 0
  %388 = vmatpush1.bf16.msra.mxu0 %v348
  %389 = vmatprep.subr.bf16.mxu0 0
  %390 = vmatpush1.bf16.msra.mxu0 %v347
  %391 = vmatprep.subr.bf16.mxu0 0
  %392 = vmatpush2.bf16.msra.mxu0 0
  %393 = vmatprep.subr.bf16.mxu0 0
  %394 = vmatpush2.bf16.msra.mxu0 0
  %395 = vmatprep.subr.bf16.mxu0 0
  %396 = vmatpush2.bf16.msra.mxu0 0
  %397 = vmatprep.subr.bf16.mxu0 0
  %398 = vmatpush2.bf16.msra.mxu0 0
  %399 = vmatprep.subr.bf16.mxu0 0
  %400 = vmatpush2.bf16.msra.mxu0 0
  %401 = vmatprep.subr.bf16.mxu0 0
  %402 = vmatpush2.bf16.msra.mxu0 0
  %403 = vmatprep.subr.bf16.mxu0 0
  %404 = vmatpush2.bf16.msra.mxu0 0
  %405 = vmatprep.subr.bf16.mxu0 0
  %406 = vmatpush2.bf16.msra.mxu0 0
  %407 = vmatprep.mubr.bf16.mxu0 0
  %408 = vmatmul.mubr.bf16.gmra.mxu0 %v352
  %v409 = vpop.f32.mrf.mxu0
  %v410 = vadd.f32 %v338, %v409
  %v411 = vpop.f32.mrf.mxu0
  %v412 = vpop.f32.mrf.mxu0
  %v413 = vadd.f32 %v338, %v412
  %v414 = vpop.f32.mrf.mxu0
  %415 = vmatprep.mubr.bf16.mxu0 0
  %416 = vmatmul.mubr.bf16.gmra.mxu0 %v355
  %v417 = vpop.f32.mrf.mxu0
  %v418 = vadd.f32 %v338, %v417
  %v419 = vpop.f32.mrf.mxu0
  %v420 = vpop.f32.mrf.mxu0
  %v421 = vadd.f32 %v338, %v420
  %v422 = vpop.f32.mrf.mxu0
  %423 = vmatprep.mubr.bf16.mxu0 0
  %424 = vmatmul.mubr.bf16.gmra.mxu0 %v358
  %v425 = vpop.f32.mrf.mxu0
  %v426 = vadd.f32 %v338, %v425
  %v427 = vpop.f32.mrf.mxu0
  %v428 = vpop.f32.mrf.mxu0
  %v429 = vadd.f32 %v338, %v428
  %v430 = vpop.f32.mrf.mxu0
  %431 = vmatprep.mubr.bf16.mxu0 0
  %432 = vmatmul.mubr.bf16.gmra.mxu0 %v361
  %v433 = vpop.f32.mrf.mxu0
  %v434 = vadd.f32 %v338, %v433
  %v435 = vpop.f32.mrf.mxu0
  %v436 = vpop.f32.mrf.mxu0
  %v437 = vadd.f32 %v338, %v436
  %v438 = vpop.f32.mrf.mxu0
  %439 = vmatprep.mubr.bf16.mxu0 0
  %440 = vmatmul.mubr.bf16.gmra.mxu0 %v364
  %v441 = vpop.f32.mrf.mxu0
  %v442 = vadd.f32 %v338, %v441
  %v443 = vpop.f32.mrf.mxu0
  %v444 = vpop.f32.mrf.mxu0
  %v445 = vadd.f32 %v338, %v444
  %v446 = vpop.f32.mrf.mxu0
  %447 = vmatprep.mubr.bf16.mxu0 0
  %448 = vmatmul.mubr.bf16.gmra.mxu0 %v367
  %v449 = vpop.f32.mrf.mxu0
  %v450 = vadd.f32 %v338, %v449
  %v451 = vpop.f32.mrf.mxu0
  %v452 = vpop.f32.mrf.mxu0
  %v453 = vadd.f32 %v338, %v452
  %v454 = vpop.f32.mrf.mxu0
  %455 = vmatprep.mubr.bf16.mxu0 0
  %456 = vmatmul.mubr.bf16.gmra.mxu0 %v370
  %v457 = vpop.f32.mrf.mxu0
  %v458 = vadd.f32 %v338, %v457
  %v459 = vpop.f32.mrf.mxu0
  %v460 = vpop.f32.mrf.mxu0
  %v461 = vadd.f32 %v338, %v460
  %v462 = vpop.f32.mrf.mxu0
  %463 = vmatprep.mubr.bf16.mxu0 0
  %464 = vmatmul.mubr.bf16.gmra.mxu0 %v373
  %v465 = vpop.f32.mrf.mxu0
  %v466 = vadd.f32 %v338, %v465
  %v467 = vpop.f32.mrf.mxu0
  %v468 = vpop.f32.mrf.mxu0
  %v469 = vadd.f32 %v338, %v468
  %v470 = vpop.f32.mrf.mxu0
  %471 = vdwg.mxu0
  %v472 = vpack.c.bf16 %v413, %v410
  %v473 = vpack.c.bf16 %v421, %v418
  %v474 = vpack.c.bf16 %v429, %v426
  %v475 = vpack.c.bf16 %v437, %v434
  %v476 = vpack.c.bf16 %v445, %v442
  %v477 = vpack.c.bf16 %v453, %v450
  %v478 = vpack.c.bf16 %v461, %v458
  %v479 = vpack.c.bf16 %v469, %v466
  %484 = vrot.lane.b32.xlu0 %v472, 96
  %v485 = vpop.permute.xlu0 %484
  %486 = vrot.lane.b32.xlu0 %v473, 96
  %v487 = vpop.permute.xlu0 %486
  %488 = vrot.lane.b32.xlu0 %v474, 96
  %v489 = vpop.permute.xlu0 %488
  %490 = vrot.lane.b32.xlu0 %v475, 96
  %v491 = vpop.permute.xlu0 %490
  %vm492 = vcmask 130048
  %v494 = vsel %vm492, %v472, 0
  %v497 = vsel %vm492, %v473, 0
  %v500 = vsel %vm492, %v474, 0
  %v503 = vsel %vm492, %v475, 0
  %v506 = vsel %vm492, %v485, 0
  %v509 = vsel %vm492, %v487, 0
  %v512 = vsel %vm492, %v489, 0
  %v515 = vsel %vm492, %v491, 0
  %517 = vmatprep.subr.bf16.mxu0 0
  %518 = vmatpush1.bf16.xpose.msra.mxu0 0
  %519 = vmatprep.subr.bf16.mxu0 0
  %520 = vmatpush1.bf16.xpose.msra.mxu0 0
  %521 = vmatprep.subr.bf16.mxu0 0
  %522 = vmatpush1.bf16.xpose.msra.mxu0 0
  %523 = vmatprep.subr.bf16.mxu0 0
  %524 = vmatpush1.bf16.xpose.msra.mxu0 0
  %525 = vmatprep.subr.bf16.mxu0 0
  %526 = vmatpush1.bf16.xpose.msra.mxu0 %v515
  %527 = vmatprep.subr.bf16.mxu0 0
  %528 = vmatpush1.bf16.xpose.msra.mxu0 %v512
  %529 = vmatprep.subr.bf16.mxu0 0
  %530 = vmatpush1.bf16.xpose.msra.mxu0 %v509
  %531 = vmatprep.subr.bf16.mxu0 0
  %532 = vmatpush1.bf16.xpose.msra.mxu0 %v506
  %533 = vmatprep.subr.bf16.mxu0 0
  %534 = vmatpush2.bf16.xpose.msra.mxu0 0
  %535 = vmatprep.subr.bf16.mxu0 0
  %536 = vmatpush2.bf16.xpose.msra.mxu0 0
  %537 = vmatprep.subr.bf16.mxu0 0
  %538 = vmatpush2.bf16.xpose.msra.mxu0 0
  %539 = vmatprep.subr.bf16.mxu0 0
  %540 = vmatpush2.bf16.xpose.msra.mxu0 0
  %541 = vmatprep.subr.bf16.mxu0 0
  %542 = vmatpush2.bf16.xpose.msra.mxu0 0
  %543 = vmatprep.subr.bf16.mxu0 0
  %544 = vmatpush2.bf16.xpose.msra.mxu0 0
  %545 = vmatprep.subr.bf16.mxu0 0
  %546 = vmatpush2.bf16.xpose.msra.mxu0 0
  %547 = vmatprep.subr.bf16.mxu0 0
  %548 = vmatpush2.bf16.xpose.msra.mxu0 0
  %549 = vmatprep.mubr.bf16.mxu0 0
  %550 = vmatmul.mubr.bf16.gmra.mxu0 %v494
  %v551 = vpop.f32.mrf.mxu0
  %v552 = vadd.f32 0.0, %v551
  %v553 = vpop.f32.mrf.mxu0
  %v554 = vpop.f32.mrf.mxu0
  %v555 = vadd.f32 0.0, %v554
  %v556 = vpop.f32.mrf.mxu0
  %557 = vmatprep.mubr.bf16.mxu0 0
  %558 = vmatmul.mubr.bf16.gmra.mxu0 %v497
  %v559 = vpop.f32.mrf.mxu0
  %v560 = vadd.f32 0.0, %v559
  %v561 = vpop.f32.mrf.mxu0
  %v562 = vpop.f32.mrf.mxu0
  %v563 = vadd.f32 0.0, %v562
  %v564 = vpop.f32.mrf.mxu0
  %565 = vmatprep.mubr.bf16.mxu0 0
  %566 = vmatmul.mubr.bf16.gmra.mxu0 %v500
  %v567 = vpop.f32.mrf.mxu0
  %v568 = vadd.f32 0.0, %v567
  %v569 = vpop.f32.mrf.mxu0
  %v570 = vpop.f32.mrf.mxu0
  %v571 = vadd.f32 0.0, %v570
  %v572 = vpop.f32.mrf.mxu0
  %573 = vmatprep.mubr.bf16.mxu0 0
  %574 = vmatmul.mubr.bf16.gmra.mxu0 %v503
  %v575 = vpop.f32.mrf.mxu0
  %v576 = vadd.f32 0.0, %v575
  %v577 = vpop.f32.mrf.mxu0
  %v578 = vpop.f32.mrf.mxu0
  %v579 = vadd.f32 0.0, %v578
  %v580 = vpop.f32.mrf.mxu0
  %581 = vdwg.mxu0
  %586 = vrot.lane.b32.xlu0 %v476, 96
  %v587 = vpop.permute.xlu0 %586
  %588 = vrot.lane.b32.xlu0 %v477, 96
  %v589 = vpop.permute.xlu0 %588
  %590 = vrot.lane.b32.xlu0 %v478, 96
  %v591 = vpop.permute.xlu0 %590
  %592 = vrot.lane.b32.xlu0 %v479, 96
  %v593 = vpop.permute.xlu0 %592
  %v595 = vsel %vm492, %v476, 0
  %v598 = vsel %vm492, %v477, 0
  %v601 = vsel %vm492, %v478, 0
  %v604 = vsel %vm492, %v479, 0
  %v607 = vsel %vm492, %v587, 0
  %v610 = vsel %vm492, %v589, 0
  %v613 = vsel %vm492, %v591, 0
  %v616 = vsel %vm492, %v593, 0
  %618 = vmatprep.subr.bf16.mxu0 0
  %619 = vmatpush1.bf16.xpose.msra.mxu0 0
  %620 = vmatprep.subr.bf16.mxu0 0
  %621 = vmatpush1.bf16.xpose.msra.mxu0 0
  %622 = vmatprep.subr.bf16.mxu0 0
  %623 = vmatpush1.bf16.xpose.msra.mxu0 0
  %624 = vmatprep.subr.bf16.mxu0 0
  %625 = vmatpush1.bf16.xpose.msra.mxu0 0
  %626 = vmatprep.subr.bf16.mxu0 0
  %627 = vmatpush1.bf16.xpose.msra.mxu0 %v616
  %628 = vmatprep.subr.bf16.mxu0 0
  %629 = vmatpush1.bf16.xpose.msra.mxu0 %v613
  %630 = vmatprep.subr.bf16.mxu0 0
  %631 = vmatpush1.bf16.xpose.msra.mxu0 %v610
  %632 = vmatprep.subr.bf16.mxu0 0
  %633 = vmatpush1.bf16.xpose.msra.mxu0 %v607
  %634 = vmatprep.subr.bf16.mxu0 0
  %635 = vmatpush2.bf16.xpose.msra.mxu0 0
  %636 = vmatprep.subr.bf16.mxu0 0
  %637 = vmatpush2.bf16.xpose.msra.mxu0 0
  %638 = vmatprep.subr.bf16.mxu0 0
  %639 = vmatpush2.bf16.xpose.msra.mxu0 0
  %640 = vmatprep.subr.bf16.mxu0 0
  %641 = vmatpush2.bf16.xpose.msra.mxu0 0
  %642 = vmatprep.subr.bf16.mxu0 0
  %643 = vmatpush2.bf16.xpose.msra.mxu0 0
  %644 = vmatprep.subr.bf16.mxu0 0
  %645 = vmatpush2.bf16.xpose.msra.mxu0 0
  %646 = vmatprep.subr.bf16.mxu0 0
  %647 = vmatpush2.bf16.xpose.msra.mxu0 0
  %648 = vmatprep.subr.bf16.mxu0 0
  %649 = vmatpush2.bf16.xpose.msra.mxu0 0
  %650 = vmatprep.mubr.bf16.mxu0 0
  %651 = vmatmul.mubr.bf16.gmra.mxu0 %v595
  %v652 = vpop.f32.mrf.mxu0
  %v653 = vadd.f32 0.0, %v652
  %v654 = vpop.f32.mrf.mxu0
  %v655 = vpop.f32.mrf.mxu0
  %v656 = vadd.f32 0.0, %v655
  %v657 = vpop.f32.mrf.mxu0
  %658 = vmatprep.mubr.bf16.mxu0 0
  %659 = vmatmul.mubr.bf16.gmra.mxu0 %v598
  %v660 = vpop.f32.mrf.mxu0
  %v661 = vadd.f32 0.0, %v660
  %v662 = vpop.f32.mrf.mxu0
  %v663 = vpop.f32.mrf.mxu0
  %v664 = vadd.f32 0.0, %v663
  %v665 = vpop.f32.mrf.mxu0
  %666 = vmatprep.mubr.bf16.mxu0 0
  %667 = vmatmul.mubr.bf16.gmra.mxu0 %v601
  %v668 = vpop.f32.mrf.mxu0
  %v669 = vadd.f32 0.0, %v668
  %v670 = vpop.f32.mrf.mxu0
  %v671 = vpop.f32.mrf.mxu0
  %v672 = vadd.f32 0.0, %v671
  %v673 = vpop.f32.mrf.mxu0
  %674 = vmatprep.mubr.bf16.mxu0 0
  %675 = vmatmul.mubr.bf16.gmra.mxu0 %v604
  %v676 = vpop.f32.mrf.mxu0
  %v677 = vadd.f32 0.0, %v676
  %v678 = vpop.f32.mrf.mxu0
  %v679 = vpop.f32.mrf.mxu0
  %v680 = vadd.f32 0.0, %v679
  %v681 = vpop.f32.mrf.mxu0
  %682 = vdwg.mxu0
  %vm683 = vcmask 523264
  %v684 = vsel %vm683, %v552, -inf
  %685 = vmax.xlane.f32.xlu0 %v684
  %v686 = vpop.xlane.xlu0 %685
  %v687 = vsel %vm683, %v555, -inf
  %688 = vmax.xlane.f32.xlu0 %v687
  %v689 = vpop.xlane.xlu0 %688
  %v690 = vsel %vm683, %v560, -inf
  %691 = vmax.xlane.f32.xlu0 %v690
  %v692 = vpop.xlane.xlu0 %691
  %v693 = vsel %vm683, %v563, -inf
  %694 = vmax.xlane.f32.xlu0 %v693
  %v695 = vpop.xlane.xlu0 %694
  %v696 = vsel %vm683, %v568, -inf
  %697 = vmax.xlane.f32.xlu0 %v696
  %v698 = vpop.xlane.xlu0 %697
  %v699 = vsel %vm683, %v571, -inf
  %700 = vmax.xlane.f32.xlu0 %v699
  %v701 = vpop.xlane.xlu0 %700
  %v702 = vsel %vm683, %v576, -inf
  %703 = vmax.xlane.f32.xlu0 %v702
  %v704 = vpop.xlane.xlu0 %703
  %v705 = vsel %vm683, %v579, -inf
  %706 = vmax.xlane.f32.xlu0 %v705
  %v707 = vpop.xlane.xlu0 %706
  %v708 = vsel %vm683, %v653, -inf
  %709 = vmax.xlane.f32.xlu0 %v708
  %v710 = vpop.xlane.xlu0 %709
  %v711 = vsel %vm683, %v656, -inf
  %712 = vmax.xlane.f32.xlu0 %v711
  %v713 = vpop.xlane.xlu0 %712
  %v714 = vsel %vm683, %v661, -inf
  %715 = vmax.xlane.f32.xlu0 %v714
  %v716 = vpop.xlane.xlu0 %715
  %v717 = vsel %vm683, %v664, -inf
  %718 = vmax.xlane.f32.xlu0 %v717
  %v719 = vpop.xlane.xlu0 %718
  %v720 = vsel %vm683, %v669, -inf
  %721 = vmax.xlane.f32.xlu0 %v720
  %v722 = vpop.xlane.xlu0 %721
  %v723 = vsel %vm683, %v672, -inf
  %724 = vmax.xlane.f32.xlu0 %v723
  %v725 = vpop.xlane.xlu0 %724
  %v726 = vsel %vm683, %v677, -inf
  %727 = vmax.xlane.f32.xlu0 %v726
  %v728 = vpop.xlane.xlu0 %727
  %v729 = vsel %vm683, %v680, -inf
  %730 = vmax.xlane.f32.xlu0 %v729
  %v731 = vpop.xlane.xlu0 %730
  %v732 = vsub.f32 %v552, %v686
  %v733 = vsub.f32 %v555, %v689
  %v734 = vsub.f32 %v560, %v692
  %v735 = vsub.f32 %v563, %v695
  %v736 = vsub.f32 %v568, %v698
  %v737 = vsub.f32 %v571, %v701
  %v738 = vsub.f32 %v576, %v704
  %v739 = vsub.f32 %v579, %v707
  %v740 = vsub.f32 %v653, %v710
  %v741 = vsub.f32 %v656, %v713
  %v742 = vsub.f32 %v661, %v716
  %v743 = vsub.f32 %v664, %v719
  %v744 = vsub.f32 %v669, %v722
  %v745 = vsub.f32 %v672, %v725
  %v746 = vsub.f32 %v677, %v728
  %v747 = vsub.f32 %v680, %v731
  %v748 = vmul.f32 %v732, 1.442695
  %v749 = vpow.pop %v748
  %v750 = vmul.f32 %v733, 1.442695
  %v751 = vpow.pop %v750
  %v752 = vmul.f32 %v734, 1.442695
  %v753 = vpow.pop %v752
  %v754 = vmul.f32 %v735, 1.442695
  %v755 = vpow.pop %v754
  %v756 = vmul.f32 %v736, 1.442695
  %v757 = vpow.pop %v756
  %v758 = vmul.f32 %v737, 1.442695
  %v759 = vpow.pop %v758
  %v760 = vmul.f32 %v738, 1.442695
  %v761 = vpow.pop %v760
  %v762 = vmul.f32 %v739, 1.442695
  %v763 = vpow.pop %v762
  %v764 = vmul.f32 %v740, 1.442695
  %v765 = vpow.pop %v764
  %v766 = vmul.f32 %v741, 1.442695
  %v767 = vpow.pop %v766
  %v768 = vmul.f32 %v742, 1.442695
  %v769 = vpow.pop %v768
  %v770 = vmul.f32 %v743, 1.442695
  %v771 = vpow.pop %v770
  %v772 = vmul.f32 %v744, 1.442695
  %v773 = vpow.pop %v772
  %v774 = vmul.f32 %v745, 1.442695
  %v775 = vpow.pop %v774
  %v776 = vmul.f32 %v746, 1.442695
  %v777 = vpow.pop %v776
  %v778 = vmul.f32 %v747, 1.442695
  %v779 = vpow.pop %v778
  %v780 = vsel %vm683, %v749, 0.0
  %781 = vadd.xlane.f32.xlu0 %v780
  %v782 = vpop.xlane.xlu0 %781
  %v783 = vsel %vm683, %v751, 0.0
  %784 = vadd.xlane.f32.xlu0 %v783
  %v785 = vpop.xlane.xlu0 %784
  %v786 = vsel %vm683, %v753, 0.0
  %787 = vadd.xlane.f32.xlu0 %v786
  %v788 = vpop.xlane.xlu0 %787
  %v789 = vsel %vm683, %v755, 0.0
  %790 = vadd.xlane.f32.xlu0 %v789
  %v791 = vpop.xlane.xlu0 %790
  %v792 = vsel %vm683, %v757, 0.0
  %793 = vadd.xlane.f32.xlu0 %v792
  %v794 = vpop.xlane.xlu0 %793
  %v795 = vsel %vm683, %v759, 0.0
  %796 = vadd.xlane.f32.xlu0 %v795
  %v797 = vpop.xlane.xlu0 %796
  %v798 = vsel %vm683, %v761, 0.0
  %799 = vadd.xlane.f32.xlu0 %v798
  %v800 = vpop.xlane.xlu0 %799
  %v801 = vsel %vm683, %v763, 0.0
  %802 = vadd.xlane.f32.xlu0 %v801
  %v803 = vpop.xlane.xlu0 %802
  %v804 = vsel %vm683, %v765, 0.0
  %805 = vadd.xlane.f32.xlu0 %v804
  %v806 = vpop.xlane.xlu0 %805
  %v807 = vsel %vm683, %v767, 0.0
  %808 = vadd.xlane.f32.xlu0 %v807
  %v809 = vpop.xlane.xlu0 %808
  %v810 = vsel %vm683, %v769, 0.0
  %811 = vadd.xlane.f32.xlu0 %v810
  %v812 = vpop.xlane.xlu0 %811
  %v813 = vsel %vm683, %v771, 0.0
  %814 = vadd.xlane.f32.xlu0 %v813
  %v815 = vpop.xlane.xlu0 %814
  %v816 = vsel %vm683, %v773, 0.0
  %817 = vadd.xlane.f32.xlu0 %v816
  %v818 = vpop.xlane.xlu0 %817
  %v819 = vsel %vm683, %v775, 0.0
  %820 = vadd.xlane.f32.xlu0 %v819
  %v821 = vpop.xlane.xlu0 %820
  %v822 = vsel %vm683, %v777, 0.0
  %823 = vadd.xlane.f32.xlu0 %v822
  %v824 = vpop.xlane.xlu0 %823
  %v825 = vsel %vm683, %v779, 0.0
  %826 = vadd.xlane.f32.xlu0 %v825
  %v827 = vpop.xlane.xlu0 %826
  %v828 = vrcp.pop %v782
  %v829 = vrcp.pop %v785
  %v830 = vrcp.pop %v788
  %v831 = vrcp.pop %v791
  %v832 = vrcp.pop %v794
  %v833 = vrcp.pop %v797
  %v834 = vrcp.pop %v800
  %v835 = vrcp.pop %v803
  %v836 = vrcp.pop %v806
  %v837 = vrcp.pop %v809
  %v838 = vrcp.pop %v812
  %v839 = vrcp.pop %v815
  %v840 = vrcp.pop %v818
  %v841 = vrcp.pop %v821
  %v842 = vrcp.pop %v824
  %v843 = vrcp.pop %v827
  %v844 = vmul.f32 %v749, %v828
  %v845 = vmul.f32 %v751, %v829
  %v846 = vmul.f32 %v753, %v830
  %v847 = vmul.f32 %v755, %v831
  %v848 = vmul.f32 %v757, %v832
  %v849 = vmul.f32 %v759, %v833
  %v850 = vmul.f32 %v761, %v834
  %v851 = vmul.f32 %v763, %v835
  %v852 = vmul.f32 %v765, %v836
  %v853 = vmul.f32 %v767, %v837
  %v854 = vmul.f32 %v769, %v838
  %v855 = vmul.f32 %v771, %v839
  %v856 = vmul.f32 %v773, %v840
  %v857 = vmul.f32 %v775, %v841
  %v858 = vmul.f32 %v777, %v842
  %v859 = vmul.f32 %v779, %v843
  %v860 = vpack.c.bf16 %v845, %v844
  %v861 = vpack.c.bf16 %v847, %v846
  %v862 = vpack.c.bf16 %v849, %v848
  %v863 = vpack.c.bf16 %v851, %v850
  %v864 = vpack.c.bf16 %v853, %v852
  %v865 = vpack.c.bf16 %v855, %v854
  %v866 = vpack.c.bf16 %v857, %v856
  %v867 = vpack.c.bf16 %v859, %v858
  %868 = vrot.lane.b32.xlu0 %v472, 64
  %v869 = vpop.permute.xlu0 %868
  %870 = vrot.lane.b32.xlu0 %v473, 64
  %v871 = vpop.permute.xlu0 %870
  %872 = vrot.lane.b32.xlu0 %v474, 64
  %v873 = vpop.permute.xlu0 %872
  %874 = vrot.lane.b32.xlu0 %v475, 64
  %v875 = vpop.permute.xlu0 %874
  %v881 = vsel %vm683, %v860, 0
  %v884 = vsel %vm683, %v861, 0
  %v887 = vsel %vm683, %v862, 0
  %v890 = vsel %vm683, %v863, 0
  %892 = vmatprep.subr.bf16.mxu0 0
  %893 = vmatpush1.bf16.msra.mxu0 0
  %894 = vmatprep.subr.bf16.mxu0 0
  %895 = vmatpush1.bf16.msra.mxu0 0
  %896 = vmatprep.subr.bf16.mxu0 0
  %897 = vmatpush1.bf16.msra.mxu0 0
  %898 = vmatprep.subr.bf16.mxu0 0
  %899 = vmatpush1.bf16.msra.mxu0 0
  %900 = vmatprep.subr.bf16.mxu0 0
  %901 = vmatpush1.bf16.msra.mxu0 %v875
  %902 = vmatprep.subr.bf16.mxu0 0
  %903 = vmatpush1.bf16.msra.mxu0 %v873
  %904 = vmatprep.subr.bf16.mxu0 0
  %905 = vmatpush1.bf16.msra.mxu0 %v871
  %906 = vmatprep.subr.bf16.mxu0 0
  %907 = vmatpush1.bf16.msra.mxu0 %v869
  %908 = vmatprep.subr.bf16.mxu0 0
  %909 = vmatpush2.bf16.msra.mxu0 0
  %910 = vmatprep.subr.bf16.mxu0 0
  %911 = vmatpush2.bf16.msra.mxu0 0
  %912 = vmatprep.subr.bf16.mxu0 0
  %913 = vmatpush2.bf16.msra.mxu0 0
  %914 = vmatprep.subr.bf16.mxu0 0
  %915 = vmatpush2.bf16.msra.mxu0 0
  %916 = vmatprep.subr.bf16.mxu0 0
  %917 = vmatpush2.bf16.msra.mxu0 0
  %918 = vmatprep.subr.bf16.mxu0 0
  %919 = vmatpush2.bf16.msra.mxu0 0
  %920 = vmatprep.subr.bf16.mxu0 0
  %921 = vmatpush2.bf16.msra.mxu0 0
  %922 = vmatprep.subr.bf16.mxu0 0
  %923 = vmatpush2.bf16.msra.mxu0 0
  %924 = vmatprep.mubr.bf16.mxu0 0
  %925 = vmatmul.mubr.bf16.gmra.mxu0 %v881
  %v926 = vpop.f32.mrf.mxu0
  %v927 = vadd.f32 %v410, %v926
  %v928 = vpop.f32.mrf.mxu0
  %v929 = vpop.f32.mrf.mxu0
  %v930 = vadd.f32 %v413, %v929
  %v931 = vpop.f32.mrf.mxu0
  %932 = vmatprep.mubr.bf16.mxu0 0
  %933 = vmatmul.mubr.bf16.gmra.mxu0 %v884
  %v934 = vpop.f32.mrf.mxu0
  %v935 = vadd.f32 %v418, %v934
  %v936 = vpop.f32.mrf.mxu0
  %v937 = vpop.f32.mrf.mxu0
  %v938 = vadd.f32 %v421, %v937
  %v939 = vpop.f32.mrf.mxu0
  %940 = vmatprep.mubr.bf16.mxu0 0
  %941 = vmatmul.mubr.bf16.gmra.mxu0 %v887
  %v942 = vpop.f32.mrf.mxu0
  %v943 = vadd.f32 %v426, %v942
  %v944 = vpop.f32.mrf.mxu0
  %v945 = vpop.f32.mrf.mxu0
  %v946 = vadd.f32 %v429, %v945
  %v947 = vpop.f32.mrf.mxu0
  %948 = vmatprep.mubr.bf16.mxu0 0
  %949 = vmatmul.mubr.bf16.gmra.mxu0 %v890
  %v950 = vpop.f32.mrf.mxu0
  %v951 = vadd.f32 %v434, %v950
  %v952 = vpop.f32.mrf.mxu0
  %v953 = vpop.f32.mrf.mxu0
  %v954 = vadd.f32 %v437, %v953
  %v955 = vpop.f32.mrf.mxu0
  %956 = vdwg.mxu0
  %957 = vrot.lane.b32.xlu0 %v476, 64
  %v958 = vpop.permute.xlu0 %957
  %959 = vrot.lane.b32.xlu0 %v477, 64
  %v960 = vpop.permute.xlu0 %959
  %961 = vrot.lane.b32.xlu0 %v478, 64
  %v962 = vpop.permute.xlu0 %961
  %963 = vrot.lane.b32.xlu0 %v479, 64
  %v964 = vpop.permute.xlu0 %963
  %v970 = vsel %vm683, %v864, 0
  %v973 = vsel %vm683, %v865, 0
  %v976 = vsel %vm683, %v866, 0
  %v979 = vsel %vm683, %v867, 0
  %981 = vmatprep.subr.bf16.mxu0 0
  %982 = vmatpush1.bf16.msra.mxu0 0
  %983 = vmatprep.subr.bf16.mxu0 0
  %984 = vmatpush1.bf16.msra.mxu0 0
  %985 = vmatprep.subr.bf16.mxu0 0
  %986 = vmatpush1.bf16.msra.mxu0 0
  %987 = vmatprep.subr.bf16.mxu0 0
  %988 = vmatpush1.bf16.msra.mxu0 0
  %989 = vmatprep.subr.bf16.mxu0 0
  %990 = vmatpush1.bf16.msra.mxu0 %v964
  %991 = vmatprep.subr.bf16.mxu0 0
  %992 = vmatpush1.bf16.msra.mxu0 %v962
  %993 = vmatprep.subr.bf16.mxu0 0
  %994 = vmatpush1.bf16.msra.mxu0 %v960
  %995 = vmatprep.subr.bf16.mxu0 0
  %996 = vmatpush1.bf16.msra.mxu0 %v958
  %997 = vmatprep.subr.bf16.mxu0 0
  %998 = vmatpush2.bf16.msra.mxu0 0
  %999 = vmatprep.subr.bf16.mxu0 0
  %1000 = vmatpush2.bf16.msra.mxu0 0
  %1001 = vmatprep.subr.bf16.mxu0 0
  %1002 = vmatpush2.bf16.msra.mxu0 0
  %1003 = vmatprep.subr.bf16.mxu0 0
  %1004 = vmatpush2.bf16.msra.mxu0 0
  %1005 = vmatprep.subr.bf16.mxu0 0
  %1006 = vmatpush2.bf16.msra.mxu0 0
  %1007 = vmatprep.subr.bf16.mxu0 0
  %1008 = vmatpush2.bf16.msra.mxu0 0
  %1009 = vmatprep.subr.bf16.mxu0 0
  %1010 = vmatpush2.bf16.msra.mxu0 0
  %1011 = vmatprep.subr.bf16.mxu0 0
  %1012 = vmatpush2.bf16.msra.mxu0 0
  %1013 = vmatprep.mubr.bf16.mxu0 0
  %1014 = vmatmul.mubr.bf16.gmra.mxu0 %v970
  %v1015 = vpop.f32.mrf.mxu0
  %v1016 = vadd.f32 %v442, %v1015
  %v1017 = vpop.f32.mrf.mxu0
  %v1018 = vpop.f32.mrf.mxu0
  %v1019 = vadd.f32 %v445, %v1018
  %v1020 = vpop.f32.mrf.mxu0
  %1021 = vmatprep.mubr.bf16.mxu0 0
  %1022 = vmatmul.mubr.bf16.gmra.mxu0 %v973
  %v1023 = vpop.f32.mrf.mxu0
  %v1024 = vadd.f32 %v450, %v1023
  %v1025 = vpop.f32.mrf.mxu0
  %v1026 = vpop.f32.mrf.mxu0
  %v1027 = vadd.f32 %v453, %v1026
  %v1028 = vpop.f32.mrf.mxu0
  %1029 = vmatprep.mubr.bf16.mxu0 0
  %1030 = vmatmul.mubr.bf16.gmra.mxu0 %v976
  %v1031 = vpop.f32.mrf.mxu0
  %v1032 = vadd.f32 %v458, %v1031
  %v1033 = vpop.f32.mrf.mxu0
  %v1034 = vpop.f32.mrf.mxu0
  %v1035 = vadd.f32 %v461, %v1034
  %v1036 = vpop.f32.mrf.mxu0
  %1037 = vmatprep.mubr.bf16.mxu0 0
  %1038 = vmatmul.mubr.bf16.gmra.mxu0 %v979
  %v1039 = vpop.f32.mrf.mxu0
  %v1040 = vadd.f32 %v466, %v1039
  %v1041 = vpop.f32.mrf.mxu0
  %v1042 = vpop.f32.mrf.mxu0
  %v1043 = vadd.f32 %v469, %v1042
  %v1044 = vpop.f32.mrf.mxu0
  %1045 = vdwg.mxu0
  %v1046 = vpack.c.bf16 %v930, %v927
  %v1047 = vpack.c.bf16 %v938, %v935
  %v1048 = vpack.c.bf16 %v946, %v943
  %v1049 = vpack.c.bf16 %v954, %v951
  %v1050 = vpack.c.bf16 %v1019, %v1016
  %v1051 = vpack.c.bf16 %v1027, %v1024
  %v1052 = vpack.c.bf16 %v1035, %v1032
  %v1053 = vpack.c.bf16 %v1043, %v1040
  %1054 = vrot.lane.b32.xlu0 %v472, 112
  %v1055 = vpop.permute.xlu0 %1054
  %1056 = vrot.lane.b32.xlu0 %v473, 112
  %v1057 = vpop.permute.xlu0 %1056
  %1058 = vrot.lane.b32.xlu0 %v474, 112
  %v1059 = vpop.permute.xlu0 %1058
  %1060 = vrot.lane.b32.xlu0 %v475, 112
  %v1061 = vpop.permute.xlu0 %1060
  %1062 = vrot.lane.b32.xlu0 %v472, 80
  %v1063 = vpop.permute.xlu0 %1062
  %1064 = vrot.lane.b32.xlu0 %v473, 80
  %v1065 = vpop.permute.xlu0 %1064
  %1066 = vrot.lane.b32.xlu0 %v474, 80
  %v1067 = vpop.permute.xlu0 %1066
  %1068 = vrot.lane.b32.xlu0 %v475, 80
  %v1069 = vpop.permute.xlu0 %1068
  %v1071 = vsel %vm492, %v1055, 0
  %v1074 = vsel %vm492, %v1057, 0
  %v1077 = vsel %vm492, %v1059, 0
  %v1080 = vsel %vm492, %v1061, 0
  %v1083 = vsel %vm492, %v1063, 0
  %v1086 = vsel %vm492, %v1065, 0
  %v1089 = vsel %vm492, %v1067, 0
  %v1092 = vsel %vm492, %v1069, 0
  %1094 = vmatprep.subr.bf16.mxu0 0
  %1095 = vmatpush1.bf16.xpose.msra.mxu0 0
  %1096 = vmatprep.subr.bf16.mxu0 0
  %1097 = vmatpush1.bf16.xpose.msra.mxu0 0
  %1098 = vmatprep.subr.bf16.mxu0 0
  %1099 = vmatpush1.bf16.xpose.msra.mxu0 0
  %1100 = vmatprep.subr.bf16.mxu0 0
  %1101 = vmatpush1.bf16.xpose.msra.mxu0 0
  %1102 = vmatprep.subr.bf16.mxu0 0
  %1103 = vmatpush1.bf16.xpose.msra.mxu0 %v1092
  %1104 = vmatprep.subr.bf16.mxu0 0
  %1105 = vmatpush1.bf16.xpose.msra.mxu0 %v1089
  %1106 = vmatprep.subr.bf16.mxu0 0
  %1107 = vmatpush1.bf16.xpose.msra.mxu0 %v1086
  %1108 = vmatprep.subr.bf16.mxu0 0
  %1109 = vmatpush1.bf16.xpose.msra.mxu0 %v1083
  %1110 = vmatprep.subr.bf16.mxu0 0
  %1111 = vmatpush2.bf16.xpose.msra.mxu0 0
  %1112 = vmatprep.subr.bf16.mxu0 0
  %1113 = vmatpush2.bf16.xpose.msra.mxu0 0
  %1114 = vmatprep.subr.bf16.mxu0 0
  %1115 = vmatpush2.bf16.xpose.msra.mxu0 0
  %1116 = vmatprep.subr.bf16.mxu0 0
  %1117 = vmatpush2.bf16.xpose.msra.mxu0 0
  %1118 = vmatprep.subr.bf16.mxu0 0
  %1119 = vmatpush2.bf16.xpose.msra.mxu0 0
  %1120 = vmatprep.subr.bf16.mxu0 0
  %1121 = vmatpush2.bf16.xpose.msra.mxu0 0
  %1122 = vmatprep.subr.bf16.mxu0 0
  %1123 = vmatpush2.bf16.xpose.msra.mxu0 0
  %1124 = vmatprep.subr.bf16.mxu0 0
  %1125 = vmatpush2.bf16.xpose.msra.mxu0 0
  %1126 = vmatprep.mubr.bf16.mxu0 0
  %1127 = vmatmul.mubr.bf16.gmra.mxu0 %v1071
  %v1128 = vpop.f32.mrf.mxu0
  %v1129 = vadd.f32 0.0, %v1128
  %v1130 = vpop.f32.mrf.mxu0
  %v1131 = vpop.f32.mrf.mxu0
  %v1132 = vadd.f32 0.0, %v1131
  %v1133 = vpop.f32.mrf.mxu0
  %1134 = vmatprep.mubr.bf16.mxu0 0
  %1135 = vmatmul.mubr.bf16.gmra.mxu0 %v1074
  %v1136 = vpop.f32.mrf.mxu0
  %v1137 = vadd.f32 0.0, %v1136
  %v1138 = vpop.f32.mrf.mxu0
  %v1139 = vpop.f32.mrf.mxu0
  %v1140 = vadd.f32 0.0, %v1139
  %v1141 = vpop.f32.mrf.mxu0
  %1142 = vmatprep.mubr.bf16.mxu0 0
  %1143 = vmatmul.mubr.bf16.gmra.mxu0 %v1077
  %v1144 = vpop.f32.mrf.mxu0
  %v1145 = vadd.f32 0.0, %v1144
  %v1146 = vpop.f32.mrf.mxu0
  %v1147 = vpop.f32.mrf.mxu0
  %v1148 = vadd.f32 0.0, %v1147
  %v1149 = vpop.f32.mrf.mxu0
  %1150 = vmatprep.mubr.bf16.mxu0 0
  %1151 = vmatmul.mubr.bf16.gmra.mxu0 %v1080
  %v1152 = vpop.f32.mrf.mxu0
  %v1153 = vadd.f32 0.0, %v1152
  %v1154 = vpop.f32.mrf.mxu0
  %v1155 = vpop.f32.mrf.mxu0
  %v1156 = vadd.f32 0.0, %v1155
  %v1157 = vpop.f32.mrf.mxu0
  %1158 = vdwg.mxu0
  %1159 = vrot.lane.b32.xlu0 %v476, 112
  %v1160 = vpop.permute.xlu0 %1159
  %1161 = vrot.lane.b32.xlu0 %v477, 112
  %v1162 = vpop.permute.xlu0 %1161
  %1163 = vrot.lane.b32.xlu0 %v478, 112
  %v1164 = vpop.permute.xlu0 %1163
  %1165 = vrot.lane.b32.xlu0 %v479, 112
  %v1166 = vpop.permute.xlu0 %1165
  %1167 = vrot.lane.b32.xlu0 %v476, 80
  %v1168 = vpop.permute.xlu0 %1167
  %1169 = vrot.lane.b32.xlu0 %v477, 80
  %v1170 = vpop.permute.xlu0 %1169
  %1171 = vrot.lane.b32.xlu0 %v478, 80
  %v1172 = vpop.permute.xlu0 %1171
  %1173 = vrot.lane.b32.xlu0 %v479, 80
  %v1174 = vpop.permute.xlu0 %1173
  %v1176 = vsel %vm492, %v1160, 0
  %v1179 = vsel %vm492, %v1162, 0
  %v1182 = vsel %vm492, %v1164, 0
  %v1185 = vsel %vm492, %v1166, 0
  %v1188 = vsel %vm492, %v1168, 0
  %v1191 = vsel %vm492, %v1170, 0
  %v1194 = vsel %vm492, %v1172, 0
  %v1197 = vsel %vm492, %v1174, 0
  %1199 = vmatprep.subr.bf16.mxu0 0
  %1200 = vmatpush1.bf16.xpose.msra.mxu0 0
  %1201 = vmatprep.subr.bf16.mxu0 0
  %1202 = vmatpush1.bf16.xpose.msra.mxu0 0
  %1203 = vmatprep.subr.bf16.mxu0 0
  %1204 = vmatpush1.bf16.xpose.msra.mxu0 0
  %1205 = vmatprep.subr.bf16.mxu0 0
  %1206 = vmatpush1.bf16.xpose.msra.mxu0 0
  %1207 = vmatprep.subr.bf16.mxu0 0
  %1208 = vmatpush1.bf16.xpose.msra.mxu0 %v1197
  %1209 = vmatprep.subr.bf16.mxu0 0
  %1210 = vmatpush1.bf16.xpose.msra.mxu0 %v1194
  %1211 = vmatprep.subr.bf16.mxu0 0
  %1212 = vmatpush1.bf16.xpose.msra.mxu0 %v1191
  %1213 = vmatprep.subr.bf16.mxu0 0
  %1214 = vmatpush1.bf16.xpose.msra.mxu0 %v1188
  %1215 = vmatprep.subr.bf16.mxu0 0
  %1216 = vmatpush2.bf16.xpose.msra.mxu0 0
  %1217 = vmatprep.subr.bf16.mxu0 0
  %1218 = vmatpush2.bf16.xpose.msra.mxu0 0
  %1219 = vmatprep.subr.bf16.mxu0 0
  %1220 = vmatpush2.bf16.xpose.msra.mxu0 0
  %1221 = vmatprep.subr.bf16.mxu0 0
  %1222 = vmatpush2.bf16.xpose.msra.mxu0 0
  %1223 = vmatprep.subr.bf16.mxu0 0
  %1224 = vmatpush2.bf16.xpose.msra.mxu0 0
  %1225 = vmatprep.subr.bf16.mxu0 0
  %1226 = vmatpush2.bf16.xpose.msra.mxu0 0
  %1227 = vmatprep.subr.bf16.mxu0 0
  %1228 = vmatpush2.bf16.xpose.msra.mxu0 0
  %1229 = vmatprep.subr.bf16.mxu0 0
  %1230 = vmatpush2.bf16.xpose.msra.mxu0 0
  %1231 = vmatprep.mubr.bf16.mxu0 0
  %1232 = vmatmul.mubr.bf16.gmra.mxu0 %v1176
  %v1233 = vpop.f32.mrf.mxu0
  %v1234 = vadd.f32 0.0, %v1233
  %v1235 = vpop.f32.mrf.mxu0
  %v1236 = vpop.f32.mrf.mxu0
  %v1237 = vadd.f32 0.0, %v1236
  %v1238 = vpop.f32.mrf.mxu0
  %1239 = vmatprep.mubr.bf16.mxu0 0
  %1240 = vmatmul.mubr.bf16.gmra.mxu0 %v1179
  %v1241 = vpop.f32.mrf.mxu0
  %v1242 = vadd.f32 0.0, %v1241
  %v1243 = vpop.f32.mrf.mxu0
  %v1244 = vpop.f32.mrf.mxu0
  %v1245 = vadd.f32 0.0, %v1244
  %v1246 = vpop.f32.mrf.mxu0
  %1247 = vmatprep.mubr.bf16.mxu0 0
  %1248 = vmatmul.mubr.bf16.gmra.mxu0 %v1182
  %v1249 = vpop.f32.mrf.mxu0
  %v1250 = vadd.f32 0.0, %v1249
  %v1251 = vpop.f32.mrf.mxu0
  %v1252 = vpop.f32.mrf.mxu0
  %v1253 = vadd.f32 0.0, %v1252
  %v1254 = vpop.f32.mrf.mxu0
  %1255 = vmatprep.mubr.bf16.mxu0 0
  %1256 = vmatmul.mubr.bf16.gmra.mxu0 %v1185
  %v1257 = vpop.f32.mrf.mxu0
  %v1258 = vadd.f32 0.0, %v1257
  %v1259 = vpop.f32.mrf.mxu0
  %v1260 = vpop.f32.mrf.mxu0
  %v1261 = vadd.f32 0.0, %v1260
  %v1262 = vpop.f32.mrf.mxu0
  %1263 = vdwg.mxu0
  %v1264 = vsel %vm683, %v1129, -inf
  %1265 = vmax.xlane.f32.xlu0 %v1264
  %v1266 = vpop.xlane.xlu0 %1265
  %v1267 = vsel %vm683, %v1132, -inf
  %1268 = vmax.xlane.f32.xlu0 %v1267
  %v1269 = vpop.xlane.xlu0 %1268
  %v1270 = vsel %vm683, %v1137, -inf
  %1271 = vmax.xlane.f32.xlu0 %v1270
  %v1272 = vpop.xlane.xlu0 %1271
  %v1273 = vsel %vm683, %v1140, -inf
  %1274 = vmax.xlane.f32.xlu0 %v1273
  %v1275 = vpop.xlane.xlu0 %1274
  %v1276 = vsel %vm683, %v1145, -inf
  %1277 = vmax.xlane.f32.xlu0 %v1276
  %v1278 = vpop.xlane.xlu0 %1277
  %v1279 = vsel %vm683, %v1148, -inf
  %1280 = vmax.xlane.f32.xlu0 %v1279
  %v1281 = vpop.xlane.xlu0 %1280
  %v1282 = vsel %vm683, %v1153, -inf
  %1283 = vmax.xlane.f32.xlu0 %v1282
  %v1284 = vpop.xlane.xlu0 %1283
  %v1285 = vsel %vm683, %v1156, -inf
  %1286 = vmax.xlane.f32.xlu0 %v1285
  %v1287 = vpop.xlane.xlu0 %1286
  %v1288 = vsel %vm683, %v1234, -inf
  %1289 = vmax.xlane.f32.xlu0 %v1288
  %v1290 = vpop.xlane.xlu0 %1289
  %v1291 = vsel %vm683, %v1237, -inf
  %1292 = vmax.xlane.f32.xlu0 %v1291
  %v1293 = vpop.xlane.xlu0 %1292
  %v1294 = vsel %vm683, %v1242, -inf
  %1295 = vmax.xlane.f32.xlu0 %v1294
  %v1296 = vpop.xlane.xlu0 %1295
  %v1297 = vsel %vm683, %v1245, -inf
  %1298 = vmax.xlane.f32.xlu0 %v1297
  %v1299 = vpop.xlane.xlu0 %1298
  %v1300 = vsel %vm683, %v1250, -inf
  %1301 = vmax.xlane.f32.xlu0 %v1300
  %v1302 = vpop.xlane.xlu0 %1301
  %v1303 = vsel %vm683, %v1253, -inf
  %1304 = vmax.xlane.f32.xlu0 %v1303
  %v1305 = vpop.xlane.xlu0 %1304
  %v1306 = vsel %vm683, %v1258, -inf
  %1307 = vmax.xlane.f32.xlu0 %v1306
  %v1308 = vpop.xlane.xlu0 %1307
  %v1309 = vsel %vm683, %v1261, -inf
  %1310 = vmax.xlane.f32.xlu0 %v1309
  %v1311 = vpop.xlane.xlu0 %1310
  %v1312 = vsub.f32 %v1129, %v1266
  %v1313 = vsub.f32 %v1132, %v1269
  %v1314 = vsub.f32 %v1137, %v1272
  %v1315 = vsub.f32 %v1140, %v1275
  %v1316 = vsub.f32 %v1145, %v1278
  %v1317 = vsub.f32 %v1148, %v1281
  %v1318 = vsub.f32 %v1153, %v1284
  %v1319 = vsub.f32 %v1156, %v1287
  %v1320 = vsub.f32 %v1234, %v1290
  %v1321 = vsub.f32 %v1237, %v1293
  %v1322 = vsub.f32 %v1242, %v1296
  %v1323 = vsub.f32 %v1245, %v1299
  %v1324 = vsub.f32 %v1250, %v1302
  %v1325 = vsub.f32 %v1253, %v1305
  %v1326 = vsub.f32 %v1258, %v1308
  %v1327 = vsub.f32 %v1261, %v1311
  %v1328 = vmul.f32 %v1312, 1.442695
  %v1329 = vpow.pop %v1328
  %v1330 = vmul.f32 %v1313, 1.442695
  %v1331 = vpow.pop %v1330
  %v1332 = vmul.f32 %v1314, 1.442695
  %v1333 = vpow.pop %v1332
  %v1334 = vmul.f32 %v1315, 1.442695
  %v1335 = vpow.pop %v1334
  %v1336 = vmul.f32 %v1316, 1.442695
  %v1337 = vpow.pop %v1336
  %v1338 = vmul.f32 %v1317, 1.442695
  %v1339 = vpow.pop %v1338
  %v1340 = vmul.f32 %v1318, 1.442695
  %v1341 = vpow.pop %v1340
  %v1342 = vmul.f32 %v1319, 1.442695
  %v1343 = vpow.pop %v1342
  %v1344 = vmul.f32 %v1320, 1.442695
  %v1345 = vpow.pop %v1344
  %v1346 = vmul.f32 %v1321, 1.442695
  %v1347 = vpow.pop %v1346
  %v1348 = vmul.f32 %v1322, 1.442695
  %v1349 = vpow.pop %v1348
  %v1350 = vmul.f32 %v1323, 1.442695
  %v1351 = vpow.pop %v1350
  %v1352 = vmul.f32 %v1324, 1.442695
  %v1353 = vpow.pop %v1352
  %v1354 = vmul.f32 %v1325, 1.442695
  %v1355 = vpow.pop %v1354
  %v1356 = vmul.f32 %v1326, 1.442695
  %v1357 = vpow.pop %v1356
  %v1358 = vmul.f32 %v1327, 1.442695
  %v1359 = vpow.pop %v1358
  %v1360 = vsel %vm683, %v1329, 0.0
  %1361 = vadd.xlane.f32.xlu0 %v1360
  %v1362 = vpop.xlane.xlu0 %1361
  %v1363 = vsel %vm683, %v1331, 0.0
  %1364 = vadd.xlane.f32.xlu0 %v1363
  %v1365 = vpop.xlane.xlu0 %1364
  %v1366 = vsel %vm683, %v1333, 0.0
  %1367 = vadd.xlane.f32.xlu0 %v1366
  %v1368 = vpop.xlane.xlu0 %1367
  %v1369 = vsel %vm683, %v1335, 0.0
  %1370 = vadd.xlane.f32.xlu0 %v1369
  %v1371 = vpop.xlane.xlu0 %1370
  %v1372 = vsel %vm683, %v1337, 0.0
  %1373 = vadd.xlane.f32.xlu0 %v1372
  %v1374 = vpop.xlane.xlu0 %1373
  %v1375 = vsel %vm683, %v1339, 0.0
  %1376 = vadd.xlane.f32.xlu0 %v1375
  %v1377 = vpop.xlane.xlu0 %1376
  %v1378 = vsel %vm683, %v1341, 0.0
  %1379 = vadd.xlane.f32.xlu0 %v1378
  %v1380 = vpop.xlane.xlu0 %1379
  %v1381 = vsel %vm683, %v1343, 0.0
  %1382 = vadd.xlane.f32.xlu0 %v1381
  %v1383 = vpop.xlane.xlu0 %1382
  %v1384 = vsel %vm683, %v1345, 0.0
  %1385 = vadd.xlane.f32.xlu0 %v1384
  %v1386 = vpop.xlane.xlu0 %1385
  %v1387 = vsel %vm683, %v1347, 0.0
  %1388 = vadd.xlane.f32.xlu0 %v1387
  %v1389 = vpop.xlane.xlu0 %1388
  %v1390 = vsel %vm683, %v1349, 0.0
  %1391 = vadd.xlane.f32.xlu0 %v1390
  %v1392 = vpop.xlane.xlu0 %1391
  %v1393 = vsel %vm683, %v1351, 0.0
  %1394 = vadd.xlane.f32.xlu0 %v1393
  %v1395 = vpop.xlane.xlu0 %1394
  %v1396 = vsel %vm683, %v1353, 0.0
  %1397 = vadd.xlane.f32.xlu0 %v1396
  %v1398 = vpop.xlane.xlu0 %1397
  %v1399 = vsel %vm683, %v1355, 0.0
  %1400 = vadd.xlane.f32.xlu0 %v1399
  %v1401 = vpop.xlane.xlu0 %1400
  %v1402 = vsel %vm683, %v1357, 0.0
  %1403 = vadd.xlane.f32.xlu0 %v1402
  %v1404 = vpop.xlane.xlu0 %1403
  %v1405 = vsel %vm683, %v1359, 0.0
  %1406 = vadd.xlane.f32.xlu0 %v1405
  %v1407 = vpop.xlane.xlu0 %1406
  %v1408 = vrcp.pop %v1362
  %v1409 = vrcp.pop %v1365
  %v1410 = vrcp.pop %v1368
  %v1411 = vrcp.pop %v1371
  %v1412 = vrcp.pop %v1374
  %v1413 = vrcp.pop %v1377
  %v1414 = vrcp.pop %v1380
  %v1415 = vrcp.pop %v1383
  %v1416 = vrcp.pop %v1386
  %v1417 = vrcp.pop %v1389
  %v1418 = vrcp.pop %v1392
  %v1419 = vrcp.pop %v1395
  %v1420 = vrcp.pop %v1398
  %v1421 = vrcp.pop %v1401
  %v1422 = vrcp.pop %v1404
  %v1423 = vrcp.pop %v1407
  %v1424 = vmul.f32 %v1329, %v1408
  %v1425 = vmul.f32 %v1331, %v1409
  %v1426 = vmul.f32 %v1333, %v1410
  %v1427 = vmul.f32 %v1335, %v1411
  %v1428 = vmul.f32 %v1337, %v1412
  %v1429 = vmul.f32 %v1339, %v1413
  %v1430 = vmul.f32 %v1341, %v1414
  %v1431 = vmul.f32 %v1343, %v1415
  %v1432 = vmul.f32 %v1345, %v1416
  %v1433 = vmul.f32 %v1347, %v1417
  %v1434 = vmul.f32 %v1349, %v1418
  %v1435 = vmul.f32 %v1351, %v1419
  %v1436 = vmul.f32 %v1353, %v1420
  %v1437 = vmul.f32 %v1355, %v1421
  %v1438 = vmul.f32 %v1357, %v1422
  %v1439 = vmul.f32 %v1359, %v1423
  %v1440 = vpack.c.bf16 %v1425, %v1424
  %v1441 = vpack.c.bf16 %v1427, %v1426
  %v1442 = vpack.c.bf16 %v1429, %v1428
  %v1443 = vpack.c.bf16 %v1431, %v1430
  %v1444 = vpack.c.bf16 %v1433, %v1432
  %v1445 = vpack.c.bf16 %v1435, %v1434
  %v1446 = vpack.c.bf16 %v1437, %v1436
  %v1447 = vpack.c.bf16 %v1439, %v1438
  %1448 = vrot.lane.b32.xlu0 %v472, 48
  %v1449 = vpop.permute.xlu0 %1448
  %1450 = vrot.lane.b32.xlu0 %v473, 48
  %v1451 = vpop.permute.xlu0 %1450
  %1452 = vrot.lane.b32.xlu0 %v474, 48
  %v1453 = vpop.permute.xlu0 %1452
  %1454 = vrot.lane.b32.xlu0 %v475, 48
  %v1455 = vpop.permute.xlu0 %1454
  %1468 = vrot.lane.b32.xlu0 %v410, 112
  %v1469 = vpop.permute.xlu0 %1468
  %1470 = vrot.lane.b32.xlu0 %v413, 112
  %v1471 = vpop.permute.xlu0 %1470
  %1472 = vrot.lane.b32.xlu0 %v418, 112
  %v1473 = vpop.permute.xlu0 %1472
  %1474 = vrot.lane.b32.xlu0 %v421, 112
  %v1475 = vpop.permute.xlu0 %1474
  %1476 = vrot.lane.b32.xlu0 %v426, 112
  %v1477 = vpop.permute.xlu0 %1476
  %1478 = vrot.lane.b32.xlu0 %v429, 112
  %v1479 = vpop.permute.xlu0 %1478
  %1480 = vrot.lane.b32.xlu0 %v434, 112
  %v1481 = vpop.permute.xlu0 %1480
  %1482 = vrot.lane.b32.xlu0 %v437, 112
  %v1483 = vpop.permute.xlu0 %1482
  %v1493 = vsel %vm683, %v1440, 0
  %v1496 = vsel %vm683, %v1441, 0
  %v1499 = vsel %vm683, %v1442, 0
  %v1502 = vsel %vm683, %v1443, 0
  %1504 = vmatprep.subr.bf16.mxu0 0
  %1505 = vmatpush1.bf16.msra.mxu0 0
  %1506 = vmatprep.subr.bf16.mxu0 0
  %1507 = vmatpush1.bf16.msra.mxu0 0
  %1508 = vmatprep.subr.bf16.mxu0 0
  %1509 = vmatpush1.bf16.msra.mxu0 0
  %1510 = vmatprep.subr.bf16.mxu0 0
  %1511 = vmatpush1.bf16.msra.mxu0 0
  %1512 = vmatprep.subr.bf16.mxu0 0
  %1513 = vmatpush1.bf16.msra.mxu0 %v1455
  %1514 = vmatprep.subr.bf16.mxu0 0
  %1515 = vmatpush1.bf16.msra.mxu0 %v1453
  %1516 = vmatprep.subr.bf16.mxu0 0
  %1517 = vmatpush1.bf16.msra.mxu0 %v1451
  %1518 = vmatprep.subr.bf16.mxu0 0
  %1519 = vmatpush1.bf16.msra.mxu0 %v1449
  %1520 = vmatprep.subr.bf16.mxu0 0
  %1521 = vmatpush2.bf16.msra.mxu0 0
  %1522 = vmatprep.subr.bf16.mxu0 0
  %1523 = vmatpush2.bf16.msra.mxu0 0
  %1524 = vmatprep.subr.bf16.mxu0 0
  %1525 = vmatpush2.bf16.msra.mxu0 0
  %1526 = vmatprep.subr.bf16.mxu0 0
  %1527 = vmatpush2.bf16.msra.mxu0 0
  %1528 = vmatprep.subr.bf16.mxu0 0
  %1529 = vmatpush2.bf16.msra.mxu0 0
  %1530 = vmatprep.subr.bf16.mxu0 0
  %1531 = vmatpush2.bf16.msra.mxu0 0
  %1532 = vmatprep.subr.bf16.mxu0 0
  %1533 = vmatpush2.bf16.msra.mxu0 0
  %1534 = vmatprep.subr.bf16.mxu0 0
  %1535 = vmatpush2.bf16.msra.mxu0 0
  %1536 = vmatprep.mubr.bf16.mxu0 0
  %1537 = vmatmul.mubr.bf16.gmra.mxu0 %v1493
  %v1538 = vpop.f32.mrf.mxu0
  %v1539 = vadd.f32 %v1469, %v1538
  %v1540 = vpop.f32.mrf.mxu0
  %v1541 = vpop.f32.mrf.mxu0
  %v1542 = vadd.f32 %v1471, %v1541
  %v1543 = vpop.f32.mrf.mxu0
  %1544 = vmatprep.mubr.bf16.mxu0 0
  %1545 = vmatmul.mubr.bf16.gmra.mxu0 %v1496
  %v1546 = vpop.f32.mrf.mxu0
  %v1547 = vadd.f32 %v1473, %v1546
  %v1548 = vpop.f32.mrf.mxu0
  %v1549 = vpop.f32.mrf.mxu0
  %v1550 = vadd.f32 %v1475, %v1549
  %v1551 = vpop.f32.mrf.mxu0
  %1552 = vmatprep.mubr.bf16.mxu0 0
  %1553 = vmatmul.mubr.bf16.gmra.mxu0 %v1499
  %v1554 = vpop.f32.mrf.mxu0
  %v1555 = vadd.f32 %v1477, %v1554
  %v1556 = vpop.f32.mrf.mxu0
  %v1557 = vpop.f32.mrf.mxu0
  %v1558 = vadd.f32 %v1479, %v1557
  %v1559 = vpop.f32.mrf.mxu0
  %1560 = vmatprep.mubr.bf16.mxu0 0
  %1561 = vmatmul.mubr.bf16.gmra.mxu0 %v1502
  %v1562 = vpop.f32.mrf.mxu0
  %v1563 = vadd.f32 %v1481, %v1562
  %v1564 = vpop.f32.mrf.mxu0
  %v1565 = vpop.f32.mrf.mxu0
  %v1566 = vadd.f32 %v1483, %v1565
  %v1567 = vpop.f32.mrf.mxu0
  %1568 = vdwg.mxu0
  %1569 = vrot.lane.b32.xlu0 %v476, 48
  %v1570 = vpop.permute.xlu0 %1569
  %1571 = vrot.lane.b32.xlu0 %v477, 48
  %v1572 = vpop.permute.xlu0 %1571
  %1573 = vrot.lane.b32.xlu0 %v478, 48
  %v1574 = vpop.permute.xlu0 %1573
  %1575 = vrot.lane.b32.xlu0 %v479, 48
  %v1576 = vpop.permute.xlu0 %1575
  %1589 = vrot.lane.b32.xlu0 %v442, 112
  %v1590 = vpop.permute.xlu0 %1589
  %1591 = vrot.lane.b32.xlu0 %v445, 112
  %v1592 = vpop.permute.xlu0 %1591
  %1593 = vrot.lane.b32.xlu0 %v450, 112
  %v1594 = vpop.permute.xlu0 %1593
  %1595 = vrot.lane.b32.xlu0 %v453, 112
  %v1596 = vpop.permute.xlu0 %1595
  %1597 = vrot.lane.b32.xlu0 %v458, 112
  %v1598 = vpop.permute.xlu0 %1597
  %1599 = vrot.lane.b32.xlu0 %v461, 112
  %v1600 = vpop.permute.xlu0 %1599
  %1601 = vrot.lane.b32.xlu0 %v466, 112
  %v1602 = vpop.permute.xlu0 %1601
  %1603 = vrot.lane.b32.xlu0 %v469, 112
  %v1604 = vpop.permute.xlu0 %1603
  %v1614 = vsel %vm683, %v1444, 0
  %v1617 = vsel %vm683, %v1445, 0
  %v1620 = vsel %vm683, %v1446, 0
  %v1623 = vsel %vm683, %v1447, 0
  %1625 = vmatprep.subr.bf16.mxu0 0
  %1626 = vmatpush1.bf16.msra.mxu0 0
  %1627 = vmatprep.subr.bf16.mxu0 0
  %1628 = vmatpush1.bf16.msra.mxu0 0
  %1629 = vmatprep.subr.bf16.mxu0 0
  %1630 = vmatpush1.bf16.msra.mxu0 0
  %1631 = vmatprep.subr.bf16.mxu0 0
  %1632 = vmatpush1.bf16.msra.mxu0 0
  %1633 = vmatprep.subr.bf16.mxu0 0
  %1634 = vmatpush1.bf16.msra.mxu0 %v1576
  %1635 = vmatprep.subr.bf16.mxu0 0
  %1636 = vmatpush1.bf16.msra.mxu0 %v1574
  %1637 = vmatprep.subr.bf16.mxu0 0
  %1638 = vmatpush1.bf16.msra.mxu0 %v1572
  %1639 = vmatprep.subr.bf16.mxu0 0
  %1640 = vmatpush1.bf16.msra.mxu0 %v1570
  %1641 = vmatprep.subr.bf16.mxu0 0
  %1642 = vmatpush2.bf16.msra.mxu0 0
  %1643 = vmatprep.subr.bf16.mxu0 0
  %1644 = vmatpush2.bf16.msra.mxu0 0
  %1645 = vmatprep.subr.bf16.mxu0 0
  %1646 = vmatpush2.bf16.msra.mxu0 0
  %1647 = vmatprep.subr.bf16.mxu0 0
  %1648 = vmatpush2.bf16.msra.mxu0 0
  %1649 = vmatprep.subr.bf16.mxu0 0
  %1650 = vmatpush2.bf16.msra.mxu0 0
  %1651 = vmatprep.subr.bf16.mxu0 0
  %1652 = vmatpush2.bf16.msra.mxu0 0
  %1653 = vmatprep.subr.bf16.mxu0 0
  %1654 = vmatpush2.bf16.msra.mxu0 0
  %1655 = vmatprep.subr.bf16.mxu0 0
  %1656 = vmatpush2.bf16.msra.mxu0 0
  %1657 = vmatprep.mubr.bf16.mxu0 0
  %1658 = vmatmul.mubr.bf16.gmra.mxu0 %v1614
  %v1659 = vpop.f32.mrf.mxu0
  %v1660 = vadd.f32 %v1590, %v1659
  %v1661 = vpop.f32.mrf.mxu0
  %v1662 = vpop.f32.mrf.mxu0
  %v1663 = vadd.f32 %v1592, %v1662
  %v1664 = vpop.f32.mrf.mxu0
  %1665 = vmatprep.mubr.bf16.mxu0 0
  %1666 = vmatmul.mubr.bf16.gmra.mxu0 %v1617
  %v1667 = vpop.f32.mrf.mxu0
  %v1668 = vadd.f32 %v1594, %v1667
  %v1669 = vpop.f32.mrf.mxu0
  %v1670 = vpop.f32.mrf.mxu0
  %v1671 = vadd.f32 %v1596, %v1670
  %v1672 = vpop.f32.mrf.mxu0
  %1673 = vmatprep.mubr.bf16.mxu0 0
  %1674 = vmatmul.mubr.bf16.gmra.mxu0 %v1620
  %v1675 = vpop.f32.mrf.mxu0
  %v1676 = vadd.f32 %v1598, %v1675
  %v1677 = vpop.f32.mrf.mxu0
  %v1678 = vpop.f32.mrf.mxu0
  %v1679 = vadd.f32 %v1600, %v1678
  %v1680 = vpop.f32.mrf.mxu0
  %1681 = vmatprep.mubr.bf16.mxu0 0
  %1682 = vmatmul.mubr.bf16.gmra.mxu0 %v1623
  %v1683 = vpop.f32.mrf.mxu0
  %v1684 = vadd.f32 %v1602, %v1683
  %v1685 = vpop.f32.mrf.mxu0
  %v1686 = vpop.f32.mrf.mxu0
  %v1687 = vadd.f32 %v1604, %v1686
  %v1688 = vpop.f32.mrf.mxu0
  %1689 = vdwg.mxu0
  %v1690 = vpack.c.bf16 %v1542, %v1539
  %v1691 = vpack.c.bf16 %v1550, %v1547
  %v1692 = vpack.c.bf16 %v1558, %v1555
  %v1693 = vpack.c.bf16 %v1566, %v1563
  %v1694 = vpack.c.bf16 %v1663, %v1660
  %v1695 = vpack.c.bf16 %v1671, %v1668
  %v1696 = vpack.c.bf16 %v1679, %v1676
  %v1697 = vpack.c.bf16 %v1687, %v1684
  %1706 = vrot.lane.b32.xlu0 %v1690, 16
  %v1707 = vpop.permute.xlu0 %1706
  %1708 = vrot.lane.b32.xlu0 %v1691, 16
  %v1709 = vpop.permute.xlu0 %1708
  %1710 = vrot.lane.b32.xlu0 %v1692, 16
  %v1711 = vpop.permute.xlu0 %1710
  %1712 = vrot.lane.b32.xlu0 %v1693, 16
  %v1713 = vpop.permute.xlu0 %1712
  %1714 = vrot.lane.b32.xlu0 %v1694, 16
  %v1715 = vpop.permute.xlu0 %1714
  %1716 = vrot.lane.b32.xlu0 %v1695, 16
  %v1717 = vpop.permute.xlu0 %1716
  %1718 = vrot.lane.b32.xlu0 %v1696, 16
  %v1719 = vpop.permute.xlu0 %1718
  %1720 = vrot.lane.b32.xlu0 %v1697, 16
  %v1721 = vpop.permute.xlu0 %1720
  %v1724 = vsel %vm492, %v1046, %v1707
  %v1727 = vsel %vm492, %v1047, %v1709
  %v1730 = vsel %vm492, %v1048, %v1711
  %v1733 = vsel %vm492, %v1049, %v1713
  %v1736 = vsel %vm492, %v1050, %v1715
  %v1739 = vsel %vm492, %v1051, %v1717
  %v1742 = vsel %vm492, %v1052, %v1719
  %v1745 = vsel %vm492, %v1053, %v1721
  %v1746 = vld [vmem:[%s3] sm:$0xf]
  %v1747 = vld [vmem:[%s3 + $0x4] sm:$0xf]
  %v1748 = vld [vmem:[%s3 + $0x8] sm:$0xf]
  %v1749 = vld [vmem:[%s3 + $0xc] sm:$0xf]
  %v1750 = vlaneseq
  %v1751 = vshrl.u32 %v1750, 7
  %v1752 = vsub.s32 5, %v1751
  %v1753 = vrot.slane %v40, %v1752
  %v1758 = vunpack.c.l.b16 %v1746
  %v1759 = vunpack.c.l.b16 %v1747
  %v1760 = vunpack.c.l.b16 %v1748
  %v1761 = vunpack.c.l.b16 %v1749
  %v1762 = vpack.c.b16 %v1759, %v1758
  %v1763 = vpack.c.b16 %v1761, %v1760
  %v1766 = vsel %vm41, %v1724, 0
  %v1768 = vsel %vm41, %v1727, 0
  %v1770 = vsel %vm41, %v1730, 0
  %v1772 = vsel %vm41, %v1733, 0
  %v1774 = vsel %vm41, %v1736, 0
  %v1776 = vsel %vm41, %v1739, 0
  %v1778 = vsel %vm41, %v1742, 0
  %v1780 = vsel %vm41, %v1745, 0
  %1782 = vmatprep.subr.bf16.mxu0 0
  %1783 = vmatpush1.bf16.msra.mxu0 0
  %1784 = vmatprep.subr.bf16.mxu0 0
  %1785 = vmatpush1.bf16.msra.mxu0 0
  %1786 = vmatprep.subr.bf16.mxu0 0
  %1787 = vmatpush1.bf16.msra.mxu0 0
  %1788 = vmatprep.subr.bf16.mxu0 0
  %1789 = vmatpush1.bf16.msra.mxu0 0
  %1790 = vmatprep.subr.bf16.mxu0 0
  %1791 = vmatpush1.bf16.msra.mxu0 0
  %1792 = vmatprep.subr.bf16.mxu0 0
  %1793 = vmatpush1.bf16.msra.mxu0 0
  %1794 = vmatprep.subr.bf16.mxu0 0
  %1795 = vmatpush1.bf16.msra.mxu0 %v1763
  %1796 = vmatprep.subr.bf16.mxu0 0
  %1797 = vmatpush1.bf16.msra.mxu0 %v1762
  %1798 = vmatprep.subr.bf16.mxu0 0
  %1799 = vmatpush2.bf16.msra.mxu0 0
  %1800 = vmatprep.subr.bf16.mxu0 0
  %1801 = vmatpush2.bf16.msra.mxu0 0
  %1802 = vmatprep.subr.bf16.mxu0 0
  %1803 = vmatpush2.bf16.msra.mxu0 0
  %1804 = vmatprep.subr.bf16.mxu0 0
  %1805 = vmatpush2.bf16.msra.mxu0 0
  %1806 = vmatprep.subr.bf16.mxu0 0
  %1807 = vmatpush2.bf16.msra.mxu0 0
  %1808 = vmatprep.subr.bf16.mxu0 0
  %1809 = vmatpush2.bf16.msra.mxu0 0
  %1810 = vmatprep.subr.bf16.mxu0 0
  %1811 = vmatpush2.bf16.msra.mxu0 0
  %1812 = vmatprep.subr.bf16.mxu0 0
  %1813 = vmatpush2.bf16.msra.mxu0 0
  %1814 = vmatprep.mubr.bf16.mxu0 0
  %1815 = vmatmul.mubr.bf16.gmra.mxu0 %v1766
  %v1816 = vpop.f32.mrf.mxu0
  %v1817 = vadd.f32 %v1753, %v1816
  %v1818 = vpop.f32.mrf.mxu0
  %v1819 = vpop.f32.mrf.mxu0
  %v1820 = vadd.f32 %v1753, %v1819
  %v1821 = vpop.f32.mrf.mxu0
  %1822 = vmatprep.mubr.bf16.mxu0 0
  %1823 = vmatmul.mubr.bf16.gmra.mxu0 %v1768
  %v1824 = vpop.f32.mrf.mxu0
  %v1825 = vadd.f32 %v1753, %v1824
  %v1826 = vpop.f32.mrf.mxu0
  %v1827 = vpop.f32.mrf.mxu0
  %v1828 = vadd.f32 %v1753, %v1827
  %v1829 = vpop.f32.mrf.mxu0
  %1830 = vmatprep.mubr.bf16.mxu0 0
  %1831 = vmatmul.mubr.bf16.gmra.mxu0 %v1770
  %v1832 = vpop.f32.mrf.mxu0
  %v1833 = vadd.f32 %v1753, %v1832
  %v1834 = vpop.f32.mrf.mxu0
  %v1835 = vpop.f32.mrf.mxu0
  %v1836 = vadd.f32 %v1753, %v1835
  %v1837 = vpop.f32.mrf.mxu0
  %1838 = vmatprep.mubr.bf16.mxu0 0
  %1839 = vmatmul.mubr.bf16.gmra.mxu0 %v1772
  %v1840 = vpop.f32.mrf.mxu0
  %v1841 = vadd.f32 %v1753, %v1840
  %v1842 = vpop.f32.mrf.mxu0
  %v1843 = vpop.f32.mrf.mxu0
  %v1844 = vadd.f32 %v1753, %v1843
  %v1845 = vpop.f32.mrf.mxu0
  %1846 = vmatprep.mubr.bf16.mxu0 0
  %1847 = vmatmul.mubr.bf16.gmra.mxu0 %v1774
  %v1848 = vpop.f32.mrf.mxu0
  %v1849 = vadd.f32 %v1753, %v1848
  %v1850 = vpop.f32.mrf.mxu0
  %v1851 = vpop.f32.mrf.mxu0
  %v1852 = vadd.f32 %v1753, %v1851
  %v1853 = vpop.f32.mrf.mxu0
  %1854 = vmatprep.mubr.bf16.mxu0 0
  %1855 = vmatmul.mubr.bf16.gmra.mxu0 %v1776
  %v1856 = vpop.f32.mrf.mxu0
  %v1857 = vadd.f32 %v1753, %v1856
  %v1858 = vpop.f32.mrf.mxu0
  %v1859 = vpop.f32.mrf.mxu0
  %v1860 = vadd.f32 %v1753, %v1859
  %v1861 = vpop.f32.mrf.mxu0
  %1862 = vmatprep.mubr.bf16.mxu0 0
  %1863 = vmatmul.mubr.bf16.gmra.mxu0 %v1778
  %v1864 = vpop.f32.mrf.mxu0
  %v1865 = vadd.f32 %v1753, %v1864
  %v1866 = vpop.f32.mrf.mxu0
  %v1867 = vpop.f32.mrf.mxu0
  %v1868 = vadd.f32 %v1753, %v1867
  %v1869 = vpop.f32.mrf.mxu0
  %1870 = vmatprep.mubr.bf16.mxu0 0
  %1871 = vmatmul.mubr.bf16.gmra.mxu0 %v1780
  %v1872 = vpop.f32.mrf.mxu0
  %v1873 = vadd.f32 %v1753, %v1872
  %v1874 = vpop.f32.mrf.mxu0
  %v1875 = vpop.f32.mrf.mxu0
  %v1876 = vadd.f32 %v1753, %v1875
  %v1877 = vpop.f32.mrf.mxu0
  %1878 = vdwg.mxu0
  %v1879 = vadd.f32 %v24, %v1817
  %v1880 = vadd.f32 %v25, %v1820
  %v1881 = vadd.f32 %v26, %v1825
  %v1882 = vadd.f32 %v27, %v1828
  %v1883 = vadd.f32 %v28, %v1833
  %v1884 = vadd.f32 %v29, %v1836
  %v1885 = vadd.f32 %v30, %v1841
  %v1886 = vadd.f32 %v31, %v1844
  %v1887 = vadd.f32 %v32, %v1849
  %v1888 = vadd.f32 %v33, %v1852
  %v1889 = vadd.f32 %v34, %v1857
  %v1890 = vadd.f32 %v35, %v1860
  %v1891 = vadd.f32 %v36, %v1865
  %v1892 = vadd.f32 %v37, %v1868
  %v1893 = vadd.f32 %v38, %v1873
  %v1894 = vadd.f32 %v39, %v1876
  %v1895 = vsel %vm41, %v1879, 0.0
  %1896 = vadd.xlane.f32.xlu0 %v1895
  %v1897 = vpop.xlane.xlu0 %1896
  %v1898 = vsel %vm41, %v1880, 0.0
  %1899 = vadd.xlane.f32.xlu0 %v1898
  %v1900 = vpop.xlane.xlu0 %1899
  %v1901 = vsel %vm41, %v1881, 0.0
  %1902 = vadd.xlane.f32.xlu0 %v1901
  %v1903 = vpop.xlane.xlu0 %1902
  %v1904 = vsel %vm41, %v1882, 0.0
  %1905 = vadd.xlane.f32.xlu0 %v1904
  %v1906 = vpop.xlane.xlu0 %1905
  %v1907 = vsel %vm41, %v1883, 0.0
  %1908 = vadd.xlane.f32.xlu0 %v1907
  %v1909 = vpop.xlane.xlu0 %1908
  %v1910 = vsel %vm41, %v1884, 0.0
  %1911 = vadd.xlane.f32.xlu0 %v1910
  %v1912 = vpop.xlane.xlu0 %1911
  %v1913 = vsel %vm41, %v1885, 0.0
  %1914 = vadd.xlane.f32.xlu0 %v1913
  %v1915 = vpop.xlane.xlu0 %1914
  %v1916 = vsel %vm41, %v1886, 0.0
  %1917 = vadd.xlane.f32.xlu0 %v1916
  %v1918 = vpop.xlane.xlu0 %1917
  %v1919 = vsel %vm41, %v1887, 0.0
  %1920 = vadd.xlane.f32.xlu0 %v1919
  %v1921 = vpop.xlane.xlu0 %1920
  %v1922 = vsel %vm41, %v1888, 0.0
  %1923 = vadd.xlane.f32.xlu0 %v1922
  %v1924 = vpop.xlane.xlu0 %1923
  %v1925 = vsel %vm41, %v1889, 0.0
  %1926 = vadd.xlane.f32.xlu0 %v1925
  %v1927 = vpop.xlane.xlu0 %1926
  %v1928 = vsel %vm41, %v1890, 0.0
  %1929 = vadd.xlane.f32.xlu0 %v1928
  %v1930 = vpop.xlane.xlu0 %1929
  %v1931 = vsel %vm41, %v1891, 0.0
  %1932 = vadd.xlane.f32.xlu0 %v1931
  %v1933 = vpop.xlane.xlu0 %1932
  %v1934 = vsel %vm41, %v1892, 0.0
  %1935 = vadd.xlane.f32.xlu0 %v1934
  %v1936 = vpop.xlane.xlu0 %1935
  %v1937 = vsel %vm41, %v1893, 0.0
  %1938 = vadd.xlane.f32.xlu0 %v1937
  %v1939 = vpop.xlane.xlu0 %1938
  %v1940 = vsel %vm41, %v1894, 0.0
  %1941 = vadd.xlane.f32.xlu0 %v1940
  %v1942 = vpop.xlane.xlu0 %1941
  %v1943 = vmul.f32 %v1897, %v90
  %v1944 = vmul.f32 %v1900, %v90
  %v1945 = vmul.f32 %v1903, %v90
  %v1946 = vmul.f32 %v1906, %v90
  %v1947 = vmul.f32 %v1909, %v90
  %v1948 = vmul.f32 %v1912, %v90
  %v1949 = vmul.f32 %v1915, %v90
  %v1950 = vmul.f32 %v1918, %v90
  %v1951 = vmul.f32 %v1921, %v90
  %v1952 = vmul.f32 %v1924, %v90
  %v1953 = vmul.f32 %v1927, %v90
  %v1954 = vmul.f32 %v1930, %v90
  %v1955 = vmul.f32 %v1933, %v90
  %v1956 = vmul.f32 %v1936, %v90
  %v1957 = vmul.f32 %v1939, %v90
  %v1958 = vmul.f32 %v1942, %v90
  %v1959 = vmul.f32 %v1879, %v1879
  %v1960 = vmul.f32 %v1880, %v1880
  %v1961 = vmul.f32 %v1881, %v1881
  %v1962 = vmul.f32 %v1882, %v1882
  %v1963 = vmul.f32 %v1883, %v1883
  %v1964 = vmul.f32 %v1884, %v1884
  %v1965 = vmul.f32 %v1885, %v1885
  %v1966 = vmul.f32 %v1886, %v1886
  %v1967 = vmul.f32 %v1887, %v1887
  %v1968 = vmul.f32 %v1888, %v1888
  %v1969 = vmul.f32 %v1889, %v1889
  %v1970 = vmul.f32 %v1890, %v1890
  %v1971 = vmul.f32 %v1891, %v1891
  %v1972 = vmul.f32 %v1892, %v1892
  %v1973 = vmul.f32 %v1893, %v1893
  %v1974 = vmul.f32 %v1894, %v1894
  %v1975 = vsel %vm41, %v1959, 0.0
  %1976 = vadd.xlane.f32.xlu0 %v1975
  %v1977 = vpop.xlane.xlu0 %1976
  %v1978 = vsel %vm41, %v1960, 0.0
  %1979 = vadd.xlane.f32.xlu0 %v1978
  %v1980 = vpop.xlane.xlu0 %1979
  %v1981 = vsel %vm41, %v1961, 0.0
  %1982 = vadd.xlane.f32.xlu0 %v1981
  %v1983 = vpop.xlane.xlu0 %1982
  %v1984 = vsel %vm41, %v1962, 0.0
  %1985 = vadd.xlane.f32.xlu0 %v1984
  %v1986 = vpop.xlane.xlu0 %1985
  %v1987 = vsel %vm41, %v1963, 0.0
  %1988 = vadd.xlane.f32.xlu0 %v1987
  %v1989 = vpop.xlane.xlu0 %1988
  %v1990 = vsel %vm41, %v1964, 0.0
  %1991 = vadd.xlane.f32.xlu0 %v1990
  %v1992 = vpop.xlane.xlu0 %1991
  %v1993 = vsel %vm41, %v1965, 0.0
  %1994 = vadd.xlane.f32.xlu0 %v1993
  %v1995 = vpop.xlane.xlu0 %1994
  %v1996 = vsel %vm41, %v1966, 0.0
  %1997 = vadd.xlane.f32.xlu0 %v1996
  %v1998 = vpop.xlane.xlu0 %1997
  %v1999 = vsel %vm41, %v1967, 0.0
  %2000 = vadd.xlane.f32.xlu0 %v1999
  %v2001 = vpop.xlane.xlu0 %2000
  %v2002 = vsel %vm41, %v1968, 0.0
  %2003 = vadd.xlane.f32.xlu0 %v2002
  %v2004 = vpop.xlane.xlu0 %2003
  %v2005 = vsel %vm41, %v1969, 0.0
  %2006 = vadd.xlane.f32.xlu0 %v2005
  %v2007 = vpop.xlane.xlu0 %2006
  %v2008 = vsel %vm41, %v1970, 0.0
  %2009 = vadd.xlane.f32.xlu0 %v2008
  %v2010 = vpop.xlane.xlu0 %2009
  %v2011 = vsel %vm41, %v1971, 0.0
  %2012 = vadd.xlane.f32.xlu0 %v2011
  %v2013 = vpop.xlane.xlu0 %2012
  %v2014 = vsel %vm41, %v1972, 0.0
  %2015 = vadd.xlane.f32.xlu0 %v2014
  %v2016 = vpop.xlane.xlu0 %2015
  %v2017 = vsel %vm41, %v1973, 0.0
  %2018 = vadd.xlane.f32.xlu0 %v2017
  %v2019 = vpop.xlane.xlu0 %2018
  %v2020 = vsel %vm41, %v1974, 0.0
  %2021 = vadd.xlane.f32.xlu0 %v2020
  %v2022 = vpop.xlane.xlu0 %2021
  %v2023 = vmul.f32 %v1977, %v90
  %v2024 = vmul.f32 %v1980, %v90
  %v2025 = vmul.f32 %v1983, %v90
  %v2026 = vmul.f32 %v1986, %v90
  %v2027 = vmul.f32 %v1989, %v90
  %v2028 = vmul.f32 %v1992, %v90
  %v2029 = vmul.f32 %v1995, %v90
  %v2030 = vmul.f32 %v1998, %v90
  %v2031 = vmul.f32 %v2001, %v90
  %v2032 = vmul.f32 %v2004, %v90
  %v2033 = vmul.f32 %v2007, %v90
  %v2034 = vmul.f32 %v2010, %v90
  %v2035 = vmul.f32 %v2013, %v90
  %v2036 = vmul.f32 %v2016, %v90
  %v2037 = vmul.f32 %v2019, %v90
  %v2038 = vmul.f32 %v2022, %v90
  %v2039 = vmul.f32 %v1943, %v1943
  %v2040 = vmul.f32 %v1944, %v1944
  %v2041 = vmul.f32 %v1945, %v1945
  %v2042 = vmul.f32 %v1946, %v1946
  %v2043 = vmul.f32 %v1947, %v1947
  %v2044 = vmul.f32 %v1948, %v1948
  %v2045 = vmul.f32 %v1949, %v1949
  %v2046 = vmul.f32 %v1950, %v1950
  %v2047 = vmul.f32 %v1951, %v1951
  %v2048 = vmul.f32 %v1952, %v1952
  %v2049 = vmul.f32 %v1953, %v1953
  %v2050 = vmul.f32 %v1954, %v1954
  %v2051 = vmul.f32 %v1955, %v1955
  %v2052 = vmul.f32 %v1956, %v1956
  %v2053 = vmul.f32 %v1957, %v1957
  %v2054 = vmul.f32 %v1958, %v1958
  %v2055 = vsub.f32 %v2023, %v2039
  %v2056 = vsub.f32 %v2024, %v2040
  %v2057 = vsub.f32 %v2025, %v2041
  %v2058 = vsub.f32 %v2026, %v2042
  %v2059 = vsub.f32 %v2027, %v2043
  %v2060 = vsub.f32 %v2028, %v2044
  %v2061 = vsub.f32 %v2029, %v2045
  %v2062 = vsub.f32 %v2030, %v2046
  %v2063 = vsub.f32 %v2031, %v2047
  %v2064 = vsub.f32 %v2032, %v2048
  %v2065 = vsub.f32 %v2033, %v2049
  %v2066 = vsub.f32 %v2034, %v2050
  %v2067 = vsub.f32 %v2035, %v2051
  %v2068 = vsub.f32 %v2036, %v2052
  %v2069 = vsub.f32 %v2037, %v2053
  %v2070 = vsub.f32 %v2038, %v2054
  %v2071 = vsub.f32 %v1879, %v1943
  %v2072 = vsub.f32 %v1880, %v1944
  %v2073 = vsub.f32 %v1881, %v1945
  %v2074 = vsub.f32 %v1882, %v1946
  %v2075 = vsub.f32 %v1883, %v1947
  %v2076 = vsub.f32 %v1884, %v1948
  %v2077 = vsub.f32 %v1885, %v1949
  %v2078 = vsub.f32 %v1886, %v1950
  %v2079 = vsub.f32 %v1887, %v1951
  %v2080 = vsub.f32 %v1888, %v1952
  %v2081 = vsub.f32 %v1889, %v1953
  %v2082 = vsub.f32 %v1890, %v1954
  %v2083 = vsub.f32 %v1891, %v1955
  %v2084 = vsub.f32 %v1892, %v1956
  %v2085 = vsub.f32 %v1893, %v1957
  %v2086 = vsub.f32 %v1894, %v1958
  %v2087 = vadd.f32 %v2055, 1e-06
  %v2088 = vadd.f32 %v2056, 1e-06
  %v2089 = vadd.f32 %v2057, 1e-06
  %v2090 = vadd.f32 %v2058, 1e-06
  %v2091 = vadd.f32 %v2059, 1e-06
  %v2092 = vadd.f32 %v2060, 1e-06
  %v2093 = vadd.f32 %v2061, 1e-06
  %v2094 = vadd.f32 %v2062, 1e-06
  %v2095 = vadd.f32 %v2063, 1e-06
  %v2096 = vadd.f32 %v2064, 1e-06
  %v2097 = vadd.f32 %v2065, 1e-06
  %v2098 = vadd.f32 %v2066, 1e-06
  %v2099 = vadd.f32 %v2067, 1e-06
  %v2100 = vadd.f32 %v2068, 1e-06
  %v2101 = vadd.f32 %v2069, 1e-06
  %v2102 = vadd.f32 %v2070, 1e-06
  %v2103 = vrsqrt.pop %v2087
  %v2104 = vrsqrt.pop %v2088
  %v2105 = vrsqrt.pop %v2089
  %v2106 = vrsqrt.pop %v2090
  %v2107 = vrsqrt.pop %v2091
  %v2108 = vrsqrt.pop %v2092
  %v2109 = vrsqrt.pop %v2093
  %v2110 = vrsqrt.pop %v2094
  %v2111 = vrsqrt.pop %v2095
  %v2112 = vrsqrt.pop %v2096
  %v2113 = vrsqrt.pop %v2097
  %v2114 = vrsqrt.pop %v2098
  %v2115 = vrsqrt.pop %v2099
  %v2116 = vrsqrt.pop %v2100
  %v2117 = vrsqrt.pop %v2101
  %v2118 = vrsqrt.pop %v2102
  %v2119 = vmul.f32 %v2071, %v2103
  %v2120 = vmul.f32 %v2072, %v2104
  %v2121 = vmul.f32 %v2073, %v2105
  %v2122 = vmul.f32 %v2074, %v2106
  %v2123 = vmul.f32 %v2075, %v2107
  %v2124 = vmul.f32 %v2076, %v2108
  %v2125 = vmul.f32 %v2077, %v2109
  %v2126 = vmul.f32 %v2078, %v2110
  %v2127 = vmul.f32 %v2079, %v2111
  %v2128 = vmul.f32 %v2080, %v2112
  %v2129 = vmul.f32 %v2081, %v2113
  %v2130 = vmul.f32 %v2082, %v2114
  %v2131 = vmul.f32 %v2083, %v2115
  %v2132 = vmul.f32 %v2084, %v2116
  %v2133 = vmul.f32 %v2085, %v2117
  %v2134 = vmul.f32 %v2086, %v2118
  %v2135 = vlaneseq
  %v2136 = vshrl.u32 %v2135, 7
  %v2137 = vsub.s32 2, %v2136
  %v2138 = vrot.slane %v40, %v2137
  %v2139 = vmul.f32 %v2119, %v2138
  %v2140 = vmul.f32 %v2120, %v2138
  %v2141 = vmul.f32 %v2121, %v2138
  %v2142 = vmul.f32 %v2122, %v2138
  %v2143 = vmul.f32 %v2123, %v2138
  %v2144 = vmul.f32 %v2124, %v2138
  %v2145 = vmul.f32 %v2125, %v2138
  %v2146 = vmul.f32 %v2126, %v2138
  %v2147 = vmul.f32 %v2127, %v2138
  %v2148 = vmul.f32 %v2128, %v2138
  %v2149 = vmul.f32 %v2129, %v2138
  %v2150 = vmul.f32 %v2130, %v2138
  %v2151 = vmul.f32 %v2131, %v2138
  %v2152 = vmul.f32 %v2132, %v2138
  %v2153 = vmul.f32 %v2133, %v2138
  %v2154 = vmul.f32 %v2134, %v2138
  %v2155 = vlaneseq
  %v2156 = vshrl.u32 %v2155, 7
  %v2157 = vsub.s32 3, %v2156
  %v2158 = vrot.slane %v40, %v2157
  %v2159 = vadd.f32 %v2139, %v2158
  %v2160 = vadd.f32 %v2140, %v2158
  %v2161 = vadd.f32 %v2141, %v2158
  %v2162 = vadd.f32 %v2142, %v2158
  %v2163 = vadd.f32 %v2143, %v2158
  %v2164 = vadd.f32 %v2144, %v2158
  %v2165 = vadd.f32 %v2145, %v2158
  %v2166 = vadd.f32 %v2146, %v2158
  %v2167 = vadd.f32 %v2147, %v2158
  %v2168 = vadd.f32 %v2148, %v2158
  %v2169 = vadd.f32 %v2149, %v2158
  %v2170 = vadd.f32 %v2150, %v2158
  %v2171 = vadd.f32 %v2151, %v2158
  %v2172 = vadd.f32 %v2152, %v2158
  %v2173 = vadd.f32 %v2153, %v2158
  %v2174 = vadd.f32 %v2154, %v2158
  %v2175 = vpack.c.bf16 %v2160, %v2159
  %v2176 = vpack.c.bf16 %v2162, %v2161
  %v2177 = vpack.c.bf16 %v2164, %v2163
  %v2178 = vpack.c.bf16 %v2166, %v2165
  %v2179 = vpack.c.bf16 %v2168, %v2167
  %v2180 = vpack.c.bf16 %v2170, %v2169
  %v2181 = vpack.c.bf16 %v2172, %v2171
  %v2182 = vpack.c.bf16 %v2174, %v2173
  %v2183 = vld [vmem:[%s4] sm:$0xf]
  %v2184 = vld [vmem:[%s4 + $0x4] sm:$0xf]
  %v2185 = vld [vmem:[%s4 + $0x8] sm:$0xf]
  %v2186 = vld [vmem:[%s4 + $0xc] sm:$0xf]
  %v2187 = vlaneseq
  %v2188 = vshrl.u32 %v2187, 7
  %v2189 = vsub.s32 6, %v2188
  %v2190 = vrot.slane %v40, %v2189
  %v2195 = vunpack.c.l.b16 %v2183
  %v2196 = vunpack.c.l.b16 %v2184
  %v2197 = vunpack.c.l.b16 %v2185
  %v2198 = vunpack.c.l.b16 %v2186
  %v2199 = vpack.c.b16 %v2196, %v2195
  %v2200 = vpack.c.b16 %v2198, %v2197
  %v2204 = vsel %vm41, %v2175, 0
  %v2207 = vsel %vm41, %v2176, 0
  %v2210 = vsel %vm41, %v2177, 0
  %v2213 = vsel %vm41, %v2178, 0
  %v2216 = vsel %vm41, %v2179, 0
  %v2219 = vsel %vm41, %v2180, 0
  %v2222 = vsel %vm41, %v2181, 0
  %v2225 = vsel %vm41, %v2182, 0
  %2227 = vmatprep.subr.bf16.mxu0 0
  %2228 = vmatpush1.bf16.msra.mxu0 0
  %2229 = vmatprep.subr.bf16.mxu0 0
  %2230 = vmatpush1.bf16.msra.mxu0 0
  %2231 = vmatprep.subr.bf16.mxu0 0
  %2232 = vmatpush1.bf16.msra.mxu0 0
  %2233 = vmatprep.subr.bf16.mxu0 0
  %2234 = vmatpush1.bf16.msra.mxu0 0
  %2235 = vmatprep.subr.bf16.mxu0 0
  %2236 = vmatpush1.bf16.msra.mxu0 0
  %2237 = vmatprep.subr.bf16.mxu0 0
  %2238 = vmatpush1.bf16.msra.mxu0 0
  %2239 = vmatprep.subr.bf16.mxu0 0
  %2240 = vmatpush1.bf16.msra.mxu0 %v2200
  %2241 = vmatprep.subr.bf16.mxu0 0
  %2242 = vmatpush1.bf16.msra.mxu0 %v2199
  %2243 = vmatprep.subr.bf16.mxu0 0
  %2244 = vmatpush2.bf16.msra.mxu0 0
  %2245 = vmatprep.subr.bf16.mxu0 0
  %2246 = vmatpush2.bf16.msra.mxu0 0
  %2247 = vmatprep.subr.bf16.mxu0 0
  %2248 = vmatpush2.bf16.msra.mxu0 0
  %2249 = vmatprep.subr.bf16.mxu0 0
  %2250 = vmatpush2.bf16.msra.mxu0 0
  %2251 = vmatprep.subr.bf16.mxu0 0
  %2252 = vmatpush2.bf16.msra.mxu0 0
  %2253 = vmatprep.subr.bf16.mxu0 0
  %2254 = vmatpush2.bf16.msra.mxu0 0
  %2255 = vmatprep.subr.bf16.mxu0 0
  %2256 = vmatpush2.bf16.msra.mxu0 0
  %2257 = vmatprep.subr.bf16.mxu0 0
  %2258 = vmatpush2.bf16.msra.mxu0 0
  %2259 = vmatprep.mubr.bf16.mxu0 0
  %2260 = vmatmul.mubr.bf16.gmra.mxu0 %v2204
  %v2261 = vpop.f32.mrf.mxu0
  %v2262 = vadd.f32 %v2190, %v2261
  %v2263 = vpop.f32.mrf.mxu0
  %v2264 = vpop.f32.mrf.mxu0
  %v2265 = vadd.f32 %v2190, %v2264
  %v2266 = vpop.f32.mrf.mxu0
  %2267 = vmatprep.mubr.bf16.mxu0 0
  %2268 = vmatmul.mubr.bf16.gmra.mxu0 %v2207
  %v2269 = vpop.f32.mrf.mxu0
  %v2270 = vadd.f32 %v2190, %v2269
  %v2271 = vpop.f32.mrf.mxu0
  %v2272 = vpop.f32.mrf.mxu0
  %v2273 = vadd.f32 %v2190, %v2272
  %v2274 = vpop.f32.mrf.mxu0
  %2275 = vmatprep.mubr.bf16.mxu0 0
  %2276 = vmatmul.mubr.bf16.gmra.mxu0 %v2210
  %v2277 = vpop.f32.mrf.mxu0
  %v2278 = vadd.f32 %v2190, %v2277
  %v2279 = vpop.f32.mrf.mxu0
  %v2280 = vpop.f32.mrf.mxu0
  %v2281 = vadd.f32 %v2190, %v2280
  %v2282 = vpop.f32.mrf.mxu0
  %2283 = vmatprep.mubr.bf16.mxu0 0
  %2284 = vmatmul.mubr.bf16.gmra.mxu0 %v2213
  %v2285 = vpop.f32.mrf.mxu0
  %v2286 = vadd.f32 %v2190, %v2285
  %v2287 = vpop.f32.mrf.mxu0
  %v2288 = vpop.f32.mrf.mxu0
  %v2289 = vadd.f32 %v2190, %v2288
  %v2290 = vpop.f32.mrf.mxu0
  %2291 = vmatprep.mubr.bf16.mxu0 0
  %2292 = vmatmul.mubr.bf16.gmra.mxu0 %v2216
  %v2293 = vpop.f32.mrf.mxu0
  %v2294 = vadd.f32 %v2190, %v2293
  %v2295 = vpop.f32.mrf.mxu0
  %v2296 = vpop.f32.mrf.mxu0
  %v2297 = vadd.f32 %v2190, %v2296
  %v2298 = vpop.f32.mrf.mxu0
  %2299 = vmatprep.mubr.bf16.mxu0 0
  %2300 = vmatmul.mubr.bf16.gmra.mxu0 %v2219
  %v2301 = vpop.f32.mrf.mxu0
  %v2302 = vadd.f32 %v2190, %v2301
  %v2303 = vpop.f32.mrf.mxu0
  %v2304 = vpop.f32.mrf.mxu0
  %v2305 = vadd.f32 %v2190, %v2304
  %v2306 = vpop.f32.mrf.mxu0
  %2307 = vmatprep.mubr.bf16.mxu0 0
  %2308 = vmatmul.mubr.bf16.gmra.mxu0 %v2222
  %v2309 = vpop.f32.mrf.mxu0
  %v2310 = vadd.f32 %v2190, %v2309
  %v2311 = vpop.f32.mrf.mxu0
  %v2312 = vpop.f32.mrf.mxu0
  %v2313 = vadd.f32 %v2190, %v2312
  %v2314 = vpop.f32.mrf.mxu0
  %2315 = vmatprep.mubr.bf16.mxu0 0
  %2316 = vmatmul.mubr.bf16.gmra.mxu0 %v2225
  %v2317 = vpop.f32.mrf.mxu0
  %v2318 = vadd.f32 %v2190, %v2317
  %v2319 = vpop.f32.mrf.mxu0
  %v2320 = vpop.f32.mrf.mxu0
  %v2321 = vadd.f32 %v2190, %v2320
  %v2322 = vpop.f32.mrf.mxu0
  %2323 = vdwg.mxu0
  %v2324 = vmul.f32 %v2262, %v2262
  %v2325 = vmul.f32 %v2265, %v2265
  %v2326 = vmul.f32 %v2270, %v2270
  %v2327 = vmul.f32 %v2273, %v2273
  %v2328 = vmul.f32 %v2278, %v2278
  %v2329 = vmul.f32 %v2281, %v2281
  %v2330 = vmul.f32 %v2286, %v2286
  %v2331 = vmul.f32 %v2289, %v2289
  %v2332 = vmul.f32 %v2294, %v2294
  %v2333 = vmul.f32 %v2297, %v2297
  %v2334 = vmul.f32 %v2302, %v2302
  %v2335 = vmul.f32 %v2305, %v2305
  %v2336 = vmul.f32 %v2310, %v2310
  %v2337 = vmul.f32 %v2313, %v2313
  %v2338 = vmul.f32 %v2318, %v2318
  %v2339 = vmul.f32 %v2321, %v2321
  %v2340 = vmul.f32 %v2262, %v2324
  %v2341 = vmul.f32 %v2265, %v2325
  %v2342 = vmul.f32 %v2270, %v2326
  %v2343 = vmul.f32 %v2273, %v2327
  %v2344 = vmul.f32 %v2278, %v2328
  %v2345 = vmul.f32 %v2281, %v2329
  %v2346 = vmul.f32 %v2286, %v2330
  %v2347 = vmul.f32 %v2289, %v2331
  %v2348 = vmul.f32 %v2294, %v2332
  %v2349 = vmul.f32 %v2297, %v2333
  %v2350 = vmul.f32 %v2302, %v2334
  %v2351 = vmul.f32 %v2305, %v2335
  %v2352 = vmul.f32 %v2310, %v2336
  %v2353 = vmul.f32 %v2313, %v2337
  %v2354 = vmul.f32 %v2318, %v2338
  %v2355 = vmul.f32 %v2321, %v2339
  %v2356 = vmul.f32 %v2340, 0.044715
  %v2357 = vmul.f32 %v2341, 0.044715
  %v2358 = vmul.f32 %v2342, 0.044715
  %v2359 = vmul.f32 %v2343, 0.044715
  %v2360 = vmul.f32 %v2344, 0.044715
  %v2361 = vmul.f32 %v2345, 0.044715
  %v2362 = vmul.f32 %v2346, 0.044715
  %v2363 = vmul.f32 %v2347, 0.044715
  %v2364 = vmul.f32 %v2348, 0.044715
  %v2365 = vmul.f32 %v2349, 0.044715
  %v2366 = vmul.f32 %v2350, 0.044715
  %v2367 = vmul.f32 %v2351, 0.044715
  %v2368 = vmul.f32 %v2352, 0.044715
  %v2369 = vmul.f32 %v2353, 0.044715
  %v2370 = vmul.f32 %v2354, 0.044715
  %v2371 = vmul.f32 %v2355, 0.044715
  %v2372 = vadd.f32 %v2262, %v2356
  %v2373 = vadd.f32 %v2265, %v2357
  %v2374 = vadd.f32 %v2270, %v2358
  %v2375 = vadd.f32 %v2273, %v2359
  %v2376 = vadd.f32 %v2278, %v2360
  %v2377 = vadd.f32 %v2281, %v2361
  %v2378 = vadd.f32 %v2286, %v2362
  %v2379 = vadd.f32 %v2289, %v2363
  %v2380 = vadd.f32 %v2294, %v2364
  %v2381 = vadd.f32 %v2297, %v2365
  %v2382 = vadd.f32 %v2302, %v2366
  %v2383 = vadd.f32 %v2305, %v2367
  %v2384 = vadd.f32 %v2310, %v2368
  %v2385 = vadd.f32 %v2313, %v2369
  %v2386 = vadd.f32 %v2318, %v2370
  %v2387 = vadd.f32 %v2321, %v2371
  %v2388 = vmul.f32 %v2372, 0.7978846
  %v2389 = vmul.f32 %v2373, 0.7978846
  %v2390 = vmul.f32 %v2374, 0.7978846
  %v2391 = vmul.f32 %v2375, 0.7978846
  %v2392 = vmul.f32 %v2376, 0.7978846
  %v2393 = vmul.f32 %v2377, 0.7978846
  %v2394 = vmul.f32 %v2378, 0.7978846
  %v2395 = vmul.f32 %v2379, 0.7978846
  %v2396 = vmul.f32 %v2380, 0.7978846
  %v2397 = vmul.f32 %v2381, 0.7978846
  %v2398 = vmul.f32 %v2382, 0.7978846
  %v2399 = vmul.f32 %v2383, 0.7978846
  %v2400 = vmul.f32 %v2384, 0.7978846
  %v2401 = vmul.f32 %v2385, 0.7978846
  %v2402 = vmul.f32 %v2386, 0.7978846
  %v2403 = vmul.f32 %v2387, 0.7978846
  %v2404 = vtanh.pop %v2388
  %v2405 = vtanh.pop %v2389
  %v2406 = vtanh.pop %v2390
  %v2407 = vtanh.pop %v2391
  %v2408 = vtanh.pop %v2392
  %v2409 = vtanh.pop %v2393
  %v2410 = vtanh.pop %v2394
  %v2411 = vtanh.pop %v2395
  %v2412 = vtanh.pop %v2396
  %v2413 = vtanh.pop %v2397
  %v2414 = vtanh.pop %v2398
  %v2415 = vtanh.pop %v2399
  %v2416 = vtanh.pop %v2400
  %v2417 = vtanh.pop %v2401
  %v2418 = vtanh.pop %v2402
  %v2419 = vtanh.pop %v2403
  %v2420 = vadd.f32 %v2404, 1.0
  %v2421 = vadd.f32 %v2405, 1.0
  %v2422 = vadd.f32 %v2406, 1.0
  %v2423 = vadd.f32 %v2407, 1.0
  %v2424 = vadd.f32 %v2408, 1.0
  %v2425 = vadd.f32 %v2409, 1.0
  %v2426 = vadd.f32 %v2410, 1.0
  %v2427 = vadd.f32 %v2411, 1.0
  %v2428 = vadd.f32 %v2412, 1.0
  %v2429 = vadd.f32 %v2413, 1.0
  %v2430 = vadd.f32 %v2414, 1.0
  %v2431 = vadd.f32 %v2415, 1.0
  %v2432 = vadd.f32 %v2416, 1.0
  %v2433 = vadd.f32 %v2417, 1.0
  %v2434 = vadd.f32 %v2418, 1.0
  %v2435 = vadd.f32 %v2419, 1.0
  %v2436 = vmul.f32 %v2420, 0.5
  %v2437 = vmul.f32 %v2421, 0.5
  %v2438 = vmul.f32 %v2422, 0.5
  %v2439 = vmul.f32 %v2423, 0.5
  %v2440 = vmul.f32 %v2424, 0.5
  %v2441 = vmul.f32 %v2425, 0.5
  %v2442 = vmul.f32 %v2426, 0.5
  %v2443 = vmul.f32 %v2427, 0.5
  %v2444 = vmul.f32 %v2428, 0.5
  %v2445 = vmul.f32 %v2429, 0.5
  %v2446 = vmul.f32 %v2430, 0.5
  %v2447 = vmul.f32 %v2431, 0.5
  %v2448 = vmul.f32 %v2432, 0.5
  %v2449 = vmul.f32 %v2433, 0.5
  %v2450 = vmul.f32 %v2434, 0.5
  %v2451 = vmul.f32 %v2435, 0.5
  %v2452 = vmul.f32 %v2262, %v2436
  %v2453 = vmul.f32 %v2265, %v2437
  %v2454 = vmul.f32 %v2270, %v2438
  %v2455 = vmul.f32 %v2273, %v2439
  %v2456 = vmul.f32 %v2278, %v2440
  %v2457 = vmul.f32 %v2281, %v2441
  %v2458 = vmul.f32 %v2286, %v2442
  %v2459 = vmul.f32 %v2289, %v2443
  %v2460 = vmul.f32 %v2294, %v2444
  %v2461 = vmul.f32 %v2297, %v2445
  %v2462 = vmul.f32 %v2302, %v2446
  %v2463 = vmul.f32 %v2305, %v2447
  %v2464 = vmul.f32 %v2310, %v2448
  %v2465 = vmul.f32 %v2313, %v2449
  %v2466 = vmul.f32 %v2318, %v2450
  %v2467 = vmul.f32 %v2321, %v2451
  %v2468 = vpack.c.bf16 %v2453, %v2452
  %v2469 = vpack.c.bf16 %v2455, %v2454
  %v2470 = vpack.c.bf16 %v2457, %v2456
  %v2471 = vpack.c.bf16 %v2459, %v2458
  %v2472 = vpack.c.bf16 %v2461, %v2460
  %v2473 = vpack.c.bf16 %v2463, %v2462
  %v2474 = vpack.c.bf16 %v2465, %v2464
  %v2475 = vpack.c.bf16 %v2467, %v2466
  %v2476 = vld [vmem:[%s5] sm:$0xf]
  %v2477 = vld [vmem:[%s5 + $0x4] sm:$0xf]
  %v2478 = vld [vmem:[%s5 + $0x8] sm:$0xf]
  %v2479 = vld [vmem:[%s5 + $0xc] sm:$0xf]
  %v2480 = vld [vmem:[%s5 + $0x10] sm:$0xf]
  %v2481 = vld [vmem:[%s5 + $0x14] sm:$0xf]
  %v2482 = vld [vmem:[%s5 + $0x18] sm:$0xf]
  %v2483 = vld [vmem:[%s5 + $0x1c] sm:$0xf]
  %v2484 = vld [vmem:[%s5 + $0x20] sm:$0xf]
  %v2485 = vld [vmem:[%s5 + $0x24] sm:$0xf]
  %v2486 = vld [vmem:[%s5 + $0x28] sm:$0xf]
  %v2487 = vld [vmem:[%s5 + $0x2c] sm:$0xf]
  %v2488 = vld [vmem:[%s5 + $0x30] sm:$0xf]
  %v2489 = vld [vmem:[%s5 + $0x34] sm:$0xf]
  %v2490 = vld [vmem:[%s5 + $0x38] sm:$0xf]
  %v2491 = vld [vmem:[%s5 + $0x3c] sm:$0xf]
  %v2492 = vlaneseq
  %v2493 = vshrl.u32 %v2492, 7
  %v2494 = vsub.s32 7, %v2493
  %v2495 = vrot.slane %v40, %v2494
  %v2512 = vunpack.c.l.b16 %v2476
  %v2513 = vunpack.c.l.b16 %v2477
  %v2514 = vunpack.c.l.b16 %v2478
  %v2515 = vunpack.c.l.b16 %v2479
  %v2516 = vunpack.c.l.b16 %v2480
  %v2517 = vunpack.c.l.b16 %v2481
  %v2518 = vunpack.c.l.b16 %v2482
  %v2519 = vunpack.c.l.b16 %v2483
  %v2520 = vunpack.c.l.b16 %v2484
  %v2521 = vunpack.c.l.b16 %v2485
  %v2522 = vunpack.c.l.b16 %v2486
  %v2523 = vunpack.c.l.b16 %v2487
  %v2524 = vunpack.c.l.b16 %v2488
  %v2525 = vunpack.c.l.b16 %v2489
  %v2526 = vunpack.c.l.b16 %v2490
  %v2527 = vunpack.c.l.b16 %v2491
  %v2528 = vpack.c.b16 %v2513, %v2512
  %v2529 = vpack.c.b16 %v2515, %v2514
  %v2530 = vpack.c.b16 %v2517, %v2516
  %v2531 = vpack.c.b16 %v2519, %v2518
  %v2532 = vpack.c.b16 %v2521, %v2520
  %v2533 = vpack.c.b16 %v2523, %v2522
  %v2534 = vpack.c.b16 %v2525, %v2524
  %v2535 = vpack.c.b16 %v2527, %v2526
  %2544 = vmatprep.subr.bf16.mxu0 0
  %2545 = vmatpush1.bf16.msra.mxu0 %v2535
  %2546 = vmatprep.subr.bf16.mxu0 0
  %2547 = vmatpush1.bf16.msra.mxu0 %v2534
  %2548 = vmatprep.subr.bf16.mxu0 0
  %2549 = vmatpush1.bf16.msra.mxu0 %v2533
  %2550 = vmatprep.subr.bf16.mxu0 0
  %2551 = vmatpush1.bf16.msra.mxu0 %v2532
  %2552 = vmatprep.subr.bf16.mxu0 0
  %2553 = vmatpush1.bf16.msra.mxu0 %v2531
  %2554 = vmatprep.subr.bf16.mxu0 0
  %2555 = vmatpush1.bf16.msra.mxu0 %v2530
  %2556 = vmatprep.subr.bf16.mxu0 0
  %2557 = vmatpush1.bf16.msra.mxu0 %v2529
  %2558 = vmatprep.subr.bf16.mxu0 0
  %2559 = vmatpush1.bf16.msra.mxu0 %v2528
  %2560 = vmatprep.subr.bf16.mxu0 0
  %2561 = vmatpush2.bf16.msra.mxu0 0
  %2562 = vmatprep.subr.bf16.mxu0 0
  %2563 = vmatpush2.bf16.msra.mxu0 0
  %2564 = vmatprep.subr.bf16.mxu0 0
  %2565 = vmatpush2.bf16.msra.mxu0 0
  %2566 = vmatprep.subr.bf16.mxu0 0
  %2567 = vmatpush2.bf16.msra.mxu0 0
  %2568 = vmatprep.subr.bf16.mxu0 0
  %2569 = vmatpush2.bf16.msra.mxu0 0
  %2570 = vmatprep.subr.bf16.mxu0 0
  %2571 = vmatpush2.bf16.msra.mxu0 0
  %2572 = vmatprep.subr.bf16.mxu0 0
  %2573 = vmatpush2.bf16.msra.mxu0 0
  %2574 = vmatprep.subr.bf16.mxu0 0
  %2575 = vmatpush2.bf16.msra.mxu0 0
  %2576 = vmatprep.mubr.bf16.mxu0 0
  %2577 = vmatmul.mubr.bf16.gmra.mxu0 %v2468
  %v2578 = vpop.f32.mrf.mxu0
  %v2579 = vadd.f32 %v2495, %v2578
  %v2580 = vpop.f32.mrf.mxu0
  %v2581 = vpop.f32.mrf.mxu0
  %v2582 = vadd.f32 %v2495, %v2581
  %v2583 = vpop.f32.mrf.mxu0
  %2584 = vmatprep.mubr.bf16.mxu0 0
  %2585 = vmatmul.mubr.bf16.gmra.mxu0 %v2469
  %v2586 = vpop.f32.mrf.mxu0
  %v2587 = vadd.f32 %v2495, %v2586
  %v2588 = vpop.f32.mrf.mxu0
  %v2589 = vpop.f32.mrf.mxu0
  %v2590 = vadd.f32 %v2495, %v2589
  %v2591 = vpop.f32.mrf.mxu0
  %2592 = vmatprep.mubr.bf16.mxu0 0
  %2593 = vmatmul.mubr.bf16.gmra.mxu0 %v2470
  %v2594 = vpop.f32.mrf.mxu0
  %v2595 = vadd.f32 %v2495, %v2594
  %v2596 = vpop.f32.mrf.mxu0
  %v2597 = vpop.f32.mrf.mxu0
  %v2598 = vadd.f32 %v2495, %v2597
  %v2599 = vpop.f32.mrf.mxu0
  %2600 = vmatprep.mubr.bf16.mxu0 0
  %2601 = vmatmul.mubr.bf16.gmra.mxu0 %v2471
  %v2602 = vpop.f32.mrf.mxu0
  %v2603 = vadd.f32 %v2495, %v2602
  %v2604 = vpop.f32.mrf.mxu0
  %v2605 = vpop.f32.mrf.mxu0
  %v2606 = vadd.f32 %v2495, %v2605
  %v2607 = vpop.f32.mrf.mxu0
  %2608 = vmatprep.mubr.bf16.mxu0 0
  %2609 = vmatmul.mubr.bf16.gmra.mxu0 %v2472
  %v2610 = vpop.f32.mrf.mxu0
  %v2611 = vadd.f32 %v2495, %v2610
  %v2612 = vpop.f32.mrf.mxu0
  %v2613 = vpop.f32.mrf.mxu0
  %v2614 = vadd.f32 %v2495, %v2613
  %v2615 = vpop.f32.mrf.mxu0
  %2616 = vmatprep.mubr.bf16.mxu0 0
  %2617 = vmatmul.mubr.bf16.gmra.mxu0 %v2473
  %v2618 = vpop.f32.mrf.mxu0
  %v2619 = vadd.f32 %v2495, %v2618
  %v2620 = vpop.f32.mrf.mxu0
  %v2621 = vpop.f32.mrf.mxu0
  %v2622 = vadd.f32 %v2495, %v2621
  %v2623 = vpop.f32.mrf.mxu0
  %2624 = vmatprep.mubr.bf16.mxu0 0
  %2625 = vmatmul.mubr.bf16.gmra.mxu0 %v2474
  %v2626 = vpop.f32.mrf.mxu0
  %v2627 = vadd.f32 %v2495, %v2626
  %v2628 = vpop.f32.mrf.mxu0
  %v2629 = vpop.f32.mrf.mxu0
  %v2630 = vadd.f32 %v2495, %v2629
  %v2631 = vpop.f32.mrf.mxu0
  %2632 = vmatprep.mubr.bf16.mxu0 0
  %2633 = vmatmul.mubr.bf16.gmra.mxu0 %v2475
  %v2634 = vpop.f32.mrf.mxu0
  %v2635 = vadd.f32 %v2495, %v2634
  %v2636 = vpop.f32.mrf.mxu0
  %v2637 = vpop.f32.mrf.mxu0
  %v2638 = vadd.f32 %v2495, %v2637
  %v2639 = vpop.f32.mrf.mxu0
  %2640 = vdwg.mxu0
  %v2641 = vadd.f32 %v1879, %v2579
  %v2642 = vadd.f32 %v1880, %v2582
  %v2643 = vadd.f32 %v1881, %v2587
  %v2644 = vadd.f32 %v1882, %v2590
  %v2645 = vadd.f32 %v1883, %v2595
  %v2646 = vadd.f32 %v1884, %v2598
  %v2647 = vadd.f32 %v1885, %v2603
  %v2648 = vadd.f32 %v1886, %v2606
  %v2649 = vadd.f32 %v1887, %v2611
  %v2650 = vadd.f32 %v1888, %v2614
  %v2651 = vadd.f32 %v1889, %v2619
  %v2652 = vadd.f32 %v1890, %v2622
  %v2653 = vadd.f32 %v1891, %v2627
  %v2654 = vadd.f32 %v1892, %v2630
  %v2655 = vadd.f32 %v1893, %v2635
  %v2656 = vadd.f32 %v1894, %v2638
  %s2657 = scalar_lea.vmem %s1, 8
  %v2658 = vld [vmem:[%s2657] sm:$0xff]
  %v2659 = vsel %vm41, %v2641, 0.0
  %2660 = vadd.xlane.f32.xlu0 %v2659
  %v2661 = vpop.xlane.xlu0 %2660
  %v2662 = vsel %vm41, %v2642, 0.0
  %2663 = vadd.xlane.f32.xlu0 %v2662
  %v2664 = vpop.xlane.xlu0 %2663
  %v2665 = vsel %vm41, %v2643, 0.0
  %2666 = vadd.xlane.f32.xlu0 %v2665
  %v2667 = vpop.xlane.xlu0 %2666
  %v2668 = vsel %vm41, %v2644, 0.0
  %2669 = vadd.xlane.f32.xlu0 %v2668
  %v2670 = vpop.xlane.xlu0 %2669
  %v2671 = vsel %vm41, %v2645, 0.0
  %2672 = vadd.xlane.f32.xlu0 %v2671
  %v2673 = vpop.xlane.xlu0 %2672
  %v2674 = vsel %vm41, %v2646, 0.0
  %2675 = vadd.xlane.f32.xlu0 %v2674
  %v2676 = vpop.xlane.xlu0 %2675
  %v2677 = vsel %vm41, %v2647, 0.0
  %2678 = vadd.xlane.f32.xlu0 %v2677
  %v2679 = vpop.xlane.xlu0 %2678
  %v2680 = vsel %vm41, %v2648, 0.0
  %2681 = vadd.xlane.f32.xlu0 %v2680
  %v2682 = vpop.xlane.xlu0 %2681
  %v2683 = vsel %vm41, %v2649, 0.0
  %2684 = vadd.xlane.f32.xlu0 %v2683
  %v2685 = vpop.xlane.xlu0 %2684
  %v2686 = vsel %vm41, %v2650, 0.0
  %2687 = vadd.xlane.f32.xlu0 %v2686
  %v2688 = vpop.xlane.xlu0 %2687
  %v2689 = vsel %vm41, %v2651, 0.0
  %2690 = vadd.xlane.f32.xlu0 %v2689
  %v2691 = vpop.xlane.xlu0 %2690
  %v2692 = vsel %vm41, %v2652, 0.0
  %2693 = vadd.xlane.f32.xlu0 %v2692
  %v2694 = vpop.xlane.xlu0 %2693
  %v2695 = vsel %vm41, %v2653, 0.0
  %2696 = vadd.xlane.f32.xlu0 %v2695
  %v2697 = vpop.xlane.xlu0 %2696
  %v2698 = vsel %vm41, %v2654, 0.0
  %2699 = vadd.xlane.f32.xlu0 %v2698
  %v2700 = vpop.xlane.xlu0 %2699
  %v2701 = vsel %vm41, %v2655, 0.0
  %2702 = vadd.xlane.f32.xlu0 %v2701
  %v2703 = vpop.xlane.xlu0 %2702
  %v2704 = vsel %vm41, %v2656, 0.0
  %2705 = vadd.xlane.f32.xlu0 %v2704
  %v2706 = vpop.xlane.xlu0 %2705
  %v2707 = vmul.f32 %v2661, %v90
  %v2708 = vmul.f32 %v2664, %v90
  %v2709 = vmul.f32 %v2667, %v90
  %v2710 = vmul.f32 %v2670, %v90
  %v2711 = vmul.f32 %v2673, %v90
  %v2712 = vmul.f32 %v2676, %v90
  %v2713 = vmul.f32 %v2679, %v90
  %v2714 = vmul.f32 %v2682, %v90
  %v2715 = vmul.f32 %v2685, %v90
  %v2716 = vmul.f32 %v2688, %v90
  %v2717 = vmul.f32 %v2691, %v90
  %v2718 = vmul.f32 %v2694, %v90
  %v2719 = vmul.f32 %v2697, %v90
  %v2720 = vmul.f32 %v2700, %v90
  %v2721 = vmul.f32 %v2703, %v90
  %v2722 = vmul.f32 %v2706, %v90
  %v2723 = vmul.f32 %v2641, %v2641
  %v2724 = vmul.f32 %v2642, %v2642
  %v2725 = vmul.f32 %v2643, %v2643
  %v2726 = vmul.f32 %v2644, %v2644
  %v2727 = vmul.f32 %v2645, %v2645
  %v2728 = vmul.f32 %v2646, %v2646
  %v2729 = vmul.f32 %v2647, %v2647
  %v2730 = vmul.f32 %v2648, %v2648
  %v2731 = vmul.f32 %v2649, %v2649
  %v2732 = vmul.f32 %v2650, %v2650
  %v2733 = vmul.f32 %v2651, %v2651
  %v2734 = vmul.f32 %v2652, %v2652
  %v2735 = vmul.f32 %v2653, %v2653
  %v2736 = vmul.f32 %v2654, %v2654
  %v2737 = vmul.f32 %v2655, %v2655
  %v2738 = vmul.f32 %v2656, %v2656
  %v2739 = vsel %vm41, %v2723, 0.0
  %2740 = vadd.xlane.f32.xlu0 %v2739
  %v2741 = vpop.xlane.xlu0 %2740
  %v2742 = vsel %vm41, %v2724, 0.0
  %2743 = vadd.xlane.f32.xlu0 %v2742
  %v2744 = vpop.xlane.xlu0 %2743
  %v2745 = vsel %vm41, %v2725, 0.0
  %2746 = vadd.xlane.f32.xlu0 %v2745
  %v2747 = vpop.xlane.xlu0 %2746
  %v2748 = vsel %vm41, %v2726, 0.0
  %2749 = vadd.xlane.f32.xlu0 %v2748
  %v2750 = vpop.xlane.xlu0 %2749
  %v2751 = vsel %vm41, %v2727, 0.0
  %2752 = vadd.xlane.f32.xlu0 %v2751
  %v2753 = vpop.xlane.xlu0 %2752
  %v2754 = vsel %vm41, %v2728, 0.0
  %2755 = vadd.xlane.f32.xlu0 %v2754
  %v2756 = vpop.xlane.xlu0 %2755
  %v2757 = vsel %vm41, %v2729, 0.0
  %2758 = vadd.xlane.f32.xlu0 %v2757
  %v2759 = vpop.xlane.xlu0 %2758
  %v2760 = vsel %vm41, %v2730, 0.0
  %2761 = vadd.xlane.f32.xlu0 %v2760
  %v2762 = vpop.xlane.xlu0 %2761
  %v2763 = vsel %vm41, %v2731, 0.0
  %2764 = vadd.xlane.f32.xlu0 %v2763
  %v2765 = vpop.xlane.xlu0 %2764
  %v2766 = vsel %vm41, %v2732, 0.0
  %2767 = vadd.xlane.f32.xlu0 %v2766
  %v2768 = vpop.xlane.xlu0 %2767
  %v2769 = vsel %vm41, %v2733, 0.0
  %2770 = vadd.xlane.f32.xlu0 %v2769
  %v2771 = vpop.xlane.xlu0 %2770
  %v2772 = vsel %vm41, %v2734, 0.0
  %2773 = vadd.xlane.f32.xlu0 %v2772
  %v2774 = vpop.xlane.xlu0 %2773
  %v2775 = vsel %vm41, %v2735, 0.0
  %2776 = vadd.xlane.f32.xlu0 %v2775
  %v2777 = vpop.xlane.xlu0 %2776
  %v2778 = vsel %vm41, %v2736, 0.0
  %2779 = vadd.xlane.f32.xlu0 %v2778
  %v2780 = vpop.xlane.xlu0 %2779
  %v2781 = vsel %vm41, %v2737, 0.0
  %2782 = vadd.xlane.f32.xlu0 %v2781
  %v2783 = vpop.xlane.xlu0 %2782
  %v2784 = vsel %vm41, %v2738, 0.0
  %2785 = vadd.xlane.f32.xlu0 %v2784
  %v2786 = vpop.xlane.xlu0 %2785
  %v2787 = vmul.f32 %v2741, %v90
  %v2788 = vmul.f32 %v2744, %v90
  %v2789 = vmul.f32 %v2747, %v90
  %v2790 = vmul.f32 %v2750, %v90
  %v2791 = vmul.f32 %v2753, %v90
  %v2792 = vmul.f32 %v2756, %v90
  %v2793 = vmul.f32 %v2759, %v90
  %v2794 = vmul.f32 %v2762, %v90
  %v2795 = vmul.f32 %v2765, %v90
  %v2796 = vmul.f32 %v2768, %v90
  %v2797 = vmul.f32 %v2771, %v90
  %v2798 = vmul.f32 %v2774, %v90
  %v2799 = vmul.f32 %v2777, %v90
  %v2800 = vmul.f32 %v2780, %v90
  %v2801 = vmul.f32 %v2783, %v90
  %v2802 = vmul.f32 %v2786, %v90
  %v2803 = vmul.f32 %v2707, %v2707
  %v2804 = vmul.f32 %v2708, %v2708
  %v2805 = vmul.f32 %v2709, %v2709
  %v2806 = vmul.f32 %v2710, %v2710
  %v2807 = vmul.f32 %v2711, %v2711
  %v2808 = vmul.f32 %v2712, %v2712
  %v2809 = vmul.f32 %v2713, %v2713
  %v2810 = vmul.f32 %v2714, %v2714
  %v2811 = vmul.f32 %v2715, %v2715
  %v2812 = vmul.f32 %v2716, %v2716
  %v2813 = vmul.f32 %v2717, %v2717
  %v2814 = vmul.f32 %v2718, %v2718
  %v2815 = vmul.f32 %v2719, %v2719
  %v2816 = vmul.f32 %v2720, %v2720
  %v2817 = vmul.f32 %v2721, %v2721
  %v2818 = vmul.f32 %v2722, %v2722
  %v2819 = vsub.f32 %v2787, %v2803
  %v2820 = vsub.f32 %v2788, %v2804
  %v2821 = vsub.f32 %v2789, %v2805
  %v2822 = vsub.f32 %v2790, %v2806
  %v2823 = vsub.f32 %v2791, %v2807
  %v2824 = vsub.f32 %v2792, %v2808
  %v2825 = vsub.f32 %v2793, %v2809
  %v2826 = vsub.f32 %v2794, %v2810
  %v2827 = vsub.f32 %v2795, %v2811
  %v2828 = vsub.f32 %v2796, %v2812
  %v2829 = vsub.f32 %v2797, %v2813
  %v2830 = vsub.f32 %v2798, %v2814
  %v2831 = vsub.f32 %v2799, %v2815
  %v2832 = vsub.f32 %v2800, %v2816
  %v2833 = vsub.f32 %v2801, %v2817
  %v2834 = vsub.f32 %v2802, %v2818
  %v2835 = vsub.f32 %v2641, %v2707
  %v2836 = vsub.f32 %v2642, %v2708
  %v2837 = vsub.f32 %v2643, %v2709
  %v2838 = vsub.f32 %v2644, %v2710
  %v2839 = vsub.f32 %v2645, %v2711
  %v2840 = vsub.f32 %v2646, %v2712
  %v2841 = vsub.f32 %v2647, %v2713
  %v2842 = vsub.f32 %v2648, %v2714
  %v2843 = vsub.f32 %v2649, %v2715
  %v2844 = vsub.f32 %v2650, %v2716
  %v2845 = vsub.f32 %v2651, %v2717
  %v2846 = vsub.f32 %v2652, %v2718
  %v2847 = vsub.f32 %v2653, %v2719
  %v2848 = vsub.f32 %v2654, %v2720
  %v2849 = vsub.f32 %v2655, %v2721
  %v2850 = vsub.f32 %v2656, %v2722
  %v2851 = vadd.f32 %v2819, 1e-06
  %v2852 = vadd.f32 %v2820, 1e-06
  %v2853 = vadd.f32 %v2821, 1e-06
  %v2854 = vadd.f32 %v2822, 1e-06
  %v2855 = vadd.f32 %v2823, 1e-06
  %v2856 = vadd.f32 %v2824, 1e-06
  %v2857 = vadd.f32 %v2825, 1e-06
  %v2858 = vadd.f32 %v2826, 1e-06
  %v2859 = vadd.f32 %v2827, 1e-06
  %v2860 = vadd.f32 %v2828, 1e-06
  %v2861 = vadd.f32 %v2829, 1e-06
  %v2862 = vadd.f32 %v2830, 1e-06
  %v2863 = vadd.f32 %v2831, 1e-06
  %v2864 = vadd.f32 %v2832, 1e-06
  %v2865 = vadd.f32 %v2833, 1e-06
  %v2866 = vadd.f32 %v2834, 1e-06
  %v2867 = vrsqrt.pop %v2851
  %v2868 = vrsqrt.pop %v2852
  %v2869 = vrsqrt.pop %v2853
  %v2870 = vrsqrt.pop %v2854
  %v2871 = vrsqrt.pop %v2855
  %v2872 = vrsqrt.pop %v2856
  %v2873 = vrsqrt.pop %v2857
  %v2874 = vrsqrt.pop %v2858
  %v2875 = vrsqrt.pop %v2859
  %v2876 = vrsqrt.pop %v2860
  %v2877 = vrsqrt.pop %v2861
  %v2878 = vrsqrt.pop %v2862
  %v2879 = vrsqrt.pop %v2863
  %v2880 = vrsqrt.pop %v2864
  %v2881 = vrsqrt.pop %v2865
  %v2882 = vrsqrt.pop %v2866
  %v2883 = vmul.f32 %v2835, %v2867
  %v2884 = vmul.f32 %v2836, %v2868
  %v2885 = vmul.f32 %v2837, %v2869
  %v2886 = vmul.f32 %v2838, %v2870
  %v2887 = vmul.f32 %v2839, %v2871
  %v2888 = vmul.f32 %v2840, %v2872
  %v2889 = vmul.f32 %v2841, %v2873
  %v2890 = vmul.f32 %v2842, %v2874
  %v2891 = vmul.f32 %v2843, %v2875
  %v2892 = vmul.f32 %v2844, %v2876
  %v2893 = vmul.f32 %v2845, %v2877
  %v2894 = vmul.f32 %v2846, %v2878
  %v2895 = vmul.f32 %v2847, %v2879
  %v2896 = vmul.f32 %v2848, %v2880
  %v2897 = vmul.f32 %v2849, %v2881
  %v2898 = vmul.f32 %v2850, %v2882
  %v2899 = vlaneseq
  %v2900 = vshrl.u32 %v2899, 7
  %v2901 = vsub.s32 0, %v2900
  %v2902 = vrot.slane %v2658, %v2901
  %v2903 = vmul.f32 %v2883, %v2902
  %v2904 = vmul.f32 %v2884, %v2902
  %v2905 = vmul.f32 %v2885, %v2902
  %v2906 = vmul.f32 %v2886, %v2902
  %v2907 = vmul.f32 %v2887, %v2902
  %v2908 = vmul.f32 %v2888, %v2902
  %v2909 = vmul.f32 %v2889, %v2902
  %v2910 = vmul.f32 %v2890, %v2902
  %v2911 = vmul.f32 %v2891, %v2902
  %v2912 = vmul.f32 %v2892, %v2902
  %v2913 = vmul.f32 %v2893, %v2902
  %v2914 = vmul.f32 %v2894, %v2902
  %v2915 = vmul.f32 %v2895, %v2902
  %v2916 = vmul.f32 %v2896, %v2902
  %v2917 = vmul.f32 %v2897, %v2902
  %v2918 = vmul.f32 %v2898, %v2902
  %v2919 = vlaneseq
  %v2920 = vshrl.u32 %v2919, 7
  %v2921 = vsub.s32 1, %v2920
  %v2922 = vrot.slane %v2658, %v2921
  %v2923 = vadd.f32 %v2903, %v2922
  %v2924 = vadd.f32 %v2904, %v2922
  %v2925 = vadd.f32 %v2905, %v2922
  %v2926 = vadd.f32 %v2906, %v2922
  %v2927 = vadd.f32 %v2907, %v2922
  %v2928 = vadd.f32 %v2908, %v2922
  %v2929 = vadd.f32 %v2909, %v2922
  %v2930 = vadd.f32 %v2910, %v2922
  %v2931 = vadd.f32 %v2911, %v2922
  %v2932 = vadd.f32 %v2912, %v2922
  %v2933 = vadd.f32 %v2913, %v2922
  %v2934 = vadd.f32 %v2914, %v2922
  %v2935 = vadd.f32 %v2915, %v2922
  %v2936 = vadd.f32 %v2916, %v2922
  %v2937 = vadd.f32 %v2917, %v2922
  %v2938 = vadd.f32 %v2918, %v2922
  %v2939 = vpack.c.bf16 %v2924, %v2923
  %v2940 = vpack.c.bf16 %v2926, %v2925
  %v2941 = vpack.c.bf16 %v2928, %v2927
  %v2942 = vpack.c.bf16 %v2930, %v2929
  %v2943 = vpack.c.bf16 %v2932, %v2931
  %v2944 = vpack.c.bf16 %v2934, %v2933
  %v2945 = vpack.c.bf16 %v2936, %v2935
  %v2946 = vpack.c.bf16 %v2938, %v2937
  %s2947 = scalar_lea.vmem %s2, 16
  %v2948 = vld [vmem:[%s2947] sm:$0xf]
  %v2949 = vld [vmem:[%s2947 + $0x4] sm:$0xf]
  %v2950 = vld [vmem:[%s2947 + $0x8] sm:$0xf]
  %v2951 = vld [vmem:[%s2947 + $0xc] sm:$0xf]
  %v2952 = vlaneseq
  %v2953 = vshrl.u32 %v2952, 7
  %v2954 = vsub.s32 4, %v2953
  %v2955 = vrot.slane %v2658, %v2954
  %v2960 = vunpack.c.l.b16 %v2948
  %v2961 = vunpack.c.l.b16 %v2949
  %v2962 = vunpack.c.l.b16 %v2950
  %v2963 = vunpack.c.l.b16 %v2951
  %v2964 = vpack.c.b16 %v2961, %v2960
  %v2965 = vpack.c.b16 %v2963, %v2962
  %v2969 = vsel %vm41, %v2939, 0
  %v2972 = vsel %vm41, %v2940, 0
  %v2975 = vsel %vm41, %v2941, 0
  %v2978 = vsel %vm41, %v2942, 0
  %v2981 = vsel %vm41, %v2943, 0
  %v2984 = vsel %vm41, %v2944, 0
  %v2987 = vsel %vm41, %v2945, 0
  %v2990 = vsel %vm41, %v2946, 0
  %2992 = vmatprep.subr.bf16.mxu0 0
  %2993 = vmatpush1.bf16.msra.mxu0 0
  %2994 = vmatprep.subr.bf16.mxu0 0
  %2995 = vmatpush1.bf16.msra.mxu0 0
  %2996 = vmatprep.subr.bf16.mxu0 0
  %2997 = vmatpush1.bf16.msra.mxu0 0
  %2998 = vmatprep.subr.bf16.mxu0 0
  %2999 = vmatpush1.bf16.msra.mxu0 0
  %3000 = vmatprep.subr.bf16.mxu0 0
  %3001 = vmatpush1.bf16.msra.mxu0 0
  %3002 = vmatprep.subr.bf16.mxu0 0
  %3003 = vmatpush1.bf16.msra.mxu0 0
  %3004 = vmatprep.subr.bf16.mxu0 0
  %3005 = vmatpush1.bf16.msra.mxu0 %v2965
  %3006 = vmatprep.subr.bf16.mxu0 0
  %3007 = vmatpush1.bf16.msra.mxu0 %v2964
  %3008 = vmatprep.subr.bf16.mxu0 0
  %3009 = vmatpush2.bf16.msra.mxu0 0
  %3010 = vmatprep.subr.bf16.mxu0 0
  %3011 = vmatpush2.bf16.msra.mxu0 0
  %3012 = vmatprep.subr.bf16.mxu0 0
  %3013 = vmatpush2.bf16.msra.mxu0 0
  %3014 = vmatprep.subr.bf16.mxu0 0
  %3015 = vmatpush2.bf16.msra.mxu0 0
  %3016 = vmatprep.subr.bf16.mxu0 0
  %3017 = vmatpush2.bf16.msra.mxu0 0
  %3018 = vmatprep.subr.bf16.mxu0 0
  %3019 = vmatpush2.bf16.msra.mxu0 0
  %3020 = vmatprep.subr.bf16.mxu0 0
  %3021 = vmatpush2.bf16.msra.mxu0 0
  %3022 = vmatprep.subr.bf16.mxu0 0
  %3023 = vmatpush2.bf16.msra.mxu0 0
  %3024 = vmatprep.mubr.bf16.mxu0 0
  %3025 = vmatmul.mubr.bf16.gmra.mxu0 %v2969
  %v3026 = vpop.f32.mrf.mxu0
  %v3027 = vadd.f32 %v2955, %v3026
  %v3028 = vpop.f32.mrf.mxu0
  %v3029 = vpop.f32.mrf.mxu0
  %v3030 = vadd.f32 %v2955, %v3029
  %v3031 = vpop.f32.mrf.mxu0
  %3032 = vmatprep.mubr.bf16.mxu0 0
  %3033 = vmatmul.mubr.bf16.gmra.mxu0 %v2972
  %v3034 = vpop.f32.mrf.mxu0
  %v3035 = vadd.f32 %v2955, %v3034
  %v3036 = vpop.f32.mrf.mxu0
  %v3037 = vpop.f32.mrf.mxu0
  %v3038 = vadd.f32 %v2955, %v3037
  %v3039 = vpop.f32.mrf.mxu0
  %3040 = vmatprep.mubr.bf16.mxu0 0
  %3041 = vmatmul.mubr.bf16.gmra.mxu0 %v2975
  %v3042 = vpop.f32.mrf.mxu0
  %v3043 = vadd.f32 %v2955, %v3042
  %v3044 = vpop.f32.mrf.mxu0
  %v3045 = vpop.f32.mrf.mxu0
  %v3046 = vadd.f32 %v2955, %v3045
  %v3047 = vpop.f32.mrf.mxu0
  %3048 = vmatprep.mubr.bf16.mxu0 0
  %3049 = vmatmul.mubr.bf16.gmra.mxu0 %v2978
  %v3050 = vpop.f32.mrf.mxu0
  %v3051 = vadd.f32 %v2955, %v3050
  %v3052 = vpop.f32.mrf.mxu0
  %v3053 = vpop.f32.mrf.mxu0
  %v3054 = vadd.f32 %v2955, %v3053
  %v3055 = vpop.f32.mrf.mxu0
  %3056 = vmatprep.mubr.bf16.mxu0 0
  %3057 = vmatmul.mubr.bf16.gmra.mxu0 %v2981
  %v3058 = vpop.f32.mrf.mxu0
  %v3059 = vadd.f32 %v2955, %v3058
  %v3060 = vpop.f32.mrf.mxu0
  %v3061 = vpop.f32.mrf.mxu0
  %v3062 = vadd.f32 %v2955, %v3061
  %v3063 = vpop.f32.mrf.mxu0
  %3064 = vmatprep.mubr.bf16.mxu0 0
  %3065 = vmatmul.mubr.bf16.gmra.mxu0 %v2984
  %v3066 = vpop.f32.mrf.mxu0
  %v3067 = vadd.f32 %v2955, %v3066
  %v3068 = vpop.f32.mrf.mxu0
  %v3069 = vpop.f32.mrf.mxu0
  %v3070 = vadd.f32 %v2955, %v3069
  %v3071 = vpop.f32.mrf.mxu0
  %3072 = vmatprep.mubr.bf16.mxu0 0
  %3073 = vmatmul.mubr.bf16.gmra.mxu0 %v2987
  %v3074 = vpop.f32.mrf.mxu0
  %v3075 = vadd.f32 %v2955, %v3074
  %v3076 = vpop.f32.mrf.mxu0
  %v3077 = vpop.f32.mrf.mxu0
  %v3078 = vadd.f32 %v2955, %v3077
  %v3079 = vpop.f32.mrf.mxu0
  %3080 = vmatprep.mubr.bf16.mxu0 0
  %3081 = vmatmul.mubr.bf16.gmra.mxu0 %v2990
  %v3082 = vpop.f32.mrf.mxu0
  %v3083 = vadd.f32 %v2955, %v3082
  %v3084 = vpop.f32.mrf.mxu0
  %v3085 = vpop.f32.mrf.mxu0
  %v3086 = vadd.f32 %v2955, %v3085
  %v3087 = vpop.f32.mrf.mxu0
  %3088 = vdwg.mxu0
  %v3089 = vpack.c.bf16 %v3030, %v3027
  %v3090 = vpack.c.bf16 %v3038, %v3035
  %v3091 = vpack.c.bf16 %v3046, %v3043
  %v3092 = vpack.c.bf16 %v3054, %v3051
  %v3093 = vpack.c.bf16 %v3062, %v3059
  %v3094 = vpack.c.bf16 %v3070, %v3067
  %v3095 = vpack.c.bf16 %v3078, %v3075
  %v3096 = vpack.c.bf16 %v3086, %v3083
  %3101 = vrot.lane.b32.xlu0 %v3089, 96
  %v3102 = vpop.permute.xlu0 %3101
  %3103 = vrot.lane.b32.xlu0 %v3090, 96
  %v3104 = vpop.permute.xlu0 %3103
  %3105 = vrot.lane.b32.xlu0 %v3091, 96
  %v3106 = vpop.permute.xlu0 %3105
  %3107 = vrot.lane.b32.xlu0 %v3092, 96
  %v3108 = vpop.permute.xlu0 %3107
  %v3110 = vsel %vm492, %v3089, 0
  %v3113 = vsel %vm492, %v3090, 0
  %v3116 = vsel %vm492, %v3091, 0
  %v3119 = vsel %vm492, %v3092, 0
  %v3122 = vsel %vm492, %v3102, 0
  %v3125 = vsel %vm492, %v3104, 0
  %v3128 = vsel %vm492, %v3106, 0
  %v3131 = vsel %vm492, %v3108, 0
  %3133 = vmatprep.subr.bf16.mxu0 0
  %3134 = vmatpush1.bf16.xpose.msra.mxu0 0
  %3135 = vmatprep.subr.bf16.mxu0 0
  %3136 = vmatpush1.bf16.xpose.msra.mxu0 0
  %3137 = vmatprep.subr.bf16.mxu0 0
  %3138 = vmatpush1.bf16.xpose.msra.mxu0 0
  %3139 = vmatprep.subr.bf16.mxu0 0
  %3140 = vmatpush1.bf16.xpose.msra.mxu0 0
  %3141 = vmatprep.subr.bf16.mxu0 0
  %3142 = vmatpush1.bf16.xpose.msra.mxu0 %v3131
  %3143 = vmatprep.subr.bf16.mxu0 0
  %3144 = vmatpush1.bf16.xpose.msra.mxu0 %v3128
  %3145 = vmatprep.subr.bf16.mxu0 0
  %3146 = vmatpush1.bf16.xpose.msra.mxu0 %v3125
  %3147 = vmatprep.subr.bf16.mxu0 0
  %3148 = vmatpush1.bf16.xpose.msra.mxu0 %v3122
  %3149 = vmatprep.subr.bf16.mxu0 0
  %3150 = vmatpush2.bf16.xpose.msra.mxu0 0
  %3151 = vmatprep.subr.bf16.mxu0 0
  %3152 = vmatpush2.bf16.xpose.msra.mxu0 0
  %3153 = vmatprep.subr.bf16.mxu0 0
  %3154 = vmatpush2.bf16.xpose.msra.mxu0 0
  %3155 = vmatprep.subr.bf16.mxu0 0
  %3156 = vmatpush2.bf16.xpose.msra.mxu0 0
  %3157 = vmatprep.subr.bf16.mxu0 0
  %3158 = vmatpush2.bf16.xpose.msra.mxu0 0
  %3159 = vmatprep.subr.bf16.mxu0 0
  %3160 = vmatpush2.bf16.xpose.msra.mxu0 0
  %3161 = vmatprep.subr.bf16.mxu0 0
  %3162 = vmatpush2.bf16.xpose.msra.mxu0 0
  %3163 = vmatprep.subr.bf16.mxu0 0
  %3164 = vmatpush2.bf16.xpose.msra.mxu0 0
  %3165 = vmatprep.mubr.bf16.mxu0 0
  %3166 = vmatmul.mubr.bf16.gmra.mxu0 %v3110
  %v3167 = vpop.f32.mrf.mxu0
  %v3168 = vadd.f32 0.0, %v3167
  %v3169 = vpop.f32.mrf.mxu0
  %v3170 = vpop.f32.mrf.mxu0
  %v3171 = vadd.f32 0.0, %v3170
  %v3172 = vpop.f32.mrf.mxu0
  %3173 = vmatprep.mubr.bf16.mxu0 0
  %3174 = vmatmul.mubr.bf16.gmra.mxu0 %v3113
  %v3175 = vpop.f32.mrf.mxu0
  %v3176 = vadd.f32 0.0, %v3175
  %v3177 = vpop.f32.mrf.mxu0
  %v3178 = vpop.f32.mrf.mxu0
  %v3179 = vadd.f32 0.0, %v3178
  %v3180 = vpop.f32.mrf.mxu0
  %3181 = vmatprep.mubr.bf16.mxu0 0
  %3182 = vmatmul.mubr.bf16.gmra.mxu0 %v3116
  %v3183 = vpop.f32.mrf.mxu0
  %v3184 = vadd.f32 0.0, %v3183
  %v3185 = vpop.f32.mrf.mxu0
  %v3186 = vpop.f32.mrf.mxu0
  %v3187 = vadd.f32 0.0, %v3186
  %v3188 = vpop.f32.mrf.mxu0
  %3189 = vmatprep.mubr.bf16.mxu0 0
  %3190 = vmatmul.mubr.bf16.gmra.mxu0 %v3119
  %v3191 = vpop.f32.mrf.mxu0
  %v3192 = vadd.f32 0.0, %v3191
  %v3193 = vpop.f32.mrf.mxu0
  %v3194 = vpop.f32.mrf.mxu0
  %v3195 = vadd.f32 0.0, %v3194
  %v3196 = vpop.f32.mrf.mxu0
  %3197 = vdwg.mxu0
  %3202 = vrot.lane.b32.xlu0 %v3093, 96
  %v3203 = vpop.permute.xlu0 %3202
  %3204 = vrot.lane.b32.xlu0 %v3094, 96
  %v3205 = vpop.permute.xlu0 %3204
  %3206 = vrot.lane.b32.xlu0 %v3095, 96
  %v3207 = vpop.permute.xlu0 %3206
  %3208 = vrot.lane.b32.xlu0 %v3096, 96
  %v3209 = vpop.permute.xlu0 %3208
  %v3211 = vsel %vm492, %v3093, 0
  %v3214 = vsel %vm492, %v3094, 0
  %v3217 = vsel %vm492, %v3095, 0
  %v3220 = vsel %vm492, %v3096, 0
  %v3223 = vsel %vm492, %v3203, 0
  %v3226 = vsel %vm492, %v3205, 0
  %v3229 = vsel %vm492, %v3207, 0
  %v3232 = vsel %vm492, %v3209, 0
  %3234 = vmatprep.subr.bf16.mxu0 0
  %3235 = vmatpush1.bf16.xpose.msra.mxu0 0
  %3236 = vmatprep.subr.bf16.mxu0 0
  %3237 = vmatpush1.bf16.xpose.msra.mxu0 0
  %3238 = vmatprep.subr.bf16.mxu0 0
  %3239 = vmatpush1.bf16.xpose.msra.mxu0 0
  %3240 = vmatprep.subr.bf16.mxu0 0
  %3241 = vmatpush1.bf16.xpose.msra.mxu0 0
  %3242 = vmatprep.subr.bf16.mxu0 0
  %3243 = vmatpush1.bf16.xpose.msra.mxu0 %v3232
  %3244 = vmatprep.subr.bf16.mxu0 0
  %3245 = vmatpush1.bf16.xpose.msra.mxu0 %v3229
  %3246 = vmatprep.subr.bf16.mxu0 0
  %3247 = vmatpush1.bf16.xpose.msra.mxu0 %v3226
  %3248 = vmatprep.subr.bf16.mxu0 0
  %3249 = vmatpush1.bf16.xpose.msra.mxu0 %v3223
  %3250 = vmatprep.subr.bf16.mxu0 0
  %3251 = vmatpush2.bf16.xpose.msra.mxu0 0
  %3252 = vmatprep.subr.bf16.mxu0 0
  %3253 = vmatpush2.bf16.xpose.msra.mxu0 0
  %3254 = vmatprep.subr.bf16.mxu0 0
  %3255 = vmatpush2.bf16.xpose.msra.mxu0 0
  %3256 = vmatprep.subr.bf16.mxu0 0
  %3257 = vmatpush2.bf16.xpose.msra.mxu0 0
  %3258 = vmatprep.subr.bf16.mxu0 0
  %3259 = vmatpush2.bf16.xpose.msra.mxu0 0
  %3260 = vmatprep.subr.bf16.mxu0 0
  %3261 = vmatpush2.bf16.xpose.msra.mxu0 0
  %3262 = vmatprep.subr.bf16.mxu0 0
  %3263 = vmatpush2.bf16.xpose.msra.mxu0 0
  %3264 = vmatprep.subr.bf16.mxu0 0
  %3265 = vmatpush2.bf16.xpose.msra.mxu0 0
  %3266 = vmatprep.mubr.bf16.mxu0 0
  %3267 = vmatmul.mubr.bf16.gmra.mxu0 %v3211
  %v3268 = vpop.f32.mrf.mxu0
  %v3269 = vadd.f32 0.0, %v3268
  %v3270 = vpop.f32.mrf.mxu0
  %v3271 = vpop.f32.mrf.mxu0
  %v3272 = vadd.f32 0.0, %v3271
  %v3273 = vpop.f32.mrf.mxu0
  %3274 = vmatprep.mubr.bf16.mxu0 0
  %3275 = vmatmul.mubr.bf16.gmra.mxu0 %v3214
  %v3276 = vpop.f32.mrf.mxu0
  %v3277 = vadd.f32 0.0, %v3276
  %v3278 = vpop.f32.mrf.mxu0
  %v3279 = vpop.f32.mrf.mxu0
  %v3280 = vadd.f32 0.0, %v3279
  %v3281 = vpop.f32.mrf.mxu0
  %3282 = vmatprep.mubr.bf16.mxu0 0
  %3283 = vmatmul.mubr.bf16.gmra.mxu0 %v3217
  %v3284 = vpop.f32.mrf.mxu0
  %v3285 = vadd.f32 0.0, %v3284
  %v3286 = vpop.f32.mrf.mxu0
  %v3287 = vpop.f32.mrf.mxu0
  %v3288 = vadd.f32 0.0, %v3287
  %v3289 = vpop.f32.mrf.mxu0
  %3290 = vmatprep.mubr.bf16.mxu0 0
  %3291 = vmatmul.mubr.bf16.gmra.mxu0 %v3220
  %v3292 = vpop.f32.mrf.mxu0
  %v3293 = vadd.f32 0.0, %v3292
  %v3294 = vpop.f32.mrf.mxu0
  %v3295 = vpop.f32.mrf.mxu0
  %v3296 = vadd.f32 0.0, %v3295
  %v3297 = vpop.f32.mrf.mxu0
  %3298 = vdwg.mxu0
  %v3299 = vsel %vm683, %v3168, -inf
  %3300 = vmax.xlane.f32.xlu0 %v3299
  %v3301 = vpop.xlane.xlu0 %3300
  %v3302 = vsel %vm683, %v3171, -inf
  %3303 = vmax.xlane.f32.xlu0 %v3302
  %v3304 = vpop.xlane.xlu0 %3303
  %v3305 = vsel %vm683, %v3176, -inf
  %3306 = vmax.xlane.f32.xlu0 %v3305
  %v3307 = vpop.xlane.xlu0 %3306
  %v3308 = vsel %vm683, %v3179, -inf
  %3309 = vmax.xlane.f32.xlu0 %v3308
  %v3310 = vpop.xlane.xlu0 %3309
  %v3311 = vsel %vm683, %v3184, -inf
  %3312 = vmax.xlane.f32.xlu0 %v3311
  %v3313 = vpop.xlane.xlu0 %3312
  %v3314 = vsel %vm683, %v3187, -inf
  %3315 = vmax.xlane.f32.xlu0 %v3314
  %v3316 = vpop.xlane.xlu0 %3315
  %v3317 = vsel %vm683, %v3192, -inf
  %3318 = vmax.xlane.f32.xlu0 %v3317
  %v3319 = vpop.xlane.xlu0 %3318
  %v3320 = vsel %vm683, %v3195, -inf
  %3321 = vmax.xlane.f32.xlu0 %v3320
  %v3322 = vpop.xlane.xlu0 %3321
  %v3323 = vsel %vm683, %v3269, -inf
  %3324 = vmax.xlane.f32.xlu0 %v3323
  %v3325 = vpop.xlane.xlu0 %3324
  %v3326 = vsel %vm683, %v3272, -inf
  %3327 = vmax.xlane.f32.xlu0 %v3326
  %v3328 = vpop.xlane.xlu0 %3327
  %v3329 = vsel %vm683, %v3277, -inf
  %3330 = vmax.xlane.f32.xlu0 %v3329
  %v3331 = vpop.xlane.xlu0 %3330
  %v3332 = vsel %vm683, %v3280, -inf
  %3333 = vmax.xlane.f32.xlu0 %v3332
  %v3334 = vpop.xlane.xlu0 %3333
  %v3335 = vsel %vm683, %v3285, -inf
  %3336 = vmax.xlane.f32.xlu0 %v3335
  %v3337 = vpop.xlane.xlu0 %3336
  %v3338 = vsel %vm683, %v3288, -inf
  %3339 = vmax.xlane.f32.xlu0 %v3338
  %v3340 = vpop.xlane.xlu0 %3339
  %v3341 = vsel %vm683, %v3293, -inf
  %3342 = vmax.xlane.f32.xlu0 %v3341
  %v3343 = vpop.xlane.xlu0 %3342
  %v3344 = vsel %vm683, %v3296, -inf
  %3345 = vmax.xlane.f32.xlu0 %v3344
  %v3346 = vpop.xlane.xlu0 %3345
  %v3347 = vsub.f32 %v3168, %v3301
  %v3348 = vsub.f32 %v3171, %v3304
  %v3349 = vsub.f32 %v3176, %v3307
  %v3350 = vsub.f32 %v3179, %v3310
  %v3351 = vsub.f32 %v3184, %v3313
  %v3352 = vsub.f32 %v3187, %v3316
  %v3353 = vsub.f32 %v3192, %v3319
  %v3354 = vsub.f32 %v3195, %v3322
  %v3355 = vsub.f32 %v3269, %v3325
  %v3356 = vsub.f32 %v3272, %v3328
  %v3357 = vsub.f32 %v3277, %v3331
  %v3358 = vsub.f32 %v3280, %v3334
  %v3359 = vsub.f32 %v3285, %v3337
  %v3360 = vsub.f32 %v3288, %v3340
  %v3361 = vsub.f32 %v3293, %v3343
  %v3362 = vsub.f32 %v3296, %v3346
  %v3363 = vmul.f32 %v3347, 1.442695
  %v3364 = vpow.pop %v3363
  %v3365 = vmul.f32 %v3348, 1.442695
  %v3366 = vpow.pop %v3365
  %v3367 = vmul.f32 %v3349, 1.442695
  %v3368 = vpow.pop %v3367
  %v3369 = vmul.f32 %v3350, 1.442695
  %v3370 = vpow.pop %v3369
  %v3371 = vmul.f32 %v3351, 1.442695
  %v3372 = vpow.pop %v3371
  %v3373 = vmul.f32 %v3352, 1.442695
  %v3374 = vpow.pop %v3373
  %v3375 = vmul.f32 %v3353, 1.442695
  %v3376 = vpow.pop %v3375
  %v3377 = vmul.f32 %v3354, 1.442695
  %v3378 = vpow.pop %v3377
  %v3379 = vmul.f32 %v3355, 1.442695
  %v3380 = vpow.pop %v3379
  %v3381 = vmul.f32 %v3356, 1.442695
  %v3382 = vpow.pop %v3381
  %v3383 = vmul.f32 %v3357, 1.442695
  %v3384 = vpow.pop %v3383
  %v3385 = vmul.f32 %v3358, 1.442695
  %v3386 = vpow.pop %v3385
  %v3387 = vmul.f32 %v3359, 1.442695
  %v3388 = vpow.pop %v3387
  %v3389 = vmul.f32 %v3360, 1.442695
  %v3390 = vpow.pop %v3389
  %v3391 = vmul.f32 %v3361, 1.442695
  %v3392 = vpow.pop %v3391
  %v3393 = vmul.f32 %v3362, 1.442695
  %v3394 = vpow.pop %v3393
  %v3395 = vsel %vm683, %v3364, 0.0
  %3396 = vadd.xlane.f32.xlu0 %v3395
  %v3397 = vpop.xlane.xlu0 %3396
  %v3398 = vsel %vm683, %v3366, 0.0
  %3399 = vadd.xlane.f32.xlu0 %v3398
  %v3400 = vpop.xlane.xlu0 %3399
  %v3401 = vsel %vm683, %v3368, 0.0
  %3402 = vadd.xlane.f32.xlu0 %v3401
  %v3403 = vpop.xlane.xlu0 %3402
  %v3404 = vsel %vm683, %v3370, 0.0
  %3405 = vadd.xlane.f32.xlu0 %v3404
  %v3406 = vpop.xlane.xlu0 %3405
  %v3407 = vsel %vm683, %v3372, 0.0
  %3408 = vadd.xlane.f32.xlu0 %v3407
  %v3409 = vpop.xlane.xlu0 %3408
  %v3410 = vsel %vm683, %v3374, 0.0
  %3411 = vadd.xlane.f32.xlu0 %v3410
  %v3412 = vpop.xlane.xlu0 %3411
  %v3413 = vsel %vm683, %v3376, 0.0
  %3414 = vadd.xlane.f32.xlu0 %v3413
  %v3415 = vpop.xlane.xlu0 %3414
  %v3416 = vsel %vm683, %v3378, 0.0
  %3417 = vadd.xlane.f32.xlu0 %v3416
  %v3418 = vpop.xlane.xlu0 %3417
  %v3419 = vsel %vm683, %v3380, 0.0
  %3420 = vadd.xlane.f32.xlu0 %v3419
  %v3421 = vpop.xlane.xlu0 %3420
  %v3422 = vsel %vm683, %v3382, 0.0
  %3423 = vadd.xlane.f32.xlu0 %v3422
  %v3424 = vpop.xlane.xlu0 %3423
  %v3425 = vsel %vm683, %v3384, 0.0
  %3426 = vadd.xlane.f32.xlu0 %v3425
  %v3427 = vpop.xlane.xlu0 %3426
  %v3428 = vsel %vm683, %v3386, 0.0
  %3429 = vadd.xlane.f32.xlu0 %v3428
  %v3430 = vpop.xlane.xlu0 %3429
  %v3431 = vsel %vm683, %v3388, 0.0
  %3432 = vadd.xlane.f32.xlu0 %v3431
  %v3433 = vpop.xlane.xlu0 %3432
  %v3434 = vsel %vm683, %v3390, 0.0
  %3435 = vadd.xlane.f32.xlu0 %v3434
  %v3436 = vpop.xlane.xlu0 %3435
  %v3437 = vsel %vm683, %v3392, 0.0
  %3438 = vadd.xlane.f32.xlu0 %v3437
  %v3439 = vpop.xlane.xlu0 %3438
  %v3440 = vsel %vm683, %v3394, 0.0
  %3441 = vadd.xlane.f32.xlu0 %v3440
  %v3442 = vpop.xlane.xlu0 %3441
  %v3443 = vrcp.pop %v3397
  %v3444 = vrcp.pop %v3400
  %v3445 = vrcp.pop %v3403
  %v3446 = vrcp.pop %v3406
  %v3447 = vrcp.pop %v3409
  %v3448 = vrcp.pop %v3412
  %v3449 = vrcp.pop %v3415
  %v3450 = vrcp.pop %v3418
  %v3451 = vrcp.pop %v3421
  %v3452 = vrcp.pop %v3424
  %v3453 = vrcp.pop %v3427
  %v3454 = vrcp.pop %v3430
  %v3455 = vrcp.pop %v3433
  %v3456 = vrcp.pop %v3436
  %v3457 = vrcp.pop %v3439
  %v3458 = vrcp.pop %v3442
  %v3459 = vmul.f32 %v3364, %v3443
  %v3460 = vmul.f32 %v3366, %v3444
  %v3461 = vmul.f32 %v3368, %v3445
  %v3462 = vmul.f32 %v3370, %v3446
  %v3463 = vmul.f32 %v3372, %v3447
  %v3464 = vmul.f32 %v3374, %v3448
  %v3465 = vmul.f32 %v3376, %v3449
  %v3466 = vmul.f32 %v3378, %v3450
  %v3467 = vmul.f32 %v3380, %v3451
  %v3468 = vmul.f32 %v3382, %v3452
  %v3469 = vmul.f32 %v3384, %v3453
  %v3470 = vmul.f32 %v3386, %v3454
  %v3471 = vmul.f32 %v3388, %v3455
  %v3472 = vmul.f32 %v3390, %v3456
  %v3473 = vmul.f32 %v3392, %v3457
  %v3474 = vmul.f32 %v3394, %v3458
  %v3475 = vpack.c.bf16 %v3460, %v3459
  %v3476 = vpack.c.bf16 %v3462, %v3461
  %v3477 = vpack.c.bf16 %v3464, %v3463
  %v3478 = vpack.c.bf16 %v3466, %v3465
  %v3479 = vpack.c.bf16 %v3468, %v3467
  %v3480 = vpack.c.bf16 %v3470, %v3469
  %v3481 = vpack.c.bf16 %v3472, %v3471
  %v3482 = vpack.c.bf16 %v3474, %v3473
  %3483 = vrot.lane.b32.xlu0 %v3089, 64
  %v3484 = vpop.permute.xlu0 %3483
  %3485 = vrot.lane.b32.xlu0 %v3090, 64
  %v3486 = vpop.permute.xlu0 %3485
  %3487 = vrot.lane.b32.xlu0 %v3091, 64
  %v3488 = vpop.permute.xlu0 %3487
  %3489 = vrot.lane.b32.xlu0 %v3092, 64
  %v3490 = vpop.permute.xlu0 %3489
  %v3496 = vsel %vm683, %v3475, 0
  %v3499 = vsel %vm683, %v3476, 0
  %v3502 = vsel %vm683, %v3477, 0
  %v3505 = vsel %vm683, %v3478, 0
  %3507 = vmatprep.subr.bf16.mxu0 0
  %3508 = vmatpush1.bf16.msra.mxu0 0
  %3509 = vmatprep.subr.bf16.mxu0 0
  %3510 = vmatpush1.bf16.msra.mxu0 0
  %3511 = vmatprep.subr.bf16.mxu0 0
  %3512 = vmatpush1.bf16.msra.mxu0 0
  %3513 = vmatprep.subr.bf16.mxu0 0
  %3514 = vmatpush1.bf16.msra.mxu0 0
  %3515 = vmatprep.subr.bf16.mxu0 0
  %3516 = vmatpush1.bf16.msra.mxu0 %v3490
  %3517 = vmatprep.subr.bf16.mxu0 0
  %3518 = vmatpush1.bf16.msra.mxu0 %v3488
  %3519 = vmatprep.subr.bf16.mxu0 0
  %3520 = vmatpush1.bf16.msra.mxu0 %v3486
  %3521 = vmatprep.subr.bf16.mxu0 0
  %3522 = vmatpush1.bf16.msra.mxu0 %v3484
  %3523 = vmatprep.subr.bf16.mxu0 0
  %3524 = vmatpush2.bf16.msra.mxu0 0
  %3525 = vmatprep.subr.bf16.mxu0 0
  %3526 = vmatpush2.bf16.msra.mxu0 0
  %3527 = vmatprep.subr.bf16.mxu0 0
  %3528 = vmatpush2.bf16.msra.mxu0 0
  %3529 = vmatprep.subr.bf16.mxu0 0
  %3530 = vmatpush2.bf16.msra.mxu0 0
  %3531 = vmatprep.subr.bf16.mxu0 0
  %3532 = vmatpush2.bf16.msra.mxu0 0
  %3533 = vmatprep.subr.bf16.mxu0 0
  %3534 = vmatpush2.bf16.msra.mxu0 0
  %3535 = vmatprep.subr.bf16.mxu0 0
  %3536 = vmatpush2.bf16.msra.mxu0 0
  %3537 = vmatprep.subr.bf16.mxu0 0
  %3538 = vmatpush2.bf16.msra.mxu0 0
  %3539 = vmatprep.mubr.bf16.mxu0 0
  %3540 = vmatmul.mubr.bf16.gmra.mxu0 %v3496
  %v3541 = vpop.f32.mrf.mxu0
  %v3542 = vadd.f32 %v3027, %v3541
  %v3543 = vpop.f32.mrf.mxu0
  %v3544 = vpop.f32.mrf.mxu0
  %v3545 = vadd.f32 %v3030, %v3544
  %v3546 = vpop.f32.mrf.mxu0
  %3547 = vmatprep.mubr.bf16.mxu0 0
  %3548 = vmatmul.mubr.bf16.gmra.mxu0 %v3499
  %v3549 = vpop.f32.mrf.mxu0
  %v3550 = vadd.f32 %v3035, %v3549
  %v3551 = vpop.f32.mrf.mxu0
  %v3552 = vpop.f32.mrf.mxu0
  %v3553 = vadd.f32 %v3038, %v3552
  %v3554 = vpop.f32.mrf.mxu0
  %3555 = vmatprep.mubr.bf16.mxu0 0
  %3556 = vmatmul.mubr.bf16.gmra.mxu0 %v3502
  %v3557 = vpop.f32.mrf.mxu0
  %v3558 = vadd.f32 %v3043, %v3557
  %v3559 = vpop.f32.mrf.mxu0
  %v3560 = vpop.f32.mrf.mxu0
  %v3561 = vadd.f32 %v3046, %v3560
  %v3562 = vpop.f32.mrf.mxu0
  %3563 = vmatprep.mubr.bf16.mxu0 0
  %3564 = vmatmul.mubr.bf16.gmra.mxu0 %v3505
  %v3565 = vpop.f32.mrf.mxu0
  %v3566 = vadd.f32 %v3051, %v3565
  %v3567 = vpop.f32.mrf.mxu0
  %v3568 = vpop.f32.mrf.mxu0
  %v3569 = vadd.f32 %v3054, %v3568
  %v3570 = vpop.f32.mrf.mxu0
  %3571 = vdwg.mxu0
  %3572 = vrot.lane.b32.xlu0 %v3093, 64
  %v3573 = vpop.permute.xlu0 %3572
  %3574 = vrot.lane.b32.xlu0 %v3094, 64
  %v3575 = vpop.permute.xlu0 %3574
  %3576 = vrot.lane.b32.xlu0 %v3095, 64
  %v3577 = vpop.permute.xlu0 %3576
  %3578 = vrot.lane.b32.xlu0 %v3096, 64
  %v3579 = vpop.permute.xlu0 %3578
  %v3585 = vsel %vm683, %v3479, 0
  %v3588 = vsel %vm683, %v3480, 0
  %v3591 = vsel %vm683, %v3481, 0
  %v3594 = vsel %vm683, %v3482, 0
  %3596 = vmatprep.subr.bf16.mxu0 0
  %3597 = vmatpush1.bf16.msra.mxu0 0
  %3598 = vmatprep.subr.bf16.mxu0 0
  %3599 = vmatpush1.bf16.msra.mxu0 0
  %3600 = vmatprep.subr.bf16.mxu0 0
  %3601 = vmatpush1.bf16.msra.mxu0 0
  %3602 = vmatprep.subr.bf16.mxu0 0
  %3603 = vmatpush1.bf16.msra.mxu0 0
  %3604 = vmatprep.subr.bf16.mxu0 0
  %3605 = vmatpush1.bf16.msra.mxu0 %v3579
  %3606 = vmatprep.subr.bf16.mxu0 0
  %3607 = vmatpush1.bf16.msra.mxu0 %v3577
  %3608 = vmatprep.subr.bf16.mxu0 0
  %3609 = vmatpush1.bf16.msra.mxu0 %v3575
  %3610 = vmatprep.subr.bf16.mxu0 0
  %3611 = vmatpush1.bf16.msra.mxu0 %v3573
  %3612 = vmatprep.subr.bf16.mxu0 0
  %3613 = vmatpush2.bf16.msra.mxu0 0
  %3614 = vmatprep.subr.bf16.mxu0 0
  %3615 = vmatpush2.bf16.msra.mxu0 0
  %3616 = vmatprep.subr.bf16.mxu0 0
  %3617 = vmatpush2.bf16.msra.mxu0 0
  %3618 = vmatprep.subr.bf16.mxu0 0
  %3619 = vmatpush2.bf16.msra.mxu0 0
  %3620 = vmatprep.subr.bf16.mxu0 0
  %3621 = vmatpush2.bf16.msra.mxu0 0
  %3622 = vmatprep.subr.bf16.mxu0 0
  %3623 = vmatpush2.bf16.msra.mxu0 0
  %3624 = vmatprep.subr.bf16.mxu0 0
  %3625 = vmatpush2.bf16.msra.mxu0 0
  %3626 = vmatprep.subr.bf16.mxu0 0
  %3627 = vmatpush2.bf16.msra.mxu0 0
  %3628 = vmatprep.mubr.bf16.mxu0 0
  %3629 = vmatmul.mubr.bf16.gmra.mxu0 %v3585
  %v3630 = vpop.f32.mrf.mxu0
  %v3631 = vadd.f32 %v3059, %v3630
  %v3632 = vpop.f32.mrf.mxu0
  %v3633 = vpop.f32.mrf.mxu0
  %v3634 = vadd.f32 %v3062, %v3633
  %v3635 = vpop.f32.mrf.mxu0
  %3636 = vmatprep.mubr.bf16.mxu0 0
  %3637 = vmatmul.mubr.bf16.gmra.mxu0 %v3588
  %v3638 = vpop.f32.mrf.mxu0
  %v3639 = vadd.f32 %v3067, %v3638
  %v3640 = vpop.f32.mrf.mxu0
  %v3641 = vpop.f32.mrf.mxu0
  %v3642 = vadd.f32 %v3070, %v3641
  %v3643 = vpop.f32.mrf.mxu0
  %3644 = vmatprep.mubr.bf16.mxu0 0
  %3645 = vmatmul.mubr.bf16.gmra.mxu0 %v3591
  %v3646 = vpop.f32.mrf.mxu0
  %v3647 = vadd.f32 %v3075, %v3646
  %v3648 = vpop.f32.mrf.mxu0
  %v3649 = vpop.f32.mrf.mxu0
  %v3650 = vadd.f32 %v3078, %v3649
  %v3651 = vpop.f32.mrf.mxu0
  %3652 = vmatprep.mubr.bf16.mxu0 0
  %3653 = vmatmul.mubr.bf16.gmra.mxu0 %v3594
  %v3654 = vpop.f32.mrf.mxu0
  %v3655 = vadd.f32 %v3083, %v3654
  %v3656 = vpop.f32.mrf.mxu0
  %v3657 = vpop.f32.mrf.mxu0
  %v3658 = vadd.f32 %v3086, %v3657
  %v3659 = vpop.f32.mrf.mxu0
  %3660 = vdwg.mxu0
  %v3661 = vpack.c.bf16 %v3545, %v3542
  %v3662 = vpack.c.bf16 %v3553, %v3550
  %v3663 = vpack.c.bf16 %v3561, %v3558
  %v3664 = vpack.c.bf16 %v3569, %v3566
  %v3665 = vpack.c.bf16 %v3634, %v3631
  %v3666 = vpack.c.bf16 %v3642, %v3639
  %v3667 = vpack.c.bf16 %v3650, %v3647
  %v3668 = vpack.c.bf16 %v3658, %v3655
  %3669 = vrot.lane.b32.xlu0 %v3089, 112
  %v3670 = vpop.permute.xlu0 %3669
  %3671 = vrot.lane.b32.xlu0 %v3090, 112
  %v3672 = vpop.permute.xlu0 %3671
  %3673 = vrot.lane.b32.xlu0 %v3091, 112
  %v3674 = vpop.permute.xlu0 %3673
  %3675 = vrot.lane.b32.xlu0 %v3092, 112
  %v3676 = vpop.permute.xlu0 %3675
  %3677 = vrot.lane.b32.xlu0 %v3089, 80
  %v3678 = vpop.permute.xlu0 %3677
  %3679 = vrot.lane.b32.xlu0 %v3090, 80
  %v3680 = vpop.permute.xlu0 %3679
  %3681 = vrot.lane.b32.xlu0 %v3091, 80
  %v3682 = vpop.permute.xlu0 %3681
  %3683 = vrot.lane.b32.xlu0 %v3092, 80
  %v3684 = vpop.permute.xlu0 %3683
  %v3686 = vsel %vm492, %v3670, 0
  %v3689 = vsel %vm492, %v3672, 0
  %v3692 = vsel %vm492, %v3674, 0
  %v3695 = vsel %vm492, %v3676, 0
  %v3698 = vsel %vm492, %v3678, 0
  %v3701 = vsel %vm492, %v3680, 0
  %v3704 = vsel %vm492, %v3682, 0
  %v3707 = vsel %vm492, %v3684, 0
  %3709 = vmatprep.subr.bf16.mxu0 0
  %3710 = vmatpush1.bf16.xpose.msra.mxu0 0
  %3711 = vmatprep.subr.bf16.mxu0 0
  %3712 = vmatpush1.bf16.xpose.msra.mxu0 0
  %3713 = vmatprep.subr.bf16.mxu0 0
  %3714 = vmatpush1.bf16.xpose.msra.mxu0 0
  %3715 = vmatprep.subr.bf16.mxu0 0
  %3716 = vmatpush1.bf16.xpose.msra.mxu0 0
  %3717 = vmatprep.subr.bf16.mxu0 0
  %3718 = vmatpush1.bf16.xpose.msra.mxu0 %v3707
  %3719 = vmatprep.subr.bf16.mxu0 0
  %3720 = vmatpush1.bf16.xpose.msra.mxu0 %v3704
  %3721 = vmatprep.subr.bf16.mxu0 0
  %3722 = vmatpush1.bf16.xpose.msra.mxu0 %v3701
  %3723 = vmatprep.subr.bf16.mxu0 0
  %3724 = vmatpush1.bf16.xpose.msra.mxu0 %v3698
  %3725 = vmatprep.subr.bf16.mxu0 0
  %3726 = vmatpush2.bf16.xpose.msra.mxu0 0
  %3727 = vmatprep.subr.bf16.mxu0 0
  %3728 = vmatpush2.bf16.xpose.msra.mxu0 0
  %3729 = vmatprep.subr.bf16.mxu0 0
  %3730 = vmatpush2.bf16.xpose.msra.mxu0 0
  %3731 = vmatprep.subr.bf16.mxu0 0
  %3732 = vmatpush2.bf16.xpose.msra.mxu0 0
  %3733 = vmatprep.subr.bf16.mxu0 0
  %3734 = vmatpush2.bf16.xpose.msra.mxu0 0
  %3735 = vmatprep.subr.bf16.mxu0 0
  %3736 = vmatpush2.bf16.xpose.msra.mxu0 0
  %3737 = vmatprep.subr.bf16.mxu0 0
  %3738 = vmatpush2.bf16.xpose.msra.mxu0 0
  %3739 = vmatprep.subr.bf16.mxu0 0
  %3740 = vmatpush2.bf16.xpose.msra.mxu0 0
  %3741 = vmatprep.mubr.bf16.mxu0 0
  %3742 = vmatmul.mubr.bf16.gmra.mxu0 %v3686
  %v3743 = vpop.f32.mrf.mxu0
  %v3744 = vadd.f32 0.0, %v3743
  %v3745 = vpop.f32.mrf.mxu0
  %v3746 = vpop.f32.mrf.mxu0
  %v3747 = vadd.f32 0.0, %v3746
  %v3748 = vpop.f32.mrf.mxu0
  %3749 = vmatprep.mubr.bf16.mxu0 0
  %3750 = vmatmul.mubr.bf16.gmra.mxu0 %v3689
  %v3751 = vpop.f32.mrf.mxu0
  %v3752 = vadd.f32 0.0, %v3751
  %v3753 = vpop.f32.mrf.mxu0
  %v3754 = vpop.f32.mrf.mxu0
  %v3755 = vadd.f32 0.0, %v3754
  %v3756 = vpop.f32.mrf.mxu0
  %3757 = vmatprep.mubr.bf16.mxu0 0
  %3758 = vmatmul.mubr.bf16.gmra.mxu0 %v3692
  %v3759 = vpop.f32.mrf.mxu0
  %v3760 = vadd.f32 0.0, %v3759
  %v3761 = vpop.f32.mrf.mxu0
  %v3762 = vpop.f32.mrf.mxu0
  %v3763 = vadd.f32 0.0, %v3762
  %v3764 = vpop.f32.mrf.mxu0
  %3765 = vmatprep.mubr.bf16.mxu0 0
  %3766 = vmatmul.mubr.bf16.gmra.mxu0 %v3695
  %v3767 = vpop.f32.mrf.mxu0
  %v3768 = vadd.f32 0.0, %v3767
  %v3769 = vpop.f32.mrf.mxu0
  %v3770 = vpop.f32.mrf.mxu0
  %v3771 = vadd.f32 0.0, %v3770
  %v3772 = vpop.f32.mrf.mxu0
  %3773 = vdwg.mxu0
  %3774 = vrot.lane.b32.xlu0 %v3093, 112
  %v3775 = vpop.permute.xlu0 %3774
  %3776 = vrot.lane.b32.xlu0 %v3094, 112
  %v3777 = vpop.permute.xlu0 %3776
  %3778 = vrot.lane.b32.xlu0 %v3095, 112
  %v3779 = vpop.permute.xlu0 %3778
  %3780 = vrot.lane.b32.xlu0 %v3096, 112
  %v3781 = vpop.permute.xlu0 %3780
  %3782 = vrot.lane.b32.xlu0 %v3093, 80
  %v3783 = vpop.permute.xlu0 %3782
  %3784 = vrot.lane.b32.xlu0 %v3094, 80
  %v3785 = vpop.permute.xlu0 %3784
  %3786 = vrot.lane.b32.xlu0 %v3095, 80
  %v3787 = vpop.permute.xlu0 %3786
  %3788 = vrot.lane.b32.xlu0 %v3096, 80
  %v3789 = vpop.permute.xlu0 %3788
  %v3791 = vsel %vm492, %v3775, 0
  %v3794 = vsel %vm492, %v3777, 0
  %v3797 = vsel %vm492, %v3779, 0
  %v3800 = vsel %vm492, %v3781, 0
  %v3803 = vsel %vm492, %v3783, 0
  %v3806 = vsel %vm492, %v3785, 0
  %v3809 = vsel %vm492, %v3787, 0
  %v3812 = vsel %vm492, %v3789, 0
  %3814 = vmatprep.subr.bf16.mxu0 0
  %3815 = vmatpush1.bf16.xpose.msra.mxu0 0
  %3816 = vmatprep.subr.bf16.mxu0 0
  %3817 = vmatpush1.bf16.xpose.msra.mxu0 0
  %3818 = vmatprep.subr.bf16.mxu0 0
  %3819 = vmatpush1.bf16.xpose.msra.mxu0 0
  %3820 = vmatprep.subr.bf16.mxu0 0
  %3821 = vmatpush1.bf16.xpose.msra.mxu0 0
  %3822 = vmatprep.subr.bf16.mxu0 0
  %3823 = vmatpush1.bf16.xpose.msra.mxu0 %v3812
  %3824 = vmatprep.subr.bf16.mxu0 0
  %3825 = vmatpush1.bf16.xpose.msra.mxu0 %v3809
  %3826 = vmatprep.subr.bf16.mxu0 0
  %3827 = vmatpush1.bf16.xpose.msra.mxu0 %v3806
  %3828 = vmatprep.subr.bf16.mxu0 0
  %3829 = vmatpush1.bf16.xpose.msra.mxu0 %v3803
  %3830 = vmatprep.subr.bf16.mxu0 0
  %3831 = vmatpush2.bf16.xpose.msra.mxu0 0
  %3832 = vmatprep.subr.bf16.mxu0 0
  %3833 = vmatpush2.bf16.xpose.msra.mxu0 0
  %3834 = vmatprep.subr.bf16.mxu0 0
  %3835 = vmatpush2.bf16.xpose.msra.mxu0 0
  %3836 = vmatprep.subr.bf16.mxu0 0
  %3837 = vmatpush2.bf16.xpose.msra.mxu0 0
  %3838 = vmatprep.subr.bf16.mxu0 0
  %3839 = vmatpush2.bf16.xpose.msra.mxu0 0
  %3840 = vmatprep.subr.bf16.mxu0 0
  %3841 = vmatpush2.bf16.xpose.msra.mxu0 0
  %3842 = vmatprep.subr.bf16.mxu0 0
  %3843 = vmatpush2.bf16.xpose.msra.mxu0 0
  %3844 = vmatprep.subr.bf16.mxu0 0
  %3845 = vmatpush2.bf16.xpose.msra.mxu0 0
  %3846 = vmatprep.mubr.bf16.mxu0 0
  %3847 = vmatmul.mubr.bf16.gmra.mxu0 %v3791
  %v3848 = vpop.f32.mrf.mxu0
  %v3849 = vadd.f32 0.0, %v3848
  %v3850 = vpop.f32.mrf.mxu0
  %v3851 = vpop.f32.mrf.mxu0
  %v3852 = vadd.f32 0.0, %v3851
  %v3853 = vpop.f32.mrf.mxu0
  %3854 = vmatprep.mubr.bf16.mxu0 0
  %3855 = vmatmul.mubr.bf16.gmra.mxu0 %v3794
  %v3856 = vpop.f32.mrf.mxu0
  %v3857 = vadd.f32 0.0, %v3856
  %v3858 = vpop.f32.mrf.mxu0
  %v3859 = vpop.f32.mrf.mxu0
  %v3860 = vadd.f32 0.0, %v3859
  %v3861 = vpop.f32.mrf.mxu0
  %3862 = vmatprep.mubr.bf16.mxu0 0
  %3863 = vmatmul.mubr.bf16.gmra.mxu0 %v3797
  %v3864 = vpop.f32.mrf.mxu0
  %v3865 = vadd.f32 0.0, %v3864
  %v3866 = vpop.f32.mrf.mxu0
  %v3867 = vpop.f32.mrf.mxu0
  %v3868 = vadd.f32 0.0, %v3867
  %v3869 = vpop.f32.mrf.mxu0
  %3870 = vmatprep.mubr.bf16.mxu0 0
  %3871 = vmatmul.mubr.bf16.gmra.mxu0 %v3800
  %v3872 = vpop.f32.mrf.mxu0
  %v3873 = vadd.f32 0.0, %v3872
  %v3874 = vpop.f32.mrf.mxu0
  %v3875 = vpop.f32.mrf.mxu0
  %v3876 = vadd.f32 0.0, %v3875
  %v3877 = vpop.f32.mrf.mxu0
  %3878 = vdwg.mxu0
  %v3879 = vsel %vm683, %v3744, -inf
  %3880 = vmax.xlane.f32.xlu0 %v3879
  %v3881 = vpop.xlane.xlu0 %3880
  %v3882 = vsel %vm683, %v3747, -inf
  %3883 = vmax.xlane.f32.xlu0 %v3882
  %v3884 = vpop.xlane.xlu0 %3883
  %v3885 = vsel %vm683, %v3752, -inf
  %3886 = vmax.xlane.f32.xlu0 %v3885
  %v3887 = vpop.xlane.xlu0 %3886
  %v3888 = vsel %vm683, %v3755, -inf
  %3889 = vmax.xlane.f32.xlu0 %v3888
  %v3890 = vpop.xlane.xlu0 %3889
  %v3891 = vsel %vm683, %v3760, -inf
  %3892 = vmax.xlane.f32.xlu0 %v3891
  %v3893 = vpop.xlane.xlu0 %3892
  %v3894 = vsel %vm683, %v3763, -inf
  %3895 = vmax.xlane.f32.xlu0 %v3894
  %v3896 = vpop.xlane.xlu0 %3895
  %v3897 = vsel %vm683, %v3768, -inf
  %3898 = vmax.xlane.f32.xlu0 %v3897
  %v3899 = vpop.xlane.xlu0 %3898
  %v3900 = vsel %vm683, %v3771, -inf
  %3901 = vmax.xlane.f32.xlu0 %v3900
  %v3902 = vpop.xlane.xlu0 %3901
  %v3903 = vsel %vm683, %v3849, -inf
  %3904 = vmax.xlane.f32.xlu0 %v3903
  %v3905 = vpop.xlane.xlu0 %3904
  %v3906 = vsel %vm683, %v3852, -inf
  %3907 = vmax.xlane.f32.xlu0 %v3906
  %v3908 = vpop.xlane.xlu0 %3907
  %v3909 = vsel %vm683, %v3857, -inf
  %3910 = vmax.xlane.f32.xlu0 %v3909
  %v3911 = vpop.xlane.xlu0 %3910
  %v3912 = vsel %vm683, %v3860, -inf
  %3913 = vmax.xlane.f32.xlu0 %v3912
  %v3914 = vpop.xlane.xlu0 %3913
  %v3915 = vsel %vm683, %v3865, -inf
  %3916 = vmax.xlane.f32.xlu0 %v3915
  %v3917 = vpop.xlane.xlu0 %3916
  %v3918 = vsel %vm683, %v3868, -inf
  %3919 = vmax.xlane.f32.xlu0 %v3918
  %v3920 = vpop.xlane.xlu0 %3919
  %v3921 = vsel %vm683, %v3873, -inf
  %3922 = vmax.xlane.f32.xlu0 %v3921
  %v3923 = vpop.xlane.xlu0 %3922
  %v3924 = vsel %vm683, %v3876, -inf
  %3925 = vmax.xlane.f32.xlu0 %v3924
  %v3926 = vpop.xlane.xlu0 %3925
  %v3927 = vsub.f32 %v3744, %v3881
  %v3928 = vsub.f32 %v3747, %v3884
  %v3929 = vsub.f32 %v3752, %v3887
  %v3930 = vsub.f32 %v3755, %v3890
  %v3931 = vsub.f32 %v3760, %v3893
  %v3932 = vsub.f32 %v3763, %v3896
  %v3933 = vsub.f32 %v3768, %v3899
  %v3934 = vsub.f32 %v3771, %v3902
  %v3935 = vsub.f32 %v3849, %v3905
  %v3936 = vsub.f32 %v3852, %v3908
  %v3937 = vsub.f32 %v3857, %v3911
  %v3938 = vsub.f32 %v3860, %v3914
  %v3939 = vsub.f32 %v3865, %v3917
  %v3940 = vsub.f32 %v3868, %v3920
  %v3941 = vsub.f32 %v3873, %v3923
  %v3942 = vsub.f32 %v3876, %v3926
  %v3943 = vmul.f32 %v3927, 1.442695
  %v3944 = vpow.pop %v3943
  %v3945 = vmul.f32 %v3928, 1.442695
  %v3946 = vpow.pop %v3945
  %v3947 = vmul.f32 %v3929, 1.442695
  %v3948 = vpow.pop %v3947
  %v3949 = vmul.f32 %v3930, 1.442695
  %v3950 = vpow.pop %v3949
  %v3951 = vmul.f32 %v3931, 1.442695
  %v3952 = vpow.pop %v3951
  %v3953 = vmul.f32 %v3932, 1.442695
  %v3954 = vpow.pop %v3953
  %v3955 = vmul.f32 %v3933, 1.442695
  %v3956 = vpow.pop %v3955
  %v3957 = vmul.f32 %v3934, 1.442695
  %v3958 = vpow.pop %v3957
  %v3959 = vmul.f32 %v3935, 1.442695
  %v3960 = vpow.pop %v3959
  %v3961 = vmul.f32 %v3936, 1.442695
  %v3962 = vpow.pop %v3961
  %v3963 = vmul.f32 %v3937, 1.442695
  %v3964 = vpow.pop %v3963
  %v3965 = vmul.f32 %v3938, 1.442695
  %v3966 = vpow.pop %v3965
  %v3967 = vmul.f32 %v3939, 1.442695
  %v3968 = vpow.pop %v3967
  %v3969 = vmul.f32 %v3940, 1.442695
  %v3970 = vpow.pop %v3969
  %v3971 = vmul.f32 %v3941, 1.442695
  %v3972 = vpow.pop %v3971
  %v3973 = vmul.f32 %v3942, 1.442695
  %v3974 = vpow.pop %v3973
  %v3975 = vsel %vm683, %v3944, 0.0
  %3976 = vadd.xlane.f32.xlu0 %v3975
  %v3977 = vpop.xlane.xlu0 %3976
  %v3978 = vsel %vm683, %v3946, 0.0
  %3979 = vadd.xlane.f32.xlu0 %v3978
  %v3980 = vpop.xlane.xlu0 %3979
  %v3981 = vsel %vm683, %v3948, 0.0
  %3982 = vadd.xlane.f32.xlu0 %v3981
  %v3983 = vpop.xlane.xlu0 %3982
  %v3984 = vsel %vm683, %v3950, 0.0
  %3985 = vadd.xlane.f32.xlu0 %v3984
  %v3986 = vpop.xlane.xlu0 %3985
  %v3987 = vsel %vm683, %v3952, 0.0
  %3988 = vadd.xlane.f32.xlu0 %v3987
  %v3989 = vpop.xlane.xlu0 %3988
  %v3990 = vsel %vm683, %v3954, 0.0
  %3991 = vadd.xlane.f32.xlu0 %v3990
  %v3992 = vpop.xlane.xlu0 %3991
  %v3993 = vsel %vm683, %v3956, 0.0
  %3994 = vadd.xlane.f32.xlu0 %v3993
  %v3995 = vpop.xlane.xlu0 %3994
  %v3996 = vsel %vm683, %v3958, 0.0
  %3997 = vadd.xlane.f32.xlu0 %v3996
  %v3998 = vpop.xlane.xlu0 %3997
  %v3999 = vsel %vm683, %v3960, 0.0
  %4000 = vadd.xlane.f32.xlu0 %v3999
  %v4001 = vpop.xlane.xlu0 %4000
  %v4002 = vsel %vm683, %v3962, 0.0
  %4003 = vadd.xlane.f32.xlu0 %v4002
  %v4004 = vpop.xlane.xlu0 %4003
  %v4005 = vsel %vm683, %v3964, 0.0
  %4006 = vadd.xlane.f32.xlu0 %v4005
  %v4007 = vpop.xlane.xlu0 %4006
  %v4008 = vsel %vm683, %v3966, 0.0
  %4009 = vadd.xlane.f32.xlu0 %v4008
  %v4010 = vpop.xlane.xlu0 %4009
  %v4011 = vsel %vm683, %v3968, 0.0
  %4012 = vadd.xlane.f32.xlu0 %v4011
  %v4013 = vpop.xlane.xlu0 %4012
  %v4014 = vsel %vm683, %v3970, 0.0
  %4015 = vadd.xlane.f32.xlu0 %v4014
  %v4016 = vpop.xlane.xlu0 %4015
  %v4017 = vsel %vm683, %v3972, 0.0
  %4018 = vadd.xlane.f32.xlu0 %v4017
  %v4019 = vpop.xlane.xlu0 %4018
  %v4020 = vsel %vm683, %v3974, 0.0
  %4021 = vadd.xlane.f32.xlu0 %v4020
  %v4022 = vpop.xlane.xlu0 %4021
  %v4023 = vrcp.pop %v3977
  %v4024 = vrcp.pop %v3980
  %v4025 = vrcp.pop %v3983
  %v4026 = vrcp.pop %v3986
  %v4027 = vrcp.pop %v3989
  %v4028 = vrcp.pop %v3992
  %v4029 = vrcp.pop %v3995
  %v4030 = vrcp.pop %v3998
  %v4031 = vrcp.pop %v4001
  %v4032 = vrcp.pop %v4004
  %v4033 = vrcp.pop %v4007
  %v4034 = vrcp.pop %v4010
  %v4035 = vrcp.pop %v4013
  %v4036 = vrcp.pop %v4016
  %v4037 = vrcp.pop %v4019
  %v4038 = vrcp.pop %v4022
  %v4039 = vmul.f32 %v3944, %v4023
  %v4040 = vmul.f32 %v3946, %v4024
  %v4041 = vmul.f32 %v3948, %v4025
  %v4042 = vmul.f32 %v3950, %v4026
  %v4043 = vmul.f32 %v3952, %v4027
  %v4044 = vmul.f32 %v3954, %v4028
  %v4045 = vmul.f32 %v3956, %v4029
  %v4046 = vmul.f32 %v3958, %v4030
  %v4047 = vmul.f32 %v3960, %v4031
  %v4048 = vmul.f32 %v3962, %v4032
  %v4049 = vmul.f32 %v3964, %v4033
  %v4050 = vmul.f32 %v3966, %v4034
  %v4051 = vmul.f32 %v3968, %v4035
  %v4052 = vmul.f32 %v3970, %v4036
  %v4053 = vmul.f32 %v3972, %v4037
  %v4054 = vmul.f32 %v3974, %v4038
  %v4055 = vpack.c.bf16 %v4040, %v4039
  %v4056 = vpack.c.bf16 %v4042, %v4041
  %v4057 = vpack.c.bf16 %v4044, %v4043
  %v4058 = vpack.c.bf16 %v4046, %v4045
  %v4059 = vpack.c.bf16 %v4048, %v4047
  %v4060 = vpack.c.bf16 %v4050, %v4049
  %v4061 = vpack.c.bf16 %v4052, %v4051
  %v4062 = vpack.c.bf16 %v4054, %v4053
  %4063 = vrot.lane.b32.xlu0 %v3089, 48
  %v4064 = vpop.permute.xlu0 %4063
  %4065 = vrot.lane.b32.xlu0 %v3090, 48
  %v4066 = vpop.permute.xlu0 %4065
  %4067 = vrot.lane.b32.xlu0 %v3091, 48
  %v4068 = vpop.permute.xlu0 %4067
  %4069 = vrot.lane.b32.xlu0 %v3092, 48
  %v4070 = vpop.permute.xlu0 %4069
  %4083 = vrot.lane.b32.xlu0 %v3027, 112
  %v4084 = vpop.permute.xlu0 %4083
  %4085 = vrot.lane.b32.xlu0 %v3030, 112
  %v4086 = vpop.permute.xlu0 %4085
  %4087 = vrot.lane.b32.xlu0 %v3035, 112
  %v4088 = vpop.permute.xlu0 %4087
  %4089 = vrot.lane.b32.xlu0 %v3038, 112
  %v4090 = vpop.permute.xlu0 %4089
  %4091 = vrot.lane.b32.xlu0 %v3043, 112
  %v4092 = vpop.permute.xlu0 %4091
  %4093 = vrot.lane.b32.xlu0 %v3046, 112
  %v4094 = vpop.permute.xlu0 %4093
  %4095 = vrot.lane.b32.xlu0 %v3051, 112
  %v4096 = vpop.permute.xlu0 %4095
  %4097 = vrot.lane.b32.xlu0 %v3054, 112
  %v4098 = vpop.permute.xlu0 %4097
  %v4108 = vsel %vm683, %v4055, 0
  %v4111 = vsel %vm683, %v4056, 0
  %v4114 = vsel %vm683, %v4057, 0
  %v4117 = vsel %vm683, %v4058, 0
  %4119 = vmatprep.subr.bf16.mxu0 0
  %4120 = vmatpush1.bf16.msra.mxu0 0
  %4121 = vmatprep.subr.bf16.mxu0 0
  %4122 = vmatpush1.bf16.msra.mxu0 0
  %4123 = vmatprep.subr.bf16.mxu0 0
  %4124 = vmatpush1.bf16.msra.mxu0 0
  %4125 = vmatprep.subr.bf16.mxu0 0
  %4126 = vmatpush1.bf16.msra.mxu0 0
  %4127 = vmatprep.subr.bf16.mxu0 0
  %4128 = vmatpush1.bf16.msra.mxu0 %v4070
  %4129 = vmatprep.subr.bf16.mxu0 0
  %4130 = vmatpush1.bf16.msra.mxu0 %v4068
  %4131 = vmatprep.subr.bf16.mxu0 0
  %4132 = vmatpush1.bf16.msra.mxu0 %v4066
  %4133 = vmatprep.subr.bf16.mxu0 0
  %4134 = vmatpush1.bf16.msra.mxu0 %v4064
  %4135 = vmatprep.subr.bf16.mxu0 0
  %4136 = vmatpush2.bf16.msra.mxu0 0
  %4137 = vmatprep.subr.bf16.mxu0 0
  %4138 = vmatpush2.bf16.msra.mxu0 0
  %4139 = vmatprep.subr.bf16.mxu0 0
  %4140 = vmatpush2.bf16.msra.mxu0 0
  %4141 = vmatprep.subr.bf16.mxu0 0
  %4142 = vmatpush2.bf16.msra.mxu0 0
  %4143 = vmatprep.subr.bf16.mxu0 0
  %4144 = vmatpush2.bf16.msra.mxu0 0
  %4145 = vmatprep.subr.bf16.mxu0 0
  %4146 = vmatpush2.bf16.msra.mxu0 0
  %4147 = vmatprep.subr.bf16.mxu0 0
  %4148 = vmatpush2.bf16.msra.mxu0 0
  %4149 = vmatprep.subr.bf16.mxu0 0
  %4150 = vmatpush2.bf16.msra.mxu0 0
  %4151 = vmatprep.mubr.bf16.mxu0 0
  %4152 = vmatmul.mubr.bf16.gmra.mxu0 %v4108
  %v4153 = vpop.f32.mrf.mxu0
  %v4154 = vadd.f32 %v4084, %v4153
  %v4155 = vpop.f32.mrf.mxu0
  %v4156 = vpop.f32.mrf.mxu0
  %v4157 = vadd.f32 %v4086, %v4156
  %v4158 = vpop.f32.mrf.mxu0
  %4159 = vmatprep.mubr.bf16.mxu0 0
  %4160 = vmatmul.mubr.bf16.gmra.mxu0 %v4111
  %v4161 = vpop.f32.mrf.mxu0
  %v4162 = vadd.f32 %v4088, %v4161
  %v4163 = vpop.f32.mrf.mxu0
  %v4164 = vpop.f32.mrf.mxu0
  %v4165 = vadd.f32 %v4090, %v4164
  %v4166 = vpop.f32.mrf.mxu0
  %4167 = vmatprep.mubr.bf16.mxu0 0
  %4168 = vmatmul.mubr.bf16.gmra.mxu0 %v4114
  %v4169 = vpop.f32.mrf.mxu0
  %v4170 = vadd.f32 %v4092, %v4169
  %v4171 = vpop.f32.mrf.mxu0
  %v4172 = vpop.f32.mrf.mxu0
  %v4173 = vadd.f32 %v4094, %v4172
  %v4174 = vpop.f32.mrf.mxu0
  %4175 = vmatprep.mubr.bf16.mxu0 0
  %4176 = vmatmul.mubr.bf16.gmra.mxu0 %v4117
  %v4177 = vpop.f32.mrf.mxu0
  %v4178 = vadd.f32 %v4096, %v4177
  %v4179 = vpop.f32.mrf.mxu0
  %v4180 = vpop.f32.mrf.mxu0
  %v4181 = vadd.f32 %v4098, %v4180
  %v4182 = vpop.f32.mrf.mxu0
  %4183 = vdwg.mxu0
  %4184 = vrot.lane.b32.xlu0 %v3093, 48
  %v4185 = vpop.permute.xlu0 %4184
  %4186 = vrot.lane.b32.xlu0 %v3094, 48
  %v4187 = vpop.permute.xlu0 %4186
  %4188 = vrot.lane.b32.xlu0 %v3095, 48
  %v4189 = vpop.permute.xlu0 %4188
  %4190 = vrot.lane.b32.xlu0 %v3096, 48
  %v4191 = vpop.permute.xlu0 %4190
  %4204 = vrot.lane.b32.xlu0 %v3059, 112
  %v4205 = vpop.permute.xlu0 %4204
  %4206 = vrot.lane.b32.xlu0 %v3062, 112
  %v4207 = vpop.permute.xlu0 %4206
  %4208 = vrot.lane.b32.xlu0 %v3067, 112
  %v4209 = vpop.permute.xlu0 %4208
  %4210 = vrot.lane.b32.xlu0 %v3070, 112
  %v4211 = vpop.permute.xlu0 %4210
  %4212 = vrot.lane.b32.xlu0 %v3075, 112
  %v4213 = vpop.permute.xlu0 %4212
  %4214 = vrot.lane.b32.xlu0 %v3078, 112
  %v4215 = vpop.permute.xlu0 %4214
  %4216 = vrot.lane.b32.xlu0 %v3083, 112
  %v4217 = vpop.permute.xlu0 %4216
  %4218 = vrot.lane.b32.xlu0 %v3086, 112
  %v4219 = vpop.permute.xlu0 %4218
  %v4229 = vsel %vm683, %v4059, 0
  %v4232 = vsel %vm683, %v4060, 0
  %v4235 = vsel %vm683, %v4061, 0
  %v4238 = vsel %vm683, %v4062, 0
  %4240 = vmatprep.subr.bf16.mxu0 0
  %4241 = vmatpush1.bf16.msra.mxu0 0
  %4242 = vmatprep.subr.bf16.mxu0 0
  %4243 = vmatpush1.bf16.msra.mxu0 0
  %4244 = vmatprep.subr.bf16.mxu0 0
  %4245 = vmatpush1.bf16.msra.mxu0 0
  %4246 = vmatprep.subr.bf16.mxu0 0
  %4247 = vmatpush1.bf16.msra.mxu0 0
  %4248 = vmatprep.subr.bf16.mxu0 0
  %4249 = vmatpush1.bf16.msra.mxu0 %v4191
  %4250 = vmatprep.subr.bf16.mxu0 0
  %4251 = vmatpush1.bf16.msra.mxu0 %v4189
  %4252 = vmatprep.subr.bf16.mxu0 0
  %4253 = vmatpush1.bf16.msra.mxu0 %v4187
  %4254 = vmatprep.subr.bf16.mxu0 0
  %4255 = vmatpush1.bf16.msra.mxu0 %v4185
  %4256 = vmatprep.subr.bf16.mxu0 0
  %4257 = vmatpush2.bf16.msra.mxu0 0
  %4258 = vmatprep.subr.bf16.mxu0 0
  %4259 = vmatpush2.bf16.msra.mxu0 0
  %4260 = vmatprep.subr.bf16.mxu0 0
  %4261 = vmatpush2.bf16.msra.mxu0 0
  %4262 = vmatprep.subr.bf16.mxu0 0
  %4263 = vmatpush2.bf16.msra.mxu0 0
  %4264 = vmatprep.subr.bf16.mxu0 0
  %4265 = vmatpush2.bf16.msra.mxu0 0
  %4266 = vmatprep.subr.bf16.mxu0 0
  %4267 = vmatpush2.bf16.msra.mxu0 0
  %4268 = vmatprep.subr.bf16.mxu0 0
  %4269 = vmatpush2.bf16.msra.mxu0 0
  %4270 = vmatprep.subr.bf16.mxu0 0
  %4271 = vmatpush2.bf16.msra.mxu0 0
  %4272 = vmatprep.mubr.bf16.mxu0 0
  %4273 = vmatmul.mubr.bf16.gmra.mxu0 %v4229
  %v4274 = vpop.f32.mrf.mxu0
  %v4275 = vadd.f32 %v4205, %v4274
  %v4276 = vpop.f32.mrf.mxu0
  %v4277 = vpop.f32.mrf.mxu0
  %v4278 = vadd.f32 %v4207, %v4277
  %v4279 = vpop.f32.mrf.mxu0
  %4280 = vmatprep.mubr.bf16.mxu0 0
  %4281 = vmatmul.mubr.bf16.gmra.mxu0 %v4232
  %v4282 = vpop.f32.mrf.mxu0
  %v4283 = vadd.f32 %v4209, %v4282
  %v4284 = vpop.f32.mrf.mxu0
  %v4285 = vpop.f32.mrf.mxu0
  %v4286 = vadd.f32 %v4211, %v4285
  %v4287 = vpop.f32.mrf.mxu0
  %4288 = vmatprep.mubr.bf16.mxu0 0
  %4289 = vmatmul.mubr.bf16.gmra.mxu0 %v4235
  %v4290 = vpop.f32.mrf.mxu0
  %v4291 = vadd.f32 %v4213, %v4290
  %v4292 = vpop.f32.mrf.mxu0
  %v4293 = vpop.f32.mrf.mxu0
  %v4294 = vadd.f32 %v4215, %v4293
  %v4295 = vpop.f32.mrf.mxu0
  %4296 = vmatprep.mubr.bf16.mxu0 0
  %4297 = vmatmul.mubr.bf16.gmra.mxu0 %v4238
  %v4298 = vpop.f32.mrf.mxu0
  %v4299 = vadd.f32 %v4217, %v4298
  %v4300 = vpop.f32.mrf.mxu0
  %v4301 = vpop.f32.mrf.mxu0
  %v4302 = vadd.f32 %v4219, %v4301
  %v4303 = vpop.f32.mrf.mxu0
  %4304 = vdwg.mxu0
  %v4305 = vpack.c.bf16 %v4157, %v4154
  %v4306 = vpack.c.bf16 %v4165, %v4162
  %v4307 = vpack.c.bf16 %v4173, %v4170
  %v4308 = vpack.c.bf16 %v4181, %v4178
  %v4309 = vpack.c.bf16 %v4278, %v4275
  %v4310 = vpack.c.bf16 %v4286, %v4283
  %v4311 = vpack.c.bf16 %v4294, %v4291
  %v4312 = vpack.c.bf16 %v4302, %v4299
  %4321 = vrot.lane.b32.xlu0 %v4305, 16
  %v4322 = vpop.permute.xlu0 %4321
  %4323 = vrot.lane.b32.xlu0 %v4306, 16
  %v4324 = vpop.permute.xlu0 %4323
  %4325 = vrot.lane.b32.xlu0 %v4307, 16
  %v4326 = vpop.permute.xlu0 %4325
  %4327 = vrot.lane.b32.xlu0 %v4308, 16
  %v4328 = vpop.permute.xlu0 %4327
  %4329 = vrot.lane.b32.xlu0 %v4309, 16
  %v4330 = vpop.permute.xlu0 %4329
  %4331 = vrot.lane.b32.xlu0 %v4310, 16
  %v4332 = vpop.permute.xlu0 %4331
  %4333 = vrot.lane.b32.xlu0 %v4311, 16
  %v4334 = vpop.permute.xlu0 %4333
  %4335 = vrot.lane.b32.xlu0 %v4312, 16
  %v4336 = vpop.permute.xlu0 %4335
  %v4339 = vsel %vm492, %v3661, %v4322
  %v4342 = vsel %vm492, %v3662, %v4324
  %v4345 = vsel %vm492, %v3663, %v4326
  %v4348 = vsel %vm492, %v3664, %v4328
  %v4351 = vsel %vm492, %v3665, %v4330
  %v4354 = vsel %vm492, %v3666, %v4332
  %v4357 = vsel %vm492, %v3667, %v4334
  %v4360 = vsel %vm492, %v3668, %v4336
  %s4361 = scalar_lea.vmem %s3, 16
  %v4362 = vld [vmem:[%s4361] sm:$0xf]
  %v4363 = vld [vmem:[%s4361 + $0x4] sm:$0xf]
  %v4364 = vld [vmem:[%s4361 + $0x8] sm:$0xf]
  %v4365 = vld [vmem:[%s4361 + $0xc] sm:$0xf]
  %v4366 = vlaneseq
  %v4367 = vshrl.u32 %v4366, 7
  %v4368 = vsub.s32 5, %v4367
  %v4369 = vrot.slane %v2658, %v4368
  %v4374 = vunpack.c.l.b16 %v4362
  %v4375 = vunpack.c.l.b16 %v4363
  %v4376 = vunpack.c.l.b16 %v4364
  %v4377 = vunpack.c.l.b16 %v4365
  %v4378 = vpack.c.b16 %v4375, %v4374
  %v4379 = vpack.c.b16 %v4377, %v4376
  %v4382 = vsel %vm41, %v4339, 0
  %v4384 = vsel %vm41, %v4342, 0
  %v4386 = vsel %vm41, %v4345, 0
  %v4388 = vsel %vm41, %v4348, 0
  %v4390 = vsel %vm41, %v4351, 0
  %v4392 = vsel %vm41, %v4354, 0
  %v4394 = vsel %vm41, %v4357, 0
  %v4396 = vsel %vm41, %v4360, 0
  %4398 = vmatprep.subr.bf16.mxu0 0
  %4399 = vmatpush1.bf16.msra.mxu0 0
  %4400 = vmatprep.subr.bf16.mxu0 0
  %4401 = vmatpush1.bf16.msra.mxu0 0
  %4402 = vmatprep.subr.bf16.mxu0 0
  %4403 = vmatpush1.bf16.msra.mxu0 0
  %4404 = vmatprep.subr.bf16.mxu0 0
  %4405 = vmatpush1.bf16.msra.mxu0 0
  %4406 = vmatprep.subr.bf16.mxu0 0
  %4407 = vmatpush1.bf16.msra.mxu0 0
  %4408 = vmatprep.subr.bf16.mxu0 0
  %4409 = vmatpush1.bf16.msra.mxu0 0
  %4410 = vmatprep.subr.bf16.mxu0 0
  %4411 = vmatpush1.bf16.msra.mxu0 %v4379
  %4412 = vmatprep.subr.bf16.mxu0 0
  %4413 = vmatpush1.bf16.msra.mxu0 %v4378
  %4414 = vmatprep.subr.bf16.mxu0 0
  %4415 = vmatpush2.bf16.msra.mxu0 0
  %4416 = vmatprep.subr.bf16.mxu0 0
  %4417 = vmatpush2.bf16.msra.mxu0 0
  %4418 = vmatprep.subr.bf16.mxu0 0
  %4419 = vmatpush2.bf16.msra.mxu0 0
  %4420 = vmatprep.subr.bf16.mxu0 0
  %4421 = vmatpush2.bf16.msra.mxu0 0
  %4422 = vmatprep.subr.bf16.mxu0 0
  %4423 = vmatpush2.bf16.msra.mxu0 0
  %4424 = vmatprep.subr.bf16.mxu0 0
  %4425 = vmatpush2.bf16.msra.mxu0 0
  %4426 = vmatprep.subr.bf16.mxu0 0
  %4427 = vmatpush2.bf16.msra.mxu0 0
  %4428 = vmatprep.subr.bf16.mxu0 0
  %4429 = vmatpush2.bf16.msra.mxu0 0
  %4430 = vmatprep.mubr.bf16.mxu0 0
  %4431 = vmatmul.mubr.bf16.gmra.mxu0 %v4382
  %v4432 = vpop.f32.mrf.mxu0
  %v4433 = vadd.f32 %v4369, %v4432
  %v4434 = vpop.f32.mrf.mxu0
  %v4435 = vpop.f32.mrf.mxu0
  %v4436 = vadd.f32 %v4369, %v4435
  %v4437 = vpop.f32.mrf.mxu0
  %4438 = vmatprep.mubr.bf16.mxu0 0
  %4439 = vmatmul.mubr.bf16.gmra.mxu0 %v4384
  %v4440 = vpop.f32.mrf.mxu0
  %v4441 = vadd.f32 %v4369, %v4440
  %v4442 = vpop.f32.mrf.mxu0
  %v4443 = vpop.f32.mrf.mxu0
  %v4444 = vadd.f32 %v4369, %v4443
  %v4445 = vpop.f32.mrf.mxu0
  %4446 = vmatprep.mubr.bf16.mxu0 0
  %4447 = vmatmul.mubr.bf16.gmra.mxu0 %v4386
  %v4448 = vpop.f32.mrf.mxu0
  %v4449 = vadd.f32 %v4369, %v4448
  %v4450 = vpop.f32.mrf.mxu0
  %v4451 = vpop.f32.mrf.mxu0
  %v4452 = vadd.f32 %v4369, %v4451
  %v4453 = vpop.f32.mrf.mxu0
  %4454 = vmatprep.mubr.bf16.mxu0 0
  %4455 = vmatmul.mubr.bf16.gmra.mxu0 %v4388
  %v4456 = vpop.f32.mrf.mxu0
  %v4457 = vadd.f32 %v4369, %v4456
  %v4458 = vpop.f32.mrf.mxu0
  %v4459 = vpop.f32.mrf.mxu0
  %v4460 = vadd.f32 %v4369, %v4459
  %v4461 = vpop.f32.mrf.mxu0
  %4462 = vmatprep.mubr.bf16.mxu0 0
  %4463 = vmatmul.mubr.bf16.gmra.mxu0 %v4390
  %v4464 = vpop.f32.mrf.mxu0
  %v4465 = vadd.f32 %v4369, %v4464
  %v4466 = vpop.f32.mrf.mxu0
  %v4467 = vpop.f32.mrf.mxu0
  %v4468 = vadd.f32 %v4369, %v4467
  %v4469 = vpop.f32.mrf.mxu0
  %4470 = vmatprep.mubr.bf16.mxu0 0
  %4471 = vmatmul.mubr.bf16.gmra.mxu0 %v4392
  %v4472 = vpop.f32.mrf.mxu0
  %v4473 = vadd.f32 %v4369, %v4472
  %v4474 = vpop.f32.mrf.mxu0
  %v4475 = vpop.f32.mrf.mxu0
  %v4476 = vadd.f32 %v4369, %v4475
  %v4477 = vpop.f32.mrf.mxu0
  %4478 = vmatprep.mubr.bf16.mxu0 0
  %4479 = vmatmul.mubr.bf16.gmra.mxu0 %v4394
  %v4480 = vpop.f32.mrf.mxu0
  %v4481 = vadd.f32 %v4369, %v4480
  %v4482 = vpop.f32.mrf.mxu0
  %v4483 = vpop.f32.mrf.mxu0
  %v4484 = vadd.f32 %v4369, %v4483
  %v4485 = vpop.f32.mrf.mxu0
  %4486 = vmatprep.mubr.bf16.mxu0 0
  %4487 = vmatmul.mubr.bf16.gmra.mxu0 %v4396
  %v4488 = vpop.f32.mrf.mxu0
  %v4489 = vadd.f32 %v4369, %v4488
  %v4490 = vpop.f32.mrf.mxu0
  %v4491 = vpop.f32.mrf.mxu0
  %v4492 = vadd.f32 %v4369, %v4491
  %v4493 = vpop.f32.mrf.mxu0
  %4494 = vdwg.mxu0
  %v4495 = vadd.f32 %v2641, %v4433
  %v4496 = vadd.f32 %v2642, %v4436
  %v4497 = vadd.f32 %v2643, %v4441
  %v4498 = vadd.f32 %v2644, %v4444
  %v4499 = vadd.f32 %v2645, %v4449
  %v4500 = vadd.f32 %v2646, %v4452
  %v4501 = vadd.f32 %v2647, %v4457
  %v4502 = vadd.f32 %v2648, %v4460
  %v4503 = vadd.f32 %v2649, %v4465
  %v4504 = vadd.f32 %v2650, %v4468
  %v4505 = vadd.f32 %v2651, %v4473
  %v4506 = vadd.f32 %v2652, %v4476
  %v4507 = vadd.f32 %v2653, %v4481
  %v4508 = vadd.f32 %v2654, %v4484
  %v4509 = vadd.f32 %v2655, %v4489
  %v4510 = vadd.f32 %v2656, %v4492
  %v4511 = vsel %vm41, %v4495, 0.0
  %4512 = vadd.xlane.f32.xlu0 %v4511
  %v4513 = vpop.xlane.xlu0 %4512
  %v4514 = vsel %vm41, %v4496, 0.0
  %4515 = vadd.xlane.f32.xlu0 %v4514
  %v4516 = vpop.xlane.xlu0 %4515
  %v4517 = vsel %vm41, %v4497, 0.0
  %4518 = vadd.xlane.f32.xlu0 %v4517
  %v4519 = vpop.xlane.xlu0 %4518
  %v4520 = vsel %vm41, %v4498, 0.0
  %4521 = vadd.xlane.f32.xlu0 %v4520
  %v4522 = vpop.xlane.xlu0 %4521
  %v4523 = vsel %vm41, %v4499, 0.0
  %4524 = vadd.xlane.f32.xlu0 %v4523
  %v4525 = vpop.xlane.xlu0 %4524
  %v4526 = vsel %vm41, %v4500, 0.0
  %4527 = vadd.xlane.f32.xlu0 %v4526
  %v4528 = vpop.xlane.xlu0 %4527
  %v4529 = vsel %vm41, %v4501, 0.0
  %4530 = vadd.xlane.f32.xlu0 %v4529
  %v4531 = vpop.xlane.xlu0 %4530
  %v4532 = vsel %vm41, %v4502, 0.0
  %4533 = vadd.xlane.f32.xlu0 %v4532
  %v4534 = vpop.xlane.xlu0 %4533
  %v4535 = vsel %vm41, %v4503, 0.0
  %4536 = vadd.xlane.f32.xlu0 %v4535
  %v4537 = vpop.xlane.xlu0 %4536
  %v4538 = vsel %vm41, %v4504, 0.0
  %4539 = vadd.xlane.f32.xlu0 %v4538
  %v4540 = vpop.xlane.xlu0 %4539
  %v4541 = vsel %vm41, %v4505, 0.0
  %4542 = vadd.xlane.f32.xlu0 %v4541
  %v4543 = vpop.xlane.xlu0 %4542
  %v4544 = vsel %vm41, %v4506, 0.0
  %4545 = vadd.xlane.f32.xlu0 %v4544
  %v4546 = vpop.xlane.xlu0 %4545
  %v4547 = vsel %vm41, %v4507, 0.0
  %4548 = vadd.xlane.f32.xlu0 %v4547
  %v4549 = vpop.xlane.xlu0 %4548
  %v4550 = vsel %vm41, %v4508, 0.0
  %4551 = vadd.xlane.f32.xlu0 %v4550
  %v4552 = vpop.xlane.xlu0 %4551
  %v4553 = vsel %vm41, %v4509, 0.0
  %4554 = vadd.xlane.f32.xlu0 %v4553
  %v4555 = vpop.xlane.xlu0 %4554
  %v4556 = vsel %vm41, %v4510, 0.0
  %4557 = vadd.xlane.f32.xlu0 %v4556
  %v4558 = vpop.xlane.xlu0 %4557
  %v4559 = vmul.f32 %v4513, %v90
  %v4560 = vmul.f32 %v4516, %v90
  %v4561 = vmul.f32 %v4519, %v90
  %v4562 = vmul.f32 %v4522, %v90
  %v4563 = vmul.f32 %v4525, %v90
  %v4564 = vmul.f32 %v4528, %v90
  %v4565 = vmul.f32 %v4531, %v90
  %v4566 = vmul.f32 %v4534, %v90
  %v4567 = vmul.f32 %v4537, %v90
  %v4568 = vmul.f32 %v4540, %v90
  %v4569 = vmul.f32 %v4543, %v90
  %v4570 = vmul.f32 %v4546, %v90
  %v4571 = vmul.f32 %v4549, %v90
  %v4572 = vmul.f32 %v4552, %v90
  %v4573 = vmul.f32 %v4555, %v90
  %v4574 = vmul.f32 %v4558, %v90
  %v4575 = vmul.f32 %v4495, %v4495
  %v4576 = vmul.f32 %v4496, %v4496
  %v4577 = vmul.f32 %v4497, %v4497
  %v4578 = vmul.f32 %v4498, %v4498
  %v4579 = vmul.f32 %v4499, %v4499
  %v4580 = vmul.f32 %v4500, %v4500
  %v4581 = vmul.f32 %v4501, %v4501
  %v4582 = vmul.f32 %v4502, %v4502
  %v4583 = vmul.f32 %v4503, %v4503
  %v4584 = vmul.f32 %v4504, %v4504
  %v4585 = vmul.f32 %v4505, %v4505
  %v4586 = vmul.f32 %v4506, %v4506
  %v4587 = vmul.f32 %v4507, %v4507
  %v4588 = vmul.f32 %v4508, %v4508
  %v4589 = vmul.f32 %v4509, %v4509
  %v4590 = vmul.f32 %v4510, %v4510
  %v4591 = vsel %vm41, %v4575, 0.0
  %4592 = vadd.xlane.f32.xlu0 %v4591
  %v4593 = vpop.xlane.xlu0 %4592
  %v4594 = vsel %vm41, %v4576, 0.0
  %4595 = vadd.xlane.f32.xlu0 %v4594
  %v4596 = vpop.xlane.xlu0 %4595
  %v4597 = vsel %vm41, %v4577, 0.0
  %4598 = vadd.xlane.f32.xlu0 %v4597
  %v4599 = vpop.xlane.xlu0 %4598
  %v4600 = vsel %vm41, %v4578, 0.0
  %4601 = vadd.xlane.f32.xlu0 %v4600
  %v4602 = vpop.xlane.xlu0 %4601
  %v4603 = vsel %vm41, %v4579, 0.0
  %4604 = vadd.xlane.f32.xlu0 %v4603
  %v4605 = vpop.xlane.xlu0 %4604
  %v4606 = vsel %vm41, %v4580, 0.0
  %4607 = vadd.xlane.f32.xlu0 %v4606
  %v4608 = vpop.xlane.xlu0 %4607
  %v4609 = vsel %vm41, %v4581, 0.0
  %4610 = vadd.xlane.f32.xlu0 %v4609
  %v4611 = vpop.xlane.xlu0 %4610
  %v4612 = vsel %vm41, %v4582, 0.0
  %4613 = vadd.xlane.f32.xlu0 %v4612
  %v4614 = vpop.xlane.xlu0 %4613
  %v4615 = vsel %vm41, %v4583, 0.0
  %4616 = vadd.xlane.f32.xlu0 %v4615
  %v4617 = vpop.xlane.xlu0 %4616
  %v4618 = vsel %vm41, %v4584, 0.0
  %4619 = vadd.xlane.f32.xlu0 %v4618
  %v4620 = vpop.xlane.xlu0 %4619
  %v4621 = vsel %vm41, %v4585, 0.0
  %4622 = vadd.xlane.f32.xlu0 %v4621
  %v4623 = vpop.xlane.xlu0 %4622
  %v4624 = vsel %vm41, %v4586, 0.0
  %4625 = vadd.xlane.f32.xlu0 %v4624
  %v4626 = vpop.xlane.xlu0 %4625
  %v4627 = vsel %vm41, %v4587, 0.0
  %4628 = vadd.xlane.f32.xlu0 %v4627
  %v4629 = vpop.xlane.xlu0 %4628
  %v4630 = vsel %vm41, %v4588, 0.0
  %4631 = vadd.xlane.f32.xlu0 %v4630
  %v4632 = vpop.xlane.xlu0 %4631
  %v4633 = vsel %vm41, %v4589, 0.0
  %4634 = vadd.xlane.f32.xlu0 %v4633
  %v4635 = vpop.xlane.xlu0 %4634
  %v4636 = vsel %vm41, %v4590, 0.0
  %4637 = vadd.xlane.f32.xlu0 %v4636
  %v4638 = vpop.xlane.xlu0 %4637
  %v4639 = vmul.f32 %v4593, %v90
  %v4640 = vmul.f32 %v4596, %v90
  %v4641 = vmul.f32 %v4599, %v90
  %v4642 = vmul.f32 %v4602, %v90
  %v4643 = vmul.f32 %v4605, %v90
  %v4644 = vmul.f32 %v4608, %v90
  %v4645 = vmul.f32 %v4611, %v90
  %v4646 = vmul.f32 %v4614, %v90
  %v4647 = vmul.f32 %v4617, %v90
  %v4648 = vmul.f32 %v4620, %v90
  %v4649 = vmul.f32 %v4623, %v90
  %v4650 = vmul.f32 %v4626, %v90
  %v4651 = vmul.f32 %v4629, %v90
  %v4652 = vmul.f32 %v4632, %v90
  %v4653 = vmul.f32 %v4635, %v90
  %v4654 = vmul.f32 %v4638, %v90
  %v4655 = vmul.f32 %v4559, %v4559
  %v4656 = vmul.f32 %v4560, %v4560
  %v4657 = vmul.f32 %v4561, %v4561
  %v4658 = vmul.f32 %v4562, %v4562
  %v4659 = vmul.f32 %v4563, %v4563
  %v4660 = vmul.f32 %v4564, %v4564
  %v4661 = vmul.f32 %v4565, %v4565
  %v4662 = vmul.f32 %v4566, %v4566
  %v4663 = vmul.f32 %v4567, %v4567
  %v4664 = vmul.f32 %v4568, %v4568
  %v4665 = vmul.f32 %v4569, %v4569
  %v4666 = vmul.f32 %v4570, %v4570
  %v4667 = vmul.f32 %v4571, %v4571
  %v4668 = vmul.f32 %v4572, %v4572
  %v4669 = vmul.f32 %v4573, %v4573
  %v4670 = vmul.f32 %v4574, %v4574
  %v4671 = vsub.f32 %v4639, %v4655
  %v4672 = vsub.f32 %v4640, %v4656
  %v4673 = vsub.f32 %v4641, %v4657
  %v4674 = vsub.f32 %v4642, %v4658
  %v4675 = vsub.f32 %v4643, %v4659
  %v4676 = vsub.f32 %v4644, %v4660
  %v4677 = vsub.f32 %v4645, %v4661
  %v4678 = vsub.f32 %v4646, %v4662
  %v4679 = vsub.f32 %v4647, %v4663
  %v4680 = vsub.f32 %v4648, %v4664
  %v4681 = vsub.f32 %v4649, %v4665
  %v4682 = vsub.f32 %v4650, %v4666
  %v4683 = vsub.f32 %v4651, %v4667
  %v4684 = vsub.f32 %v4652, %v4668
  %v4685 = vsub.f32 %v4653, %v4669
  %v4686 = vsub.f32 %v4654, %v4670
  %v4687 = vsub.f32 %v4495, %v4559
  %v4688 = vsub.f32 %v4496, %v4560
  %v4689 = vsub.f32 %v4497, %v4561
  %v4690 = vsub.f32 %v4498, %v4562
  %v4691 = vsub.f32 %v4499, %v4563
  %v4692 = vsub.f32 %v4500, %v4564
  %v4693 = vsub.f32 %v4501, %v4565
  %v4694 = vsub.f32 %v4502, %v4566
  %v4695 = vsub.f32 %v4503, %v4567
  %v4696 = vsub.f32 %v4504, %v4568
  %v4697 = vsub.f32 %v4505, %v4569
  %v4698 = vsub.f32 %v4506, %v4570
  %v4699 = vsub.f32 %v4507, %v4571
  %v4700 = vsub.f32 %v4508, %v4572
  %v4701 = vsub.f32 %v4509, %v4573
  %v4702 = vsub.f32 %v4510, %v4574
  %v4703 = vadd.f32 %v4671, 1e-06
  %v4704 = vadd.f32 %v4672, 1e-06
  %v4705 = vadd.f32 %v4673, 1e-06
  %v4706 = vadd.f32 %v4674, 1e-06
  %v4707 = vadd.f32 %v4675, 1e-06
  %v4708 = vadd.f32 %v4676, 1e-06
  %v4709 = vadd.f32 %v4677, 1e-06
  %v4710 = vadd.f32 %v4678, 1e-06
  %v4711 = vadd.f32 %v4679, 1e-06
  %v4712 = vadd.f32 %v4680, 1e-06
  %v4713 = vadd.f32 %v4681, 1e-06
  %v4714 = vadd.f32 %v4682, 1e-06
  %v4715 = vadd.f32 %v4683, 1e-06
  %v4716 = vadd.f32 %v4684, 1e-06
  %v4717 = vadd.f32 %v4685, 1e-06
  %v4718 = vadd.f32 %v4686, 1e-06
  %v4719 = vrsqrt.pop %v4703
  %v4720 = vrsqrt.pop %v4704
  %v4721 = vrsqrt.pop %v4705
  %v4722 = vrsqrt.pop %v4706
  %v4723 = vrsqrt.pop %v4707
  %v4724 = vrsqrt.pop %v4708
  %v4725 = vrsqrt.pop %v4709
  %v4726 = vrsqrt.pop %v4710
  %v4727 = vrsqrt.pop %v4711
  %v4728 = vrsqrt.pop %v4712
  %v4729 = vrsqrt.pop %v4713
  %v4730 = vrsqrt.pop %v4714
  %v4731 = vrsqrt.pop %v4715
  %v4732 = vrsqrt.pop %v4716
  %v4733 = vrsqrt.pop %v4717
  %v4734 = vrsqrt.pop %v4718
  %v4735 = vmul.f32 %v4687, %v4719
  %v4736 = vmul.f32 %v4688, %v4720
  %v4737 = vmul.f32 %v4689, %v4721
  %v4738 = vmul.f32 %v4690, %v4722
  %v4739 = vmul.f32 %v4691, %v4723
  %v4740 = vmul.f32 %v4692, %v4724
  %v4741 = vmul.f32 %v4693, %v4725
  %v4742 = vmul.f32 %v4694, %v4726
  %v4743 = vmul.f32 %v4695, %v4727
  %v4744 = vmul.f32 %v4696, %v4728
  %v4745 = vmul.f32 %v4697, %v4729
  %v4746 = vmul.f32 %v4698, %v4730
  %v4747 = vmul.f32 %v4699, %v4731
  %v4748 = vmul.f32 %v4700, %v4732
  %v4749 = vmul.f32 %v4701, %v4733
  %v4750 = vmul.f32 %v4702, %v4734
  %v4751 = vlaneseq
  %v4752 = vshrl.u32 %v4751, 7
  %v4753 = vsub.s32 2, %v4752
  %v4754 = vrot.slane %v2658, %v4753
  %v4755 = vmul.f32 %v4735, %v4754
  %v4756 = vmul.f32 %v4736, %v4754
  %v4757 = vmul.f32 %v4737, %v4754
  %v4758 = vmul.f32 %v4738, %v4754
  %v4759 = vmul.f32 %v4739, %v4754
  %v4760 = vmul.f32 %v4740, %v4754
  %v4761 = vmul.f32 %v4741, %v4754
  %v4762 = vmul.f32 %v4742, %v4754
  %v4763 = vmul.f32 %v4743, %v4754
  %v4764 = vmul.f32 %v4744, %v4754
  %v4765 = vmul.f32 %v4745, %v4754
  %v4766 = vmul.f32 %v4746, %v4754
  %v4767 = vmul.f32 %v4747, %v4754
  %v4768 = vmul.f32 %v4748, %v4754
  %v4769 = vmul.f32 %v4749, %v4754
  %v4770 = vmul.f32 %v4750, %v4754
  %v4771 = vlaneseq
  %v4772 = vshrl.u32 %v4771, 7
  %v4773 = vsub.s32 3, %v4772
  %v4774 = vrot.slane %v2658, %v4773
  %v4775 = vadd.f32 %v4755, %v4774
  %v4776 = vadd.f32 %v4756, %v4774
  %v4777 = vadd.f32 %v4757, %v4774
  %v4778 = vadd.f32 %v4758, %v4774
  %v4779 = vadd.f32 %v4759, %v4774
  %v4780 = vadd.f32 %v4760, %v4774
  %v4781 = vadd.f32 %v4761, %v4774
  %v4782 = vadd.f32 %v4762, %v4774
  %v4783 = vadd.f32 %v4763, %v4774
  %v4784 = vadd.f32 %v4764, %v4774
  %v4785 = vadd.f32 %v4765, %v4774
  %v4786 = vadd.f32 %v4766, %v4774
  %v4787 = vadd.f32 %v4767, %v4774
  %v4788 = vadd.f32 %v4768, %v4774
  %v4789 = vadd.f32 %v4769, %v4774
  %v4790 = vadd.f32 %v4770, %v4774
  %v4791 = vpack.c.bf16 %v4776, %v4775
  %v4792 = vpack.c.bf16 %v4778, %v4777
  %v4793 = vpack.c.bf16 %v4780, %v4779
  %v4794 = vpack.c.bf16 %v4782, %v4781
  %v4795 = vpack.c.bf16 %v4784, %v4783
  %v4796 = vpack.c.bf16 %v4786, %v4785
  %v4797 = vpack.c.bf16 %v4788, %v4787
  %v4798 = vpack.c.bf16 %v4790, %v4789
  %s4799 = scalar_lea.vmem %s4, 16
  %v4800 = vld [vmem:[%s4799] sm:$0xf]
  %v4801 = vld [vmem:[%s4799 + $0x4] sm:$0xf]
  %v4802 = vld [vmem:[%s4799 + $0x8] sm:$0xf]
  %v4803 = vld [vmem:[%s4799 + $0xc] sm:$0xf]
  %v4804 = vlaneseq
  %v4805 = vshrl.u32 %v4804, 7
  %v4806 = vsub.s32 6, %v4805
  %v4807 = vrot.slane %v2658, %v4806
  %v4812 = vunpack.c.l.b16 %v4800
  %v4813 = vunpack.c.l.b16 %v4801
  %v4814 = vunpack.c.l.b16 %v4802
  %v4815 = vunpack.c.l.b16 %v4803
  %v4816 = vpack.c.b16 %v4813, %v4812
  %v4817 = vpack.c.b16 %v4815, %v4814
  %v4821 = vsel %vm41, %v4791, 0
  %v4824 = vsel %vm41, %v4792, 0
  %v4827 = vsel %vm41, %v4793, 0
  %v4830 = vsel %vm41, %v4794, 0
  %v4833 = vsel %vm41, %v4795, 0
  %v4836 = vsel %vm41, %v4796, 0
  %v4839 = vsel %vm41, %v4797, 0
  %v4842 = vsel %vm41, %v4798, 0
  %4844 = vmatprep.subr.bf16.mxu0 0
  %4845 = vmatpush1.bf16.msra.mxu0 0
  %4846 = vmatprep.subr.bf16.mxu0 0
  %4847 = vmatpush1.bf16.msra.mxu0 0
  %4848 = vmatprep.subr.bf16.mxu0 0
  %4849 = vmatpush1.bf16.msra.mxu0 0
  %4850 = vmatprep.subr.bf16.mxu0 0
  %4851 = vmatpush1.bf16.msra.mxu0 0
  %4852 = vmatprep.subr.bf16.mxu0 0
  %4853 = vmatpush1.bf16.msra.mxu0 0
  %4854 = vmatprep.subr.bf16.mxu0 0
  %4855 = vmatpush1.bf16.msra.mxu0 0
  %4856 = vmatprep.subr.bf16.mxu0 0
  %4857 = vmatpush1.bf16.msra.mxu0 %v4817
  %4858 = vmatprep.subr.bf16.mxu0 0
  %4859 = vmatpush1.bf16.msra.mxu0 %v4816
  %4860 = vmatprep.subr.bf16.mxu0 0
  %4861 = vmatpush2.bf16.msra.mxu0 0
  %4862 = vmatprep.subr.bf16.mxu0 0
  %4863 = vmatpush2.bf16.msra.mxu0 0
  %4864 = vmatprep.subr.bf16.mxu0 0
  %4865 = vmatpush2.bf16.msra.mxu0 0
  %4866 = vmatprep.subr.bf16.mxu0 0
  %4867 = vmatpush2.bf16.msra.mxu0 0
  %4868 = vmatprep.subr.bf16.mxu0 0
  %4869 = vmatpush2.bf16.msra.mxu0 0
  %4870 = vmatprep.subr.bf16.mxu0 0
  %4871 = vmatpush2.bf16.msra.mxu0 0
  %4872 = vmatprep.subr.bf16.mxu0 0
  %4873 = vmatpush2.bf16.msra.mxu0 0
  %4874 = vmatprep.subr.bf16.mxu0 0
  %4875 = vmatpush2.bf16.msra.mxu0 0
  %4876 = vmatprep.mubr.bf16.mxu0 0
  %4877 = vmatmul.mubr.bf16.gmra.mxu0 %v4821
  %v4878 = vpop.f32.mrf.mxu0
  %v4879 = vadd.f32 %v4807, %v4878
  %v4880 = vpop.f32.mrf.mxu0
  %v4881 = vpop.f32.mrf.mxu0
  %v4882 = vadd.f32 %v4807, %v4881
  %v4883 = vpop.f32.mrf.mxu0
  %4884 = vmatprep.mubr.bf16.mxu0 0
  %4885 = vmatmul.mubr.bf16.gmra.mxu0 %v4824
  %v4886 = vpop.f32.mrf.mxu0
  %v4887 = vadd.f32 %v4807, %v4886
  %v4888 = vpop.f32.mrf.mxu0
  %v4889 = vpop.f32.mrf.mxu0
  %v4890 = vadd.f32 %v4807, %v4889
  %v4891 = vpop.f32.mrf.mxu0
  %4892 = vmatprep.mubr.bf16.mxu0 0
  %4893 = vmatmul.mubr.bf16.gmra.mxu0 %v4827
  %v4894 = vpop.f32.mrf.mxu0
  %v4895 = vadd.f32 %v4807, %v4894
  %v4896 = vpop.f32.mrf.mxu0
  %v4897 = vpop.f32.mrf.mxu0
  %v4898 = vadd.f32 %v4807, %v4897
  %v4899 = vpop.f32.mrf.mxu0
  %4900 = vmatprep.mubr.bf16.mxu0 0
  %4901 = vmatmul.mubr.bf16.gmra.mxu0 %v4830
  %v4902 = vpop.f32.mrf.mxu0
  %v4903 = vadd.f32 %v4807, %v4902
  %v4904 = vpop.f32.mrf.mxu0
  %v4905 = vpop.f32.mrf.mxu0
  %v4906 = vadd.f32 %v4807, %v4905
  %v4907 = vpop.f32.mrf.mxu0
  %4908 = vmatprep.mubr.bf16.mxu0 0
  %4909 = vmatmul.mubr.bf16.gmra.mxu0 %v4833
  %v4910 = vpop.f32.mrf.mxu0
  %v4911 = vadd.f32 %v4807, %v4910
  %v4912 = vpop.f32.mrf.mxu0
  %v4913 = vpop.f32.mrf.mxu0
  %v4914 = vadd.f32 %v4807, %v4913
  %v4915 = vpop.f32.mrf.mxu0
  %4916 = vmatprep.mubr.bf16.mxu0 0
  %4917 = vmatmul.mubr.bf16.gmra.mxu0 %v4836
  %v4918 = vpop.f32.mrf.mxu0
  %v4919 = vadd.f32 %v4807, %v4918
  %v4920 = vpop.f32.mrf.mxu0
  %v4921 = vpop.f32.mrf.mxu0
  %v4922 = vadd.f32 %v4807, %v4921
  %v4923 = vpop.f32.mrf.mxu0
  %4924 = vmatprep.mubr.bf16.mxu0 0
  %4925 = vmatmul.mubr.bf16.gmra.mxu0 %v4839
  %v4926 = vpop.f32.mrf.mxu0
  %v4927 = vadd.f32 %v4807, %v4926
  %v4928 = vpop.f32.mrf.mxu0
  %v4929 = vpop.f32.mrf.mxu0
  %v4930 = vadd.f32 %v4807, %v4929
  %v4931 = vpop.f32.mrf.mxu0
  %4932 = vmatprep.mubr.bf16.mxu0 0
  %4933 = vmatmul.mubr.bf16.gmra.mxu0 %v4842
  %v4934 = vpop.f32.mrf.mxu0
  %v4935 = vadd.f32 %v4807, %v4934
  %v4936 = vpop.f32.mrf.mxu0
  %v4937 = vpop.f32.mrf.mxu0
  %v4938 = vadd.f32 %v4807, %v4937
  %v4939 = vpop.f32.mrf.mxu0
  %4940 = vdwg.mxu0
  %v4941 = vmul.f32 %v4879, %v4879
  %v4942 = vmul.f32 %v4882, %v4882
  %v4943 = vmul.f32 %v4887, %v4887
  %v4944 = vmul.f32 %v4890, %v4890
  %v4945 = vmul.f32 %v4895, %v4895
  %v4946 = vmul.f32 %v4898, %v4898
  %v4947 = vmul.f32 %v4903, %v4903
  %v4948 = vmul.f32 %v4906, %v4906
  %v4949 = vmul.f32 %v4911, %v4911
  %v4950 = vmul.f32 %v4914, %v4914
  %v4951 = vmul.f32 %v4919, %v4919
  %v4952 = vmul.f32 %v4922, %v4922
  %v4953 = vmul.f32 %v4927, %v4927
  %v4954 = vmul.f32 %v4930, %v4930
  %v4955 = vmul.f32 %v4935, %v4935
  %v4956 = vmul.f32 %v4938, %v4938
  %v4957 = vmul.f32 %v4879, %v4941
  %v4958 = vmul.f32 %v4882, %v4942
  %v4959 = vmul.f32 %v4887, %v4943
  %v4960 = vmul.f32 %v4890, %v4944
  %v4961 = vmul.f32 %v4895, %v4945
  %v4962 = vmul.f32 %v4898, %v4946
  %v4963 = vmul.f32 %v4903, %v4947
  %v4964 = vmul.f32 %v4906, %v4948
  %v4965 = vmul.f32 %v4911, %v4949
  %v4966 = vmul.f32 %v4914, %v4950
  %v4967 = vmul.f32 %v4919, %v4951
  %v4968 = vmul.f32 %v4922, %v4952
  %v4969 = vmul.f32 %v4927, %v4953
  %v4970 = vmul.f32 %v4930, %v4954
  %v4971 = vmul.f32 %v4935, %v4955
  %v4972 = vmul.f32 %v4938, %v4956
  %v4973 = vmul.f32 %v4957, 0.044715
  %v4974 = vmul.f32 %v4958, 0.044715
  %v4975 = vmul.f32 %v4959, 0.044715
  %v4976 = vmul.f32 %v4960, 0.044715
  %v4977 = vmul.f32 %v4961, 0.044715
  %v4978 = vmul.f32 %v4962, 0.044715
  %v4979 = vmul.f32 %v4963, 0.044715
  %v4980 = vmul.f32 %v4964, 0.044715
  %v4981 = vmul.f32 %v4965, 0.044715
  %v4982 = vmul.f32 %v4966, 0.044715
  %v4983 = vmul.f32 %v4967, 0.044715
  %v4984 = vmul.f32 %v4968, 0.044715
  %v4985 = vmul.f32 %v4969, 0.044715
  %v4986 = vmul.f32 %v4970, 0.044715
  %v4987 = vmul.f32 %v4971, 0.044715
  %v4988 = vmul.f32 %v4972, 0.044715
  %v4989 = vadd.f32 %v4879, %v4973
  %v4990 = vadd.f32 %v4882, %v4974
  %v4991 = vadd.f32 %v4887, %v4975
  %v4992 = vadd.f32 %v4890, %v4976
  %v4993 = vadd.f32 %v4895, %v4977
  %v4994 = vadd.f32 %v4898, %v4978
  %v4995 = vadd.f32 %v4903, %v4979
  %v4996 = vadd.f32 %v4906, %v4980
  %v4997 = vadd.f32 %v4911, %v4981
  %v4998 = vadd.f32 %v4914, %v4982
  %v4999 = vadd.f32 %v4919, %v4983
  %v5000 = vadd.f32 %v4922, %v4984
  %v5001 = vadd.f32 %v4927, %v4985
  %v5002 = vadd.f32 %v4930, %v4986
  %v5003 = vadd.f32 %v4935, %v4987
  %v5004 = vadd.f32 %v4938, %v4988
  %v5005 = vmul.f32 %v4989, 0.7978846
  %v5006 = vmul.f32 %v4990, 0.7978846
  %v5007 = vmul.f32 %v4991, 0.7978846
  %v5008 = vmul.f32 %v4992, 0.7978846
  %v5009 = vmul.f32 %v4993, 0.7978846
  %v5010 = vmul.f32 %v4994, 0.7978846
  %v5011 = vmul.f32 %v4995, 0.7978846
  %v5012 = vmul.f32 %v4996, 0.7978846
  %v5013 = vmul.f32 %v4997, 0.7978846
  %v5014 = vmul.f32 %v4998, 0.7978846
  %v5015 = vmul.f32 %v4999, 0.7978846
  %v5016 = vmul.f32 %v5000, 0.7978846
  %v5017 = vmul.f32 %v5001, 0.7978846
  %v5018 = vmul.f32 %v5002, 0.7978846
  %v5019 = vmul.f32 %v5003, 0.7978846
  %v5020 = vmul.f32 %v5004, 0.7978846
  %v5021 = vtanh.pop %v5005
  %v5022 = vtanh.pop %v5006
  %v5023 = vtanh.pop %v5007
  %v5024 = vtanh.pop %v5008
  %v5025 = vtanh.pop %v5009
  %v5026 = vtanh.pop %v5010
  %v5027 = vtanh.pop %v5011
  %v5028 = vtanh.pop %v5012
  %v5029 = vtanh.pop %v5013
  %v5030 = vtanh.pop %v5014
  %v5031 = vtanh.pop %v5015
  %v5032 = vtanh.pop %v5016
  %v5033 = vtanh.pop %v5017
  %v5034 = vtanh.pop %v5018
  %v5035 = vtanh.pop %v5019
  %v5036 = vtanh.pop %v5020
  %v5037 = vadd.f32 %v5021, 1.0
  %v5038 = vadd.f32 %v5022, 1.0
  %v5039 = vadd.f32 %v5023, 1.0
  %v5040 = vadd.f32 %v5024, 1.0
  %v5041 = vadd.f32 %v5025, 1.0
  %v5042 = vadd.f32 %v5026, 1.0
  %v5043 = vadd.f32 %v5027, 1.0
  %v5044 = vadd.f32 %v5028, 1.0
  %v5045 = vadd.f32 %v5029, 1.0
  %v5046 = vadd.f32 %v5030, 1.0
  %v5047 = vadd.f32 %v5031, 1.0
  %v5048 = vadd.f32 %v5032, 1.0
  %v5049 = vadd.f32 %v5033, 1.0
  %v5050 = vadd.f32 %v5034, 1.0
  %v5051 = vadd.f32 %v5035, 1.0
  %v5052 = vadd.f32 %v5036, 1.0
  %v5053 = vmul.f32 %v5037, 0.5
  %v5054 = vmul.f32 %v5038, 0.5
  %v5055 = vmul.f32 %v5039, 0.5
  %v5056 = vmul.f32 %v5040, 0.5
  %v5057 = vmul.f32 %v5041, 0.5
  %v5058 = vmul.f32 %v5042, 0.5
  %v5059 = vmul.f32 %v5043, 0.5
  %v5060 = vmul.f32 %v5044, 0.5
  %v5061 = vmul.f32 %v5045, 0.5
  %v5062 = vmul.f32 %v5046, 0.5
  %v5063 = vmul.f32 %v5047, 0.5
  %v5064 = vmul.f32 %v5048, 0.5
  %v5065 = vmul.f32 %v5049, 0.5
  %v5066 = vmul.f32 %v5050, 0.5
  %v5067 = vmul.f32 %v5051, 0.5
  %v5068 = vmul.f32 %v5052, 0.5
  %v5069 = vmul.f32 %v4879, %v5053
  %v5070 = vmul.f32 %v4882, %v5054
  %v5071 = vmul.f32 %v4887, %v5055
  %v5072 = vmul.f32 %v4890, %v5056
  %v5073 = vmul.f32 %v4895, %v5057
  %v5074 = vmul.f32 %v4898, %v5058
  %v5075 = vmul.f32 %v4903, %v5059
  %v5076 = vmul.f32 %v4906, %v5060
  %v5077 = vmul.f32 %v4911, %v5061
  %v5078 = vmul.f32 %v4914, %v5062
  %v5079 = vmul.f32 %v4919, %v5063
  %v5080 = vmul.f32 %v4922, %v5064
  %v5081 = vmul.f32 %v4927, %v5065
  %v5082 = vmul.f32 %v4930, %v5066
  %v5083 = vmul.f32 %v4935, %v5067
  %v5084 = vmul.f32 %v4938, %v5068
  %v5085 = vpack.c.bf16 %v5070, %v5069
  %v5086 = vpack.c.bf16 %v5072, %v5071
  %v5087 = vpack.c.bf16 %v5074, %v5073
  %v5088 = vpack.c.bf16 %v5076, %v5075
  %v5089 = vpack.c.bf16 %v5078, %v5077
  %v5090 = vpack.c.bf16 %v5080, %v5079
  %v5091 = vpack.c.bf16 %v5082, %v5081
  %v5092 = vpack.c.bf16 %v5084, %v5083
  %s5093 = scalar_lea.vmem %s5, 64
  %v5094 = vld [vmem:[%s5093] sm:$0xf]
  %v5095 = vld [vmem:[%s5093 + $0x4] sm:$0xf]
  %v5096 = vld [vmem:[%s5093 + $0x8] sm:$0xf]
  %v5097 = vld [vmem:[%s5093 + $0xc] sm:$0xf]
  %v5098 = vld [vmem:[%s5093 + $0x10] sm:$0xf]
  %v5099 = vld [vmem:[%s5093 + $0x14] sm:$0xf]
  %v5100 = vld [vmem:[%s5093 + $0x18] sm:$0xf]
  %v5101 = vld [vmem:[%s5093 + $0x1c] sm:$0xf]
  %v5102 = vld [vmem:[%s5093 + $0x20] sm:$0xf]
  %v5103 = vld [vmem:[%s5093 + $0x24] sm:$0xf]
  %v5104 = vld [vmem:[%s5093 + $0x28] sm:$0xf]
  %v5105 = vld [vmem:[%s5093 + $0x2c] sm:$0xf]
  %v5106 = vld [vmem:[%s5093 + $0x30] sm:$0xf]
  %v5107 = vld [vmem:[%s5093 + $0x34] sm:$0xf]
  %v5108 = vld [vmem:[%s5093 + $0x38] sm:$0xf]
  %v5109 = vld [vmem:[%s5093 + $0x3c] sm:$0xf]
  %v5110 = vlaneseq
  %v5111 = vshrl.u32 %v5110, 7
  %v5112 = vsub.s32 7, %v5111
  %v5113 = vrot.slane %v2658, %v5112
  %v5130 = vunpack.c.l.b16 %v5094
  %v5131 = vunpack.c.l.b16 %v5095
  %v5132 = vunpack.c.l.b16 %v5096
  %v5133 = vunpack.c.l.b16 %v5097
  %v5134 = vunpack.c.l.b16 %v5098
  %v5135 = vunpack.c.l.b16 %v5099
  %v5136 = vunpack.c.l.b16 %v5100
  %v5137 = vunpack.c.l.b16 %v5101
  %v5138 = vunpack.c.l.b16 %v5102
  %v5139 = vunpack.c.l.b16 %v5103
  %v5140 = vunpack.c.l.b16 %v5104
  %v5141 = vunpack.c.l.b16 %v5105
  %v5142 = vunpack.c.l.b16 %v5106
  %v5143 = vunpack.c.l.b16 %v5107
  %v5144 = vunpack.c.l.b16 %v5108
  %v5145 = vunpack.c.l.b16 %v5109
  %v5146 = vpack.c.b16 %v5131, %v5130
  %v5147 = vpack.c.b16 %v5133, %v5132
  %v5148 = vpack.c.b16 %v5135, %v5134
  %v5149 = vpack.c.b16 %v5137, %v5136
  %v5150 = vpack.c.b16 %v5139, %v5138
  %v5151 = vpack.c.b16 %v5141, %v5140
  %v5152 = vpack.c.b16 %v5143, %v5142
  %v5153 = vpack.c.b16 %v5145, %v5144
  %5162 = vmatprep.subr.bf16.mxu0 0
  %5163 = vmatpush1.bf16.msra.mxu0 %v5153
  %5164 = vmatprep.subr.bf16.mxu0 0
  %5165 = vmatpush1.bf16.msra.mxu0 %v5152
  %5166 = vmatprep.subr.bf16.mxu0 0
  %5167 = vmatpush1.bf16.msra.mxu0 %v5151
  %5168 = vmatprep.subr.bf16.mxu0 0
  %5169 = vmatpush1.bf16.msra.mxu0 %v5150
  %5170 = vmatprep.subr.bf16.mxu0 0
  %5171 = vmatpush1.bf16.msra.mxu0 %v5149
  %5172 = vmatprep.subr.bf16.mxu0 0
  %5173 = vmatpush1.bf16.msra.mxu0 %v5148
  %5174 = vmatprep.subr.bf16.mxu0 0
  %5175 = vmatpush1.bf16.msra.mxu0 %v5147
  %5176 = vmatprep.subr.bf16.mxu0 0
  %5177 = vmatpush1.bf16.msra.mxu0 %v5146
  %5178 = vmatprep.subr.bf16.mxu0 0
  %5179 = vmatpush2.bf16.msra.mxu0 0
  %5180 = vmatprep.subr.bf16.mxu0 0
  %5181 = vmatpush2.bf16.msra.mxu0 0
  %5182 = vmatprep.subr.bf16.mxu0 0
  %5183 = vmatpush2.bf16.msra.mxu0 0
  %5184 = vmatprep.subr.bf16.mxu0 0
  %5185 = vmatpush2.bf16.msra.mxu0 0
  %5186 = vmatprep.subr.bf16.mxu0 0
  %5187 = vmatpush2.bf16.msra.mxu0 0
  %5188 = vmatprep.subr.bf16.mxu0 0
  %5189 = vmatpush2.bf16.msra.mxu0 0
  %5190 = vmatprep.subr.bf16.mxu0 0
  %5191 = vmatpush2.bf16.msra.mxu0 0
  %5192 = vmatprep.subr.bf16.mxu0 0
  %5193 = vmatpush2.bf16.msra.mxu0 0
  %5194 = vmatprep.mubr.bf16.mxu0 0
  %5195 = vmatmul.mubr.bf16.gmra.mxu0 %v5085
  %v5196 = vpop.f32.mrf.mxu0
  %v5197 = vadd.f32 %v5113, %v5196
  %v5198 = vpop.f32.mrf.mxu0
  %v5199 = vpop.f32.mrf.mxu0
  %v5200 = vadd.f32 %v5113, %v5199
  %v5201 = vpop.f32.mrf.mxu0
  %5202 = vmatprep.mubr.bf16.mxu0 0
  %5203 = vmatmul.mubr.bf16.gmra.mxu0 %v5086
  %v5204 = vpop.f32.mrf.mxu0
  %v5205 = vadd.f32 %v5113, %v5204
  %v5206 = vpop.f32.mrf.mxu0
  %v5207 = vpop.f32.mrf.mxu0
  %v5208 = vadd.f32 %v5113, %v5207
  %v5209 = vpop.f32.mrf.mxu0
  %5210 = vmatprep.mubr.bf16.mxu0 0
  %5211 = vmatmul.mubr.bf16.gmra.mxu0 %v5087
  %v5212 = vpop.f32.mrf.mxu0
  %v5213 = vadd.f32 %v5113, %v5212
  %v5214 = vpop.f32.mrf.mxu0
  %v5215 = vpop.f32.mrf.mxu0
  %v5216 = vadd.f32 %v5113, %v5215
  %v5217 = vpop.f32.mrf.mxu0
  %5218 = vmatprep.mubr.bf16.mxu0 0
  %5219 = vmatmul.mubr.bf16.gmra.mxu0 %v5088
  %v5220 = vpop.f32.mrf.mxu0
  %v5221 = vadd.f32 %v5113, %v5220
  %v5222 = vpop.f32.mrf.mxu0
  %v5223 = vpop.f32.mrf.mxu0
  %v5224 = vadd.f32 %v5113, %v5223
  %v5225 = vpop.f32.mrf.mxu0
  %5226 = vmatprep.mubr.bf16.mxu0 0
  %5227 = vmatmul.mubr.bf16.gmra.mxu0 %v5089
  %v5228 = vpop.f32.mrf.mxu0
  %v5229 = vadd.f32 %v5113, %v5228
  %v5230 = vpop.f32.mrf.mxu0
  %v5231 = vpop.f32.mrf.mxu0
  %v5232 = vadd.f32 %v5113, %v5231
  %v5233 = vpop.f32.mrf.mxu0
  %5234 = vmatprep.mubr.bf16.mxu0 0
  %5235 = vmatmul.mubr.bf16.gmra.mxu0 %v5090
  %v5236 = vpop.f32.mrf.mxu0
  %v5237 = vadd.f32 %v5113, %v5236
  %v5238 = vpop.f32.mrf.mxu0
  %v5239 = vpop.f32.mrf.mxu0
  %v5240 = vadd.f32 %v5113, %v5239
  %v5241 = vpop.f32.mrf.mxu0
  %5242 = vmatprep.mubr.bf16.mxu0 0
  %5243 = vmatmul.mubr.bf16.gmra.mxu0 %v5091
  %v5244 = vpop.f32.mrf.mxu0
  %v5245 = vadd.f32 %v5113, %v5244
  %v5246 = vpop.f32.mrf.mxu0
  %v5247 = vpop.f32.mrf.mxu0
  %v5248 = vadd.f32 %v5113, %v5247
  %v5249 = vpop.f32.mrf.mxu0
  %5250 = vmatprep.mubr.bf16.mxu0 0
  %5251 = vmatmul.mubr.bf16.gmra.mxu0 %v5092
  %v5252 = vpop.f32.mrf.mxu0
  %v5253 = vadd.f32 %v5113, %v5252
  %v5254 = vpop.f32.mrf.mxu0
  %v5255 = vpop.f32.mrf.mxu0
  %v5256 = vadd.f32 %v5113, %v5255
  %v5257 = vpop.f32.mrf.mxu0
  %5258 = vdwg.mxu0
  %v5259 = vadd.f32 %v4495, %v5197
  %v5260 = vadd.f32 %v4496, %v5200
  %v5261 = vadd.f32 %v4497, %v5205
  %v5262 = vadd.f32 %v4498, %v5208
  %v5263 = vadd.f32 %v4499, %v5213
  %v5264 = vadd.f32 %v4500, %v5216
  %v5265 = vadd.f32 %v4501, %v5221
  %v5266 = vadd.f32 %v4502, %v5224
  %v5267 = vadd.f32 %v4503, %v5229
  %v5268 = vadd.f32 %v4504, %v5232
  %v5269 = vadd.f32 %v4505, %v5237
  %v5270 = vadd.f32 %v4506, %v5240
  %v5271 = vadd.f32 %v4507, %v5245
  %v5272 = vadd.f32 %v4508, %v5248
  %v5273 = vadd.f32 %v4509, %v5253
  %v5274 = vadd.f32 %v4510, %v5256
  %5275 = vst.msk [vmem:[%s6] sm:$0xff] %vm41, %v5259
  %5276 = vst.msk [vmem:[%s6 + $0x8] sm:$0xff] %vm41, %v5260
  %5277 = vst.msk [vmem:[%s6 + $0x10] sm:$0xff] %vm41, %v5261
  %5278 = vst.msk [vmem:[%s6 + $0x18] sm:$0xff] %vm41, %v5262
  %5279 = vst.msk [vmem:[%s6 + $0x20] sm:$0xff] %vm41, %v5263
  %5280 = vst.msk [vmem:[%s6 + $0x28] sm:$0xff] %vm41, %v5264
  %5281 = vst.msk [vmem:[%s6 + $0x30] sm:$0xff] %vm41, %v5265
  %5282 = vst.msk [vmem:[%s6 + $0x38] sm:$0xff] %vm41, %v5266
  %5283 = vst.msk [vmem:[%s6 + $0x40] sm:$0xff] %vm41, %v5267
  %5284 = vst.msk [vmem:[%s6 + $0x48] sm:$0xff] %vm41, %v5268
  %5285 = vst.msk [vmem:[%s6 + $0x50] sm:$0xff] %vm41, %v5269
  %5286 = vst.msk [vmem:[%s6 + $0x58] sm:$0xff] %vm41, %v5270
  %5287 = vst.msk [vmem:[%s6 + $0x60] sm:$0xff] %vm41, %v5271
  %5288 = vst.msk [vmem:[%s6 + $0x68] sm:$0xff] %vm41, %v5272
  %5289 = vst.msk [vmem:[%s6 + $0x70] sm:$0xff] %vm41, %v5273
  %5290 = vst.msk [vmem:[%s6 + $0x78] sm:$0xff] %vm41, %v5274
  // Predicated region
  $region26: #{tpu_custom_call.1} parent=0 // pred_check
    _
  $region27: #{tpu_custom_call.1} parent=0 // pred_check_branch
    %5292 = sbr.rel (0) target = $region29
  $region28: #{tpu_custom_call.1} parent=0 // pred_region
    _
  $region29: #{tpu_custom_call.1} parent=0 // pred_fallthru
    _
  // Predicated region
  $region30: #{tpu_custom_call.1} parent=0 // pred_check
    _
  $region31: #{tpu_custom_call.1} parent=0 // pred_check_branch
    %5294 = sbr.rel (0) target = $region33
  $region32: #{tpu_custom_call.1} parent=0 // pred_region
    _
  $region33: #{tpu_custom_call.1} parent=0 // pred_fallthru
    _

</llo_original>
